<compile_context>
chip_gen: v7x
topology: tpu7x:2x2x1
jax: 0.10.0
libtpu: 0.0.40
codegen_flags: <defaults>
</compile_context>

<pallas_src>
import numpy as np

import jax
import jax.numpy as jnp
from jax.experimental import pallas as pl
from jax.experimental.pallas import tpu as pltpu


# --------------------------------------------------------------------------
# Static architecture config (in-script replacement for the JSON file)
# --------------------------------------------------------------------------
CONFIG = {
    "type": "bottleneck",
    "layer": {"conv_in": 16, "conv_out": 32},
    "block": [
        {"type": "bottleneck", "c1": 8, "k": 3, "c2": 16, "s": 1},
        {"type": "bottleneck", "c1": 8, "k": 3, "c2": 32, "s": 2},
    ],
}
BN_EPS = 1e-5
TAPS = tuple((di, dj) for di in range(3) for dj in range(3))


# --------------------------------------------------------------------------
# Static plan: flat list of conv descriptors derived from CONFIG.
# (Strings/ints stay OUT of the jitted params pytree.)
# --------------------------------------------------------------------------
def build_plan(input_channel):
    assert CONFIG["type"] == "bottleneck"
    plan = []
    c_in = CONFIG["layer"]["conv_in"]
    # conv_in: 3x3, stride 1, pad 1 -> BN -> relu6
    plan.append(dict(kind="conv3", cin=input_channel, cout=c_in,
                     relu=True, save_res=False, add_res=False))
    out_planes = c_in
    stride_prod = 1
    for bc in CONFIG["block"]:
        t, c1, k, c2, s = bc["type"], bc["c1"], bc["k"], bc["c2"], bc["s"]
        assert t == "bottleneck" and k in (1, 3) and s in (1, 2)
        in_planes, hidden = out_planes, c1
        out_planes = c2
        use_res = (s == 1) and (in_planes == out_planes)
        if stride_prod > 1:
            # Deferred-stride trick: everything after a strided conv must be
            # pointwise (1x1) until the global pool, otherwise it is invalid.
            assert k == 1, "k>1 conv after a strided block is not supported"
        plan.append(dict(kind="conv1", cin=in_planes, cout=hidden,
                         relu=True, save_res=use_res, add_res=False))
        plan.append(dict(kind="conv3" if k == 3 else "conv1", cin=hidden,
                         cout=hidden, relu=True, save_res=False, add_res=False))
        plan.append(dict(kind="conv1", cin=hidden, cout=out_planes,
                         relu=False, save_res=False, add_res=use_res))
        stride_prod *= s
    c_out = CONFIG["layer"]["conv_out"]
    plan.append(dict(kind="conv1", cin=out_planes, cout=c_out,
                     relu=True, save_res=False, add_res=False))
    return plan, c_out, stride_prod


# --------------------------------------------------------------------------
# Deterministic parameters.  BN (eval) scale folded into conv weights; conv
# weights pre-packed into the lane-dense matmul orientation:
#   conv1 : (cout, cin)          conv3 : (cout, 9*cin)   (row = tap*cin + ch)
# --------------------------------------------------------------------------
def make_params(key, plan, num_classes, c_out):
    keys = iter(jax.random.split(key, 5 * len(plan) + 2))
    convs = []
    for op in plan:
        k = 3 if op["kind"] == "conv3" else 1
        cin, cout = op["cin"], op["cout"]
        w = 0.1 * jax.random.normal(next(keys), (k, k, cin, cout),
                                    dtype=jnp.float32)
        gamma = 1.0 + 0.1 * jax.random.normal(next(keys), (cout,))
        beta = 0.1 * jax.random.normal(next(keys), (cout,))
        mean = 0.1 * jax.random.normal(next(keys), (cout,))
        var = jnp.abs(jax.random.normal(next(keys), (cout,))) + 0.5
        scale = gamma / jnp.sqrt(var + BN_EPS)
        shift = (beta - mean * scale).astype(jnp.float32)
        w_folded = w * scale                       # fold BN scale, keep shift
        if k == 3:
            w2 = jnp.transpose(w_folded, (3, 0, 1, 2)).reshape(cout, 9 * cin)
        else:
            w2 = jnp.transpose(w_folded.reshape(cin, cout), (1, 0))
        convs.append((w2.astype(jnp.bfloat16), shift.reshape(cout, 1)))
    fc_w = (0.1 * jax.random.normal(next(keys), (c_out, num_classes))
            ).astype(jnp.float32)
    fc_b = (0.1 * jax.random.normal(next(keys), (num_classes,))
            ).astype(jnp.float32)
    return {"convs": convs, "fc_w": fc_w, "fc_b": fc_b}


# --------------------------------------------------------------------------
# Fused forward: whole network in one pallas_call, <=2 grid steps.
# --------------------------------------------------------------------------
def make_forward(plan, H, W, num_classes, stride_prod, c_out):
    HW = H * W
    S = stride_prod
    assert H % S == 0 and W % S == 0
    n_convs = len(plan)
    cin0 = plan[0]["cin"]
    NCPAD = max(128, ((num_classes + 127) // 128) * 128)   # lane-dense logits
    conv3_cins = [op["cin"] for li, op in enumerate(plan)
                  if li > 0 and op["kind"] == "conv3"]
    has_c3 = bool(conv3_cins)
    cmax = max(conv3_cins) if has_c3 else 0
    OFF = 128                      # zero border of the flat padded buffer
    assert OFF >= W + 1

    def make_kernel(Lg):
        def kernel(*refs):
            xcol_ref, masks_ref = refs[0], refs[1]
            conv_refs = refs[2:2 + 2 * n_convs]
            fcw_ref = refs[2 + 2 * n_convs]
            fcb_ref = refs[3 + 2 * n_convs]
            pool_ref = refs[4 + 2 * n_convs]
            out_ref = refs[5 + 2 * n_convs]
            if has_c3:
                pad_ref = refs[6 + 2 * n_convs]     # (cmax, OFF+Lg+OFF) bf16
                col_ref = refs[7 + 2 * n_convs]     # (9*cmax, Lg) bf16
                # Zero the flat padded buffer: the border must stay 0, the
                # interior is fully rewritten before every use.  Done
                # unconditionally per step so it is safe when grid steps land
                # on different TensorCores (each core has its own scratch).
                pad_ref[...] = jnp.zeros(pad_ref.shape, pad_ref.dtype)

            act = None          # current activation, (C, Lg) bf16
            res = None          # saved residual
            for li, op in enumerate(plan):
                w = conv_refs[2 * li][...]          # (cout, K) bf16
                b = conv_refs[2 * li + 1][...]      # (cout, 1) f32 (BN shift)
                cin = op["cin"]
                if op["save_res"]:
                    res = act
                if li == 0:
                    rhs = xcol_ref[...]             # host-prepared im2col input
                elif op["kind"] == "conv1":
                    rhs = act
                else:
                    # In-kernel im2col: one interior store, then 9 shifted
                    # lane slices * validity mask -> (9*cin, Lg) scratch,
                    # followed by a single K=9*cin MXU matmul.
                    pad_ref[pl.ds(0, cin), pl.ds(OFF, Lg)] = act
                    for t, (di, dj) in enumerate(TAPS):
                        sft = (di - 1) * W + (dj - 1)
                        blk = pad_ref[pl.ds(0, cin), pl.ds(OFF + sft, Lg)]
                        col_ref[pl.ds(t * cin, cin), :] = blk * masks_ref[t]
                    rhs = col_ref[pl.ds(0, 9 * cin), :]
                y = jnp.dot(w, rhs, preferred_element_type=jnp.float32)
                y = y + b
                if op["add_res"]:
                    y = y + res.astype(jnp.float32)
                if op["relu"]:
                    y = jnp.clip(y, 0.0, 6.0)       # relu6
                act = y.astype(jnp.bfloat16)

            # Global average pool on the MXU (deferred stride folded into the
            # pool weights), then fc against class-padded weights.
            pooled = jnp.dot(act, pool_ref[...],
                             preferred_element_type=jnp.float32)   # (C, Np)
            logits = jnp.dot(fcw_ref[...], pooled,
                             preferred_element_type=jnp.float32)   # (NCPAD,Np)
            out_ref[...] = logits + fcb_ref[...]
        return kernel

    @jax.jit
    def forward(x_nchw, params):
        N, Cin = x_nchw.shape[0], x_nchw.shape[1]
        assert Cin == cin0
        # <=2 grid steps: 2 (one per TensorCore on v7x) when batch is even,
        # else 1 (v5e/v6e single-core case costs one extra ~0.35us step only).
        G = 2 if (N >= 2 and N % 2 == 0) else 1
        Np = N // G
        Lg = Np * HW

        # ---- tiny host-side (XLA) prep ------------------------------------
        # conv_in im2col (4-channel input only): (G, 9*Cin, Lg),
        # row order = tap-major then channel, matching the packed weights.
        xp = jnp.pad(x_nchw, ((0, 0), (0, 0), (1, 1), (1, 1)))
        xcol = jnp.stack([xp[:, :, di:di + H, dj:dj + W] for (di, dj) in TAPS],
                         axis=1)                              # (N,9,Cin,H,W)
        xcol = xcol.reshape(N, 9 * Cin, HW)
        xcol = (xcol.reshape(G, Np, 9 * Cin, HW)
                    .transpose(0, 2, 1, 3)
                    .reshape(G, 9 * Cin, Lg)
                    .astype(jnp.bfloat16))

        # Per-tap validity masks (conv zero-padding + sample-boundary guard).
        pos = np.arange(Lg)
        ii = (pos % HW) // W
        jj = pos % W
        masks_np = np.zeros((9, 1, Lg), np.float32)
        for t, (di, dj) in enumerate(TAPS):
            masks_np[t, 0] = (((ii + di - 1) >= 0) & ((ii + di - 1) < H) &
                              ((jj + dj - 1) >= 0) & ((jj + dj - 1) < W))
        masks = jnp.asarray(masks_np, dtype=jnp.bfloat16)

        # Pool matrix: column m averages sample m's kept positions.  Deferred
        # stride -> keep (i%S==0, j%S==0) with weight 1/(Ho*Wo) (exact in bf16).
        keep = (((ii % S) == 0) & ((jj % S) == 0)).astype(np.float32)
        keep = keep / float((H // S) * (W // S))
        smp = pos // HW
        pool_np = np.zeros((Lg, Np), np.float32)
        for m in range(Np):
            pool_np[:, m] = np.where(smp == m, keep, 0.0)
        pool = jnp.asarray(np.broadcast_to(pool_np[None], (G, Lg, Np)),
                           dtype=jnp.bfloat16)

        # Lane-dense (class-padded) fc weights / bias.
        fc_wT = jnp.zeros((NCPAD, c_out), jnp.float32)
        fc_wT = fc_wT.at[:num_classes].set(params["fc_w"].T)
        fc_bT = jnp.zeros((NCPAD, 1), jnp.float32)
        fc_bT = fc_bT.at[:num_classes, 0].set(params["fc_b"])

        # ---- pallas_call ---------------------------------------------------
        args = [xcol, masks]
        in_specs = [pl.BlockSpec((None, 9 * Cin, Lg), lambda g: (g, 0, 0)),
                    pl.BlockSpec((9, 1, Lg), lambda g: (0, 0, 0))]
        for (w2, b2) in params["convs"]:
            args += [w2, b2]
            in_specs += [pl.BlockSpec(w2.shape, lambda g: (0, 0)),
                         pl.BlockSpec(b2.shape, lambda g: (0, 0))]
        args += [fc_wT, fc_bT, pool]
        in_specs += [pl.BlockSpec((NCPAD, c_out), lambda g: (0, 0)),
                     pl.BlockSpec((NCPAD, 1), lambda g: (0, 0)),
                     pl.BlockSpec((None, Lg, Np), lambda g: (g, 0, 0))]

        scratch_shapes = []
        if has_c3:
            scratch_shapes = [
                pltpu.VMEM((cmax, OFF + Lg + OFF), jnp.bfloat16),  # flat pad
                pltpu.VMEM((9 * cmax, Lg), jnp.bfloat16),          # im2col
            ]

        flops = 0
        for op in plan:
            kk = 9 if op["kind"] == "conv3" else 1
            flops += 2 * N * HW * kk * op["cin"] * op["cout"]
        flops += 2 * N * HW * c_out + 2 * N * c_out * NCPAD
        bytes_acc = sum(int(np.prod(a.shape)) * a.dtype.itemsize for a in args)
        bytes_acc += G * NCPAD * Np * 4
        cost = pl.CostEstimate(flops=int(flops), transcendentals=0,
                               bytes_accessed=int(bytes_acc))

        out = pl.pallas_call(
            make_kernel(Lg),
            out_shape=jax.ShapeDtypeStruct((G, NCPAD, Np), jnp.float32),
            grid=(G,),
            in_specs=in_specs,
            out_specs=pl.BlockSpec((None, NCPAD, Np), lambda g: (g, 0, 0)),
            scratch_shapes=scratch_shapes,
            compiler_params=pltpu.CompilerParams(
                dimension_semantics=("parallel",)),
            cost_estimate=cost,
        )(*args)

        # (G, NCPAD, Np) -> (N, num_classes)
        out = out.transpose(0, 2, 1).reshape(N, NCPAD)
        return out[:, :num_classes]

    return forward


# --------------------------------------------------------------------------
if __name__ == "__main__":
    key = jax.random.PRNGKey(0)
    k_x, k_p = jax.random.split(key)

    batch, input_channel, spatial, num_classes = 2, 4, 16, 10
    plan, c_out, stride_prod = build_plan(input_channel)
    params = make_params(k_p, plan, num_classes, c_out)
    forward = make_forward(plan, spatial, spatial, num_classes,
                           stride_prod, c_out)

    x = jax.random.normal(k_x, (batch, input_channel, spatial, spatial),
                          dtype=jnp.float32)          # NCHW, like PyTorch
    out = forward(x, params)
    out = jax.block_until_ready(out)
    assert out.shape == (batch, num_classes), out.shape
    assert bool(jnp.all(jnp.isfinite(out)))
    print("KERNEL_OK")
</pallas_src>

<mosaic_0001>
module attributes {stable_mosaic.version = 11 : i64} {
  func.func @kernel(%arg0: i32, %arg1: memref<1x36x256xbf16, #tpu.memory_space<vmem>>, %arg2: memref<9x1x256xbf16, #tpu.memory_space<vmem>>, %arg3: memref<16x36xbf16, #tpu.memory_space<vmem>>, %arg4: memref<16x1xf32, #tpu.memory_space<vmem>>, %arg5: memref<8x16xbf16, #tpu.memory_space<vmem>>, %arg6: memref<8x1xf32, #tpu.memory_space<vmem>>, %arg7: memref<8x72xbf16, #tpu.memory_space<vmem>>, %arg8: memref<8x1xf32, #tpu.memory_space<vmem>>, %arg9: memref<16x8xbf16, #tpu.memory_space<vmem>>, %arg10: memref<16x1xf32, #tpu.memory_space<vmem>>, %arg11: memref<8x16xbf16, #tpu.memory_space<vmem>>, %arg12: memref<8x1xf32, #tpu.memory_space<vmem>>, %arg13: memref<8x72xbf16, #tpu.memory_space<vmem>>, %arg14: memref<8x1xf32, #tpu.memory_space<vmem>>, %arg15: memref<32x8xbf16, #tpu.memory_space<vmem>>, %arg16: memref<32x1xf32, #tpu.memory_space<vmem>>, %arg17: memref<32x32xbf16, #tpu.memory_space<vmem>>, %arg18: memref<32x1xf32, #tpu.memory_space<vmem>>, %arg19: memref<128x32xf32, #tpu.memory_space<vmem>>, %arg20: memref<128x1xf32, #tpu.memory_space<vmem>>, %arg21: memref<1x256x1xbf16, #tpu.memory_space<vmem>>, %arg22: memref<1x128x1xf32, #tpu.memory_space<vmem>>, %arg23: memref<8x512xbf16, #tpu.memory_space<vmem>>, %arg24: memref<72x256xbf16, #tpu.memory_space<vmem>>) attributes {dimension_semantics = [#tpu.dimension_semantics<parallel>], iteration_bounds = array<i64: 2>, scalar_prefetch = 0 : i64, scratch_operands = 2 : i64, tpu.core_type = #tpu.core_type<tc>, window_params = [{transform_indices = @transform_0, window_bounds = array<i64: 1, 36, 256>}, {pipeline_mode = #tpu.pipeline_mode<synchronous>, transform_indices = @transform_1, window_bounds = array<i64: 9, 1, 256>}, {pipeline_mode = #tpu.pipeline_mode<synchronous>, transform_indices = @transform_2, window_bounds = array<i64: 16, 36>}, {pipeline_mode = #tpu.pipeline_mode<synchronous>, transform_indices = @transform_3, window_bounds = array<i64: 16, 1>}, {pipeline_mode = #tpu.pipeline_mode<synchronous>, transform_indices = @transform_4, window_bounds = array<i64: 8, 16>}, {pipeline_mode = #tpu.pipeline_mode<synchronous>, transform_indices = @transform_5, window_bounds = array<i64: 8, 1>}, {pipeline_mode = #tpu.pipeline_mode<synchronous>, transform_indices = @transform_6, window_bounds = array<i64: 8, 72>}, {pipeline_mode = #tpu.pipeline_mode<synchronous>, transform_indices = @transform_7, window_bounds = array<i64: 8, 1>}, {pipeline_mode = #tpu.pipeline_mode<synchronous>, transform_indices = @transform_8, window_bounds = array<i64: 16, 8>}, {pipeline_mode = #tpu.pipeline_mode<synchronous>, transform_indices = @transform_9, window_bounds = array<i64: 16, 1>}, {pipeline_mode = #tpu.pipeline_mode<synchronous>, transform_indices = @transform_10, window_bounds = array<i64: 8, 16>}, {pipeline_mode = #tpu.pipeline_mode<synchronous>, transform_indices = @transform_11, window_bounds = array<i64: 8, 1>}, {pipeline_mode = #tpu.pipeline_mode<synchronous>, transform_indices = @transform_12, window_bounds = array<i64: 8, 72>}, {pipeline_mode = #tpu.pipeline_mode<synchronous>, transform_indices = @transform_13, window_bounds = array<i64: 8, 1>}, {pipeline_mode = #tpu.pipeline_mode<synchronous>, transform_indices = @transform_14, window_bounds = array<i64: 32, 8>}, {pipeline_mode = #tpu.pipeline_mode<synchronous>, transform_indices = @transform_15, window_bounds = array<i64: 32, 1>}, {pipeline_mode = #tpu.pipeline_mode<synchronous>, transform_indices = @transform_16, window_bounds = array<i64: 32, 32>}, {pipeline_mode = #tpu.pipeline_mode<synchronous>, transform_indices = @transform_17, window_bounds = array<i64: 32, 1>}, {pipeline_mode = #tpu.pipeline_mode<synchronous>, transform_indices = @transform_18, window_bounds = array<i64: 128, 32>}, {pipeline_mode = #tpu.pipeline_mode<synchronous>, transform_indices = @transform_19, window_bounds = array<i64: 128, 1>}, {transform_indices = @transform_20, window_bounds = array<i64: 1, 256, 1>}, {transform_indices = @transform_21, window_bounds = array<i64: 1, 128, 1>}]} {
    %cst = arith.constant 0.000000e+00 : bf16
    %0 = vector.broadcast %cst : bf16 to vector<8x512xbf16>
    %c0 = arith.constant 0 : index
    %c0_0 = arith.constant 0 : index
    %1 = vector.load %arg23[%c0, %c0_0] : memref<8x512xbf16, #tpu.memory_space<vmem>>, vector<8x512xbf16>
    tpu.vector_store %arg23[%c0, %c0_0], %0 {strides = array<i32>} : memref<8x512xbf16, #tpu.memory_space<vmem>>, vector<8x512xbf16>,
    %c0_1 = arith.constant 0 : index
    %c0_2 = arith.constant 0 : index
    %2 = vector.load %arg3[%c0_1, %c0_2] : memref<16x36xbf16, #tpu.memory_space<vmem>>, vector<16x36xbf16>
    %c0_3 = arith.constant 0 : index
    %c0_4 = arith.constant 0 : index
    %3 = vector.load %arg4[%c0_3, %c0_4] : memref<16x1xf32, #tpu.memory_space<vmem>>, vector<16x1xf32>
    %c0_5 = arith.constant 0 : index
    %c0_6 = arith.constant 0 : index
    %c0_7 = arith.constant 0 : index
    %4 = vector.load %arg1[%c0_5, %c0_6, %c0_7] : memref<1x36x256xbf16, #tpu.memory_space<vmem>>, vector<1x36x256xbf16>
    %5 = vector.shape_cast %4 : vector<1x36x256xbf16> to vector<36x256xbf16>
    %cst_8 = arith.constant dense<0.000000e+00> : vector<16x256xf32>
    %6 = tpu.matmul %2, %5, %cst_8 {dimension_numbers = #tpu.dot_dimension_numbers<[1], [0], [0], [1], [0, 0, 1, 1], [], []>} : vector<16x36xbf16>, vector<36x256xbf16>, vector<16x256xf32> -> vector<16x256xf32>
    %7 = vector.broadcast %3 : vector<16x1xf32> to vector<16x256xf32>
    %8 = arith.addf %6, %7 : vector<16x256xf32>
    %cst_9 = arith.constant 0.000000e+00 : f32
    %cst_10 = arith.constant 6.000000e+00 : f32
    %9 = vector.broadcast %cst_9 : f32 to vector<16x256xf32>
    %10 = arith.maximumf %9, %8 : vector<16x256xf32>
    %11 = vector.broadcast %cst_10 : f32 to vector<16x256xf32>
    %12 = arith.minimumf %11, %10 : vector<16x256xf32>
    %13 = arith.truncf %12 : vector<16x256xf32> to vector<16x256xbf16>
    %c0_11 = arith.constant 0 : index
    %c0_12 = arith.constant 0 : index
    %14 = vector.load %arg5[%c0_11, %c0_12] : memref<8x16xbf16, #tpu.memory_space<vmem>>, vector<8x16xbf16>
    %c0_13 = arith.constant 0 : index
    %c0_14 = arith.constant 0 : index
    %15 = vector.load %arg6[%c0_13, %c0_14] : memref<8x1xf32, #tpu.memory_space<vmem>>, vector<8x1xf32>
    %cst_15 = arith.constant dense<0.000000e+00> : vector<8x256xf32>
    %16 = tpu.matmul %14, %13, %cst_15 {dimension_numbers = #tpu.dot_dimension_numbers<[1], [0], [0], [1], [0, 0, 1, 1], [], []>} : vector<8x16xbf16>, vector<16x256xbf16>, vector<8x256xf32> -> vector<8x256xf32>
    %17 = vector.broadcast %15 : vector<8x1xf32> to vector<8x256xf32>
    %18 = arith.addf %16, %17 : vector<8x256xf32>
    %cst_16 = arith.constant 0.000000e+00 : f32
    %cst_17 = arith.constant 6.000000e+00 : f32
    %19 = vector.broadcast %cst_16 : f32 to vector<8x256xf32>
    %20 = arith.maximumf %19, %18 : vector<8x256xf32>
    %21 = vector.broadcast %cst_17 : f32 to vector<8x256xf32>
    %22 = arith.minimumf %21, %20 : vector<8x256xf32>
    %23 = arith.truncf %22 : vector<8x256xf32> to vector<8x256xbf16>
    %c0_18 = arith.constant 0 : index
    %c0_19 = arith.constant 0 : index
    %24 = vector.load %arg7[%c0_18, %c0_19] : memref<8x72xbf16, #tpu.memory_space<vmem>>, vector<8x72xbf16>
    %c0_20 = arith.constant 0 : index
    %c0_21 = arith.constant 0 : index
    %25 = vector.load %arg8[%c0_20, %c0_21] : memref<8x1xf32, #tpu.memory_space<vmem>>, vector<8x1xf32>
    %c0_22 = arith.constant 0 : index
    %c128 = arith.constant 128 : index
    %26 = vector.load %arg23[%c0_22, %c128] : memref<8x512xbf16, #tpu.memory_space<vmem>>, vector<8x256xbf16>
    tpu.vector_store %arg23[%c0_22, %c128], %23 {strides = array<i32>} : memref<8x512xbf16, #tpu.memory_space<vmem>>, vector<8x256xbf16>,
    %c0_23 = arith.constant 0 : index
    %c111 = arith.constant 111 : index
    %27 = vector.load %arg23[%c0_23, %c111] : memref<8x512xbf16, #tpu.memory_space<vmem>>, vector<8x256xbf16>
    %c0_24 = arith.constant 0 : index
    %c0_25 = arith.constant 0 : index
    %c0_26 = arith.constant 0 : index
    %28 = vector.load %arg2[%c0_24, %c0_25, %c0_26] : memref<9x1x256xbf16, #tpu.memory_space<vmem>>, vector<1x1x256xbf16>
    %29 = vector.shape_cast %28 : vector<1x1x256xbf16> to vector<1x256xbf16>
    %30 = vector.broadcast %29 : vector<1x256xbf16> to vector<8x256xbf16>
    %31 = arith.mulf %27, %30 : vector<8x256xbf16>
    %c0_27 = arith.constant 0 : index
    %c0_28 = arith.constant 0 : index
    %32 = vector.load %arg24[%c0_27, %c0_28] : memref<72x256xbf16, #tpu.memory_space<vmem>>, vector<8x256xbf16>
    tpu.vector_store %arg24[%c0_27, %c0_28], %31 {strides = array<i32>} : memref<72x256xbf16, #tpu.memory_space<vmem>>, vector<8x256xbf16>,
    %c0_29 = arith.constant 0 : index
    %c112 = arith.constant 112 : index
    %33 = vector.load %arg23[%c0_29, %c112] : memref<8x512xbf16, #tpu.memory_space<vmem>>, vector<8x256xbf16>
    %c1 = arith.constant 1 : index
    %c0_30 = arith.constant 0 : index
    %c0_31 = arith.constant 0 : index
    %34 = vector.load %arg2[%c1, %c0_30, %c0_31] : memref<9x1x256xbf16, #tpu.memory_space<vmem>>, vector<1x1x256xbf16>
    %35 = vector.shape_cast %34 : vector<1x1x256xbf16> to vector<1x256xbf16>
    %36 = vector.broadcast %35 : vector<1x256xbf16> to vector<8x256xbf16>
    %37 = arith.mulf %33, %36 : vector<8x256xbf16>
    %c8 = arith.constant 8 : index
    %c0_32 = arith.constant 0 : index
    %38 = vector.load %arg24[%c8, %c0_32] : memref<72x256xbf16, #tpu.memory_space<vmem>>, vector<8x256xbf16>
    tpu.vector_store %arg24[%c8, %c0_32], %37 {strides = array<i32>} : memref<72x256xbf16, #tpu.memory_space<vmem>>, vector<8x256xbf16>,
    %c0_33 = arith.constant 0 : index
    %c113 = arith.constant 113 : index
    %39 = vector.load %arg23[%c0_33, %c113] : memref<8x512xbf16, #tpu.memory_space<vmem>>, vector<8x256xbf16>
    %c2 = arith.constant 2 : index
    %c0_34 = arith.constant 0 : index
    %c0_35 = arith.constant 0 : index
    %40 = vector.load %arg2[%c2, %c0_34, %c0_35] : memref<9x1x256xbf16, #tpu.memory_space<vmem>>, vector<1x1x256xbf16>
    %41 = vector.shape_cast %40 : vector<1x1x256xbf16> to vector<1x256xbf16>
    %42 = vector.broadcast %41 : vector<1x256xbf16> to vector<8x256xbf16>
    %43 = arith.mulf %39, %42 : vector<8x256xbf16>
    %c16 = arith.constant 16 : index
    %c0_36 = arith.constant 0 : index
    %44 = vector.load %arg24[%c16, %c0_36] : memref<72x256xbf16, #tpu.memory_space<vmem>>, vector<8x256xbf16>
    tpu.vector_store %arg24[%c16, %c0_36], %43 {strides = array<i32>} : memref<72x256xbf16, #tpu.memory_space<vmem>>, vector<8x256xbf16>,
    %c0_37 = arith.constant 0 : index
    %c127 = arith.constant 127 : index
    %45 = vector.load %arg23[%c0_37, %c127] : memref<8x512xbf16, #tpu.memory_space<vmem>>, vector<8x256xbf16>
    %c3 = arith.constant 3 : index
    %c0_38 = arith.constant 0 : index
    %c0_39 = arith.constant 0 : index
    %46 = vector.load %arg2[%c3, %c0_38, %c0_39] : memref<9x1x256xbf16, #tpu.memory_space<vmem>>, vector<1x1x256xbf16>
    %47 = vector.shape_cast %46 : vector<1x1x256xbf16> to vector<1x256xbf16>
    %48 = vector.broadcast %47 : vector<1x256xbf16> to vector<8x256xbf16>
    %49 = arith.mulf %45, %48 : vector<8x256xbf16>
    %c24 = arith.constant 24 : index
    %c0_40 = arith.constant 0 : index
    %50 = vector.load %arg24[%c24, %c0_40] : memref<72x256xbf16, #tpu.memory_space<vmem>>, vector<8x256xbf16>
    tpu.vector_store %arg24[%c24, %c0_40], %49 {strides = array<i32>} : memref<72x256xbf16, #tpu.memory_space<vmem>>, vector<8x256xbf16>,
    %c0_41 = arith.constant 0 : index
    %c128_42 = arith.constant 128 : index
    %51 = vector.load %arg23[%c0_41, %c128_42] : memref<8x512xbf16, #tpu.memory_space<vmem>>, vector<8x256xbf16>
    %c4 = arith.constant 4 : index
    %c0_43 = arith.constant 0 : index
    %c0_44 = arith.constant 0 : index
    %52 = vector.load %arg2[%c4, %c0_43, %c0_44] : memref<9x1x256xbf16, #tpu.memory_space<vmem>>, vector<1x1x256xbf16>
    %53 = vector.shape_cast %52 : vector<1x1x256xbf16> to vector<1x256xbf16>
    %54 = vector.broadcast %53 : vector<1x256xbf16> to vector<8x256xbf16>
    %55 = arith.mulf %51, %54 : vector<8x256xbf16>
    %c32 = arith.constant 32 : index
    %c0_45 = arith.constant 0 : index
    %56 = vector.load %arg24[%c32, %c0_45] : memref<72x256xbf16, #tpu.memory_space<vmem>>, vector<8x256xbf16>
    tpu.vector_store %arg24[%c32, %c0_45], %55 {strides = array<i32>} : memref<72x256xbf16, #tpu.memory_space<vmem>>, vector<8x256xbf16>,
    %c0_46 = arith.constant 0 : index
    %c129 = arith.constant 129 : index
    %57 = vector.load %arg23[%c0_46, %c129] : memref<8x512xbf16, #tpu.memory_space<vmem>>, vector<8x256xbf16>
    %c5 = arith.constant 5 : index
    %c0_47 = arith.constant 0 : index
    %c0_48 = arith.constant 0 : index
    %58 = vector.load %arg2[%c5, %c0_47, %c0_48] : memref<9x1x256xbf16, #tpu.memory_space<vmem>>, vector<1x1x256xbf16>
    %59 = vector.shape_cast %58 : vector<1x1x256xbf16> to vector<1x256xbf16>
    %60 = vector.broadcast %59 : vector<1x256xbf16> to vector<8x256xbf16>
    %61 = arith.mulf %57, %60 : vector<8x256xbf16>
    %c40 = arith.constant 40 : index
    %c0_49 = arith.constant 0 : index
    %62 = vector.load %arg24[%c40, %c0_49] : memref<72x256xbf16, #tpu.memory_space<vmem>>, vector<8x256xbf16>
    tpu.vector_store %arg24[%c40, %c0_49], %61 {strides = array<i32>} : memref<72x256xbf16, #tpu.memory_space<vmem>>, vector<8x256xbf16>,
    %c0_50 = arith.constant 0 : index
    %c143 = arith.constant 143 : index
    %63 = vector.load %arg23[%c0_50, %c143] : memref<8x512xbf16, #tpu.memory_space<vmem>>, vector<8x256xbf16>
    %c6 = arith.constant 6 : index
    %c0_51 = arith.constant 0 : index
    %c0_52 = arith.constant 0 : index
    %64 = vector.load %arg2[%c6, %c0_51, %c0_52] : memref<9x1x256xbf16, #tpu.memory_space<vmem>>, vector<1x1x256xbf16>
    %65 = vector.shape_cast %64 : vector<1x1x256xbf16> to vector<1x256xbf16>
    %66 = vector.broadcast %65 : vector<1x256xbf16> to vector<8x256xbf16>
    %67 = arith.mulf %63, %66 : vector<8x256xbf16>
    %c48 = arith.constant 48 : index
    %c0_53 = arith.constant 0 : index
    %68 = vector.load %arg24[%c48, %c0_53] : memref<72x256xbf16, #tpu.memory_space<vmem>>, vector<8x256xbf16>
    tpu.vector_store %arg24[%c48, %c0_53], %67 {strides = array<i32>} : memref<72x256xbf16, #tpu.memory_space<vmem>>, vector<8x256xbf16>,
    %c0_54 = arith.constant 0 : index
    %c144 = arith.constant 144 : index
    %69 = vector.load %arg23[%c0_54, %c144] : memref<8x512xbf16, #tpu.memory_space<vmem>>, vector<8x256xbf16>
    %c7 = arith.constant 7 : index
    %c0_55 = arith.constant 0 : index
    %c0_56 = arith.constant 0 : index
    %70 = vector.load %arg2[%c7, %c0_55, %c0_56] : memref<9x1x256xbf16, #tpu.memory_space<vmem>>, vector<1x1x256xbf16>
    %71 = vector.shape_cast %70 : vector<1x1x256xbf16> to vector<1x256xbf16>
    %72 = vector.broadcast %71 : vector<1x256xbf16> to vector<8x256xbf16>
    %73 = arith.mulf %69, %72 : vector<8x256xbf16>
    %c56 = arith.constant 56 : index
    %c0_57 = arith.constant 0 : index
    %74 = vector.load %arg24[%c56, %c0_57] : memref<72x256xbf16, #tpu.memory_space<vmem>>, vector<8x256xbf16>
    tpu.vector_store %arg24[%c56, %c0_57], %73 {strides = array<i32>} : memref<72x256xbf16, #tpu.memory_space<vmem>>, vector<8x256xbf16>,
    %c0_58 = arith.constant 0 : index
    %c145 = arith.constant 145 : index
    %75 = vector.load %arg23[%c0_58, %c145] : memref<8x512xbf16, #tpu.memory_space<vmem>>, vector<8x256xbf16>
    %c8_59 = arith.constant 8 : index
    %c0_60 = arith.constant 0 : index
    %c0_61 = arith.constant 0 : index
    %76 = vector.load %arg2[%c8_59, %c0_60, %c0_61] : memref<9x1x256xbf16, #tpu.memory_space<vmem>>, vector<1x1x256xbf16>
    %77 = vector.shape_cast %76 : vector<1x1x256xbf16> to vector<1x256xbf16>
    %78 = vector.broadcast %77 : vector<1x256xbf16> to vector<8x256xbf16>
    %79 = arith.mulf %75, %78 : vector<8x256xbf16>
    %c64 = arith.constant 64 : index
    %c0_62 = arith.constant 0 : index
    %80 = vector.load %arg24[%c64, %c0_62] : memref<72x256xbf16, #tpu.memory_space<vmem>>, vector<8x256xbf16>
    tpu.vector_store %arg24[%c64, %c0_62], %79 {strides = array<i32>} : memref<72x256xbf16, #tpu.memory_space<vmem>>, vector<8x256xbf16>,
    %c0_63 = arith.constant 0 : index
    %c0_64 = arith.constant 0 : index
    %81 = vector.load %arg24[%c0_63, %c0_64] : memref<72x256xbf16, #tpu.memory_space<vmem>>, vector<72x256xbf16>
    %cst_65 = arith.constant dense<0.000000e+00> : vector<8x256xf32>
    %82 = tpu.matmul %24, %81, %cst_65 {dimension_numbers = #tpu.dot_dimension_numbers<[1], [0], [0], [1], [0, 0, 1, 1], [], []>} : vector<8x72xbf16>, vector<72x256xbf16>, vector<8x256xf32> -> vector<8x256xf32>
    %83 = vector.broadcast %25 : vector<8x1xf32> to vector<8x256xf32>
    %84 = arith.addf %82, %83 : vector<8x256xf32>
    %cst_66 = arith.constant 0.000000e+00 : f32
    %cst_67 = arith.constant 6.000000e+00 : f32
    %85 = vector.broadcast %cst_66 : f32 to vector<8x256xf32>
    %86 = arith.maximumf %85, %84 : vector<8x256xf32>
    %87 = vector.broadcast %cst_67 : f32 to vector<8x256xf32>
    %88 = arith.minimumf %87, %86 : vector<8x256xf32>
    %89 = arith.truncf %88 : vector<8x256xf32> to vector<8x256xbf16>
    %c0_68 = arith.constant 0 : index
    %c0_69 = arith.constant 0 : index
    %90 = vector.load %arg9[%c0_68, %c0_69] : memref<16x8xbf16, #tpu.memory_space<vmem>>, vector<16x8xbf16>
    %c0_70 = arith.constant 0 : index
    %c0_71 = arith.constant 0 : index
    %91 = vector.load %arg10[%c0_70, %c0_71] : memref<16x1xf32, #tpu.memory_space<vmem>>, vector<16x1xf32>
    %cst_72 = arith.constant dense<0.000000e+00> : vector<16x256xf32>
    %92 = tpu.matmul %90, %89, %cst_72 {dimension_numbers = #tpu.dot_dimension_numbers<[1], [0], [0], [1], [0, 0, 1, 1], [], []>} : vector<16x8xbf16>, vector<8x256xbf16>, vector<16x256xf32> -> vector<16x256xf32>
    %93 = vector.broadcast %91 : vector<16x1xf32> to vector<16x256xf32>
    %94 = arith.addf %92, %93 : vector<16x256xf32>
    %95 = arith.extf %13 : vector<16x256xbf16> to vector<16x256xf32>
    %96 = arith.addf %94, %95 : vector<16x256xf32>
    %97 = arith.truncf %96 : vector<16x256xf32> to vector<16x256xbf16>
    %c0_73 = arith.constant 0 : index
    %c0_74 = arith.constant 0 : index
    %98 = vector.load %arg11[%c0_73, %c0_74] : memref<8x16xbf16, #tpu.memory_space<vmem>>, vector<8x16xbf16>
    %c0_75 = arith.constant 0 : index
    %c0_76 = arith.constant 0 : index
    %99 = vector.load %arg12[%c0_75, %c0_76] : memref<8x1xf32, #tpu.memory_space<vmem>>, vector<8x1xf32>
    %cst_77 = arith.constant dense<0.000000e+00> : vector<8x256xf32>
    %100 = tpu.matmul %98, %97, %cst_77 {dimension_numbers = #tpu.dot_dimension_numbers<[1], [0], [0], [1], [0, 0, 1, 1], [], []>} : vector<8x16xbf16>, vector<16x256xbf16>, vector<8x256xf32> -> vector<8x256xf32>
    %101 = vector.broadcast %99 : vector<8x1xf32> to vector<8x256xf32>
    %102 = arith.addf %100, %101 : vector<8x256xf32>
    %cst_78 = arith.constant 0.000000e+00 : f32
    %cst_79 = arith.constant 6.000000e+00 : f32
    %103 = vector.broadcast %cst_78 : f32 to vector<8x256xf32>
    %104 = arith.maximumf %103, %102 : vector<8x256xf32>
    %105 = vector.broadcast %cst_79 : f32 to vector<8x256xf32>
    %106 = arith.minimumf %105, %104 : vector<8x256xf32>
    %107 = arith.truncf %106 : vector<8x256xf32> to vector<8x256xbf16>
    %c0_80 = arith.constant 0 : index
    %c0_81 = arith.constant 0 : index
    %108 = vector.load %arg13[%c0_80, %c0_81] : memref<8x72xbf16, #tpu.memory_space<vmem>>, vector<8x72xbf16>
    %c0_82 = arith.constant 0 : index
    %c0_83 = arith.constant 0 : index
    %109 = vector.load %arg14[%c0_82, %c0_83] : memref<8x1xf32, #tpu.memory_space<vmem>>, vector<8x1xf32>
    %c0_84 = arith.constant 0 : index
    %c128_85 = arith.constant 128 : index
    %110 = vector.load %arg23[%c0_84, %c128_85] : memref<8x512xbf16, #tpu.memory_space<vmem>>, vector<8x256xbf16>
    tpu.vector_store %arg23[%c0_84, %c128_85], %107 {strides = array<i32>} : memref<8x512xbf16, #tpu.memory_space<vmem>>, vector<8x256xbf16>,
    %c0_86 = arith.constant 0 : index
    %c111_87 = arith.constant 111 : index
    %111 = vector.load %arg23[%c0_86, %c111_87] : memref<8x512xbf16, #tpu.memory_space<vmem>>, vector<8x256xbf16>
    %c0_88 = arith.constant 0 : index
    %c0_89 = arith.constant 0 : index
    %c0_90 = arith.constant 0 : index
    %112 = vector.load %arg2[%c0_88, %c0_89, %c0_90] : memref<9x1x256xbf16, #tpu.memory_space<vmem>>, vector<1x1x256xbf16>
    %113 = vector.shape_cast %112 : vector<1x1x256xbf16> to vector<1x256xbf16>
    %114 = vector.broadcast %113 : vector<1x256xbf16> to vector<8x256xbf16>
    %115 = arith.mulf %111, %114 : vector<8x256xbf16>
    %c0_91 = arith.constant 0 : index
    %c0_92 = arith.constant 0 : index
    %116 = vector.load %arg24[%c0_91, %c0_92] : memref<72x256xbf16, #tpu.memory_space<vmem>>, vector<8x256xbf16>
    tpu.vector_store %arg24[%c0_91, %c0_92], %115 {strides = array<i32>} : memref<72x256xbf16, #tpu.memory_space<vmem>>, vector<8x256xbf16>,
    %c0_93 = arith.constant 0 : index
    %c112_94 = arith.constant 112 : index
    %117 = vector.load %arg23[%c0_93, %c112_94] : memref<8x512xbf16, #tpu.memory_space<vmem>>, vector<8x256xbf16>
    %c1_95 = arith.constant 1 : index
    %c0_96 = arith.constant 0 : index
    %c0_97 = arith.constant 0 : index
    %118 = vector.load %arg2[%c1_95, %c0_96, %c0_97] : memref<9x1x256xbf16, #tpu.memory_space<vmem>>, vector<1x1x256xbf16>
    %119 = vector.shape_cast %118 : vector<1x1x256xbf16> to vector<1x256xbf16>
    %120 = vector.broadcast %119 : vector<1x256xbf16> to vector<8x256xbf16>
    %121 = arith.mulf %117, %120 : vector<8x256xbf16>
    %c8_98 = arith.constant 8 : index
    %c0_99 = arith.constant 0 : index
    %122 = vector.load %arg24[%c8_98, %c0_99] : memref<72x256xbf16, #tpu.memory_space<vmem>>, vector<8x256xbf16>
    tpu.vector_store %arg24[%c8_98, %c0_99], %121 {strides = array<i32>} : memref<72x256xbf16, #tpu.memory_space<vmem>>, vector<8x256xbf16>,
    %c0_100 = arith.constant 0 : index
    %c113_101 = arith.constant 113 : index
    %123 = vector.load %arg23[%c0_100, %c113_101] : memref<8x512xbf16, #tpu.memory_space<vmem>>, vector<8x256xbf16>
    %c2_102 = arith.constant 2 : index
    %c0_103 = arith.constant 0 : index
    %c0_104 = arith.constant 0 : index
    %124 = vector.load %arg2[%c2_102, %c0_103, %c0_104] : memref<9x1x256xbf16, #tpu.memory_space<vmem>>, vector<1x1x256xbf16>
    %125 = vector.shape_cast %124 : vector<1x1x256xbf16> to vector<1x256xbf16>
    %126 = vector.broadcast %125 : vector<1x256xbf16> to vector<8x256xbf16>
    %127 = arith.mulf %123, %126 : vector<8x256xbf16>
    %c16_105 = arith.constant 16 : index
    %c0_106 = arith.constant 0 : index
    %128 = vector.load %arg24[%c16_105, %c0_106] : memref<72x256xbf16, #tpu.memory_space<vmem>>, vector<8x256xbf16>
    tpu.vector_store %arg24[%c16_105, %c0_106], %127 {strides = array<i32>} : memref<72x256xbf16, #tpu.memory_space<vmem>>, vector<8x256xbf16>,
    %c0_107 = arith.constant 0 : index
    %c127_108 = arith.constant 127 : index
    %129 = vector.load %arg23[%c0_107, %c127_108] : memref<8x512xbf16, #tpu.memory_space<vmem>>, vector<8x256xbf16>
    %c3_109 = arith.constant 3 : index
    %c0_110 = arith.constant 0 : index
    %c0_111 = arith.constant 0 : index
    %130 = vector.load %arg2[%c3_109, %c0_110, %c0_111] : memref<9x1x256xbf16, #tpu.memory_space<vmem>>, vector<1x1x256xbf16>
    %131 = vector.shape_cast %130 : vector<1x1x256xbf16> to vector<1x256xbf16>
    %132 = vector.broadcast %131 : vector<1x256xbf16> to vector<8x256xbf16>
    %133 = arith.mulf %129, %132 : vector<8x256xbf16>
    %c24_112 = arith.constant 24 : index
    %c0_113 = arith.constant 0 : index
    %134 = vector.load %arg24[%c24_112, %c0_113] : memref<72x256xbf16, #tpu.memory_space<vmem>>, vector<8x256xbf16>
    tpu.vector_store %arg24[%c24_112, %c0_113], %133 {strides = array<i32>} : memref<72x256xbf16, #tpu.memory_space<vmem>>, vector<8x256xbf16>,
    %c0_114 = arith.constant 0 : index
    %c128_115 = arith.constant 128 : index
    %135 = vector.load %arg23[%c0_114, %c128_115] : memref<8x512xbf16, #tpu.memory_space<vmem>>, vector<8x256xbf16>
    %c4_116 = arith.constant 4 : index
    %c0_117 = arith.constant 0 : index
    %c0_118 = arith.constant 0 : index
    %136 = vector.load %arg2[%c4_116, %c0_117, %c0_118] : memref<9x1x256xbf16, #tpu.memory_space<vmem>>, vector<1x1x256xbf16>
    %137 = vector.shape_cast %136 : vector<1x1x256xbf16> to vector<1x256xbf16>
    %138 = vector.broadcast %137 : vector<1x256xbf16> to vector<8x256xbf16>
    %139 = arith.mulf %135, %138 : vector<8x256xbf16>
    %c32_119 = arith.constant 32 : index
    %c0_120 = arith.constant 0 : index
    %140 = vector.load %arg24[%c32_119, %c0_120] : memref<72x256xbf16, #tpu.memory_space<vmem>>, vector<8x256xbf16>
    tpu.vector_store %arg24[%c32_119, %c0_120], %139 {strides = array<i32>} : memref<72x256xbf16, #tpu.memory_space<vmem>>, vector<8x256xbf16>,
    %c0_121 = arith.constant 0 : index
    %c129_122 = arith.constant 129 : index
    %141 = vector.load %arg23[%c0_121, %c129_122] : memref<8x512xbf16, #tpu.memory_space<vmem>>, vector<8x256xbf16>
    %c5_123 = arith.constant 5 : index
    %c0_124 = arith.constant 0 : index
    %c0_125 = arith.constant 0 : index
    %142 = vector.load %arg2[%c5_123, %c0_124, %c0_125] : memref<9x1x256xbf16, #tpu.memory_space<vmem>>, vector<1x1x256xbf16>
    %143 = vector.shape_cast %142 : vector<1x1x256xbf16> to vector<1x256xbf16>
    %144 = vector.broadcast %143 : vector<1x256xbf16> to vector<8x256xbf16>
    %145 = arith.mulf %141, %144 : vector<8x256xbf16>
    %c40_126 = arith.constant 40 : index
    %c0_127 = arith.constant 0 : index
    %146 = vector.load %arg24[%c40_126, %c0_127] : memref<72x256xbf16, #tpu.memory_space<vmem>>, vector<8x256xbf16>
    tpu.vector_store %arg24[%c40_126, %c0_127], %145 {strides = array<i32>} : memref<72x256xbf16, #tpu.memory_space<vmem>>, vector<8x256xbf16>,
    %c0_128 = arith.constant 0 : index
    %c143_129 = arith.constant 143 : index
    %147 = vector.load %arg23[%c0_128, %c143_129] : memref<8x512xbf16, #tpu.memory_space<vmem>>, vector<8x256xbf16>
    %c6_130 = arith.constant 6 : index
    %c0_131 = arith.constant 0 : index
    %c0_132 = arith.constant 0 : index
    %148 = vector.load %arg2[%c6_130, %c0_131, %c0_132] : memref<9x1x256xbf16, #tpu.memory_space<vmem>>, vector<1x1x256xbf16>
    %149 = vector.shape_cast %148 : vector<1x1x256xbf16> to vector<1x256xbf16>
    %150 = vector.broadcast %149 : vector<1x256xbf16> to vector<8x256xbf16>
    %151 = arith.mulf %147, %150 : vector<8x256xbf16>
    %c48_133 = arith.constant 48 : index
    %c0_134 = arith.constant 0 : index
    %152 = vector.load %arg24[%c48_133, %c0_134] : memref<72x256xbf16, #tpu.memory_space<vmem>>, vector<8x256xbf16>
    tpu.vector_store %arg24[%c48_133, %c0_134], %151 {strides = array<i32>} : memref<72x256xbf16, #tpu.memory_space<vmem>>, vector<8x256xbf16>,
    %c0_135 = arith.constant 0 : index
    %c144_136 = arith.constant 144 : index
    %153 = vector.load %arg23[%c0_135, %c144_136] : memref<8x512xbf16, #tpu.memory_space<vmem>>, vector<8x256xbf16>
    %c7_137 = arith.constant 7 : index
    %c0_138 = arith.constant 0 : index
    %c0_139 = arith.constant 0 : index
    %154 = vector.load %arg2[%c7_137, %c0_138, %c0_139] : memref<9x1x256xbf16, #tpu.memory_space<vmem>>, vector<1x1x256xbf16>
    %155 = vector.shape_cast %154 : vector<1x1x256xbf16> to vector<1x256xbf16>
    %156 = vector.broadcast %155 : vector<1x256xbf16> to vector<8x256xbf16>
    %157 = arith.mulf %153, %156 : vector<8x256xbf16>
    %c56_140 = arith.constant 56 : index
    %c0_141 = arith.constant 0 : index
    %158 = vector.load %arg24[%c56_140, %c0_141] : memref<72x256xbf16, #tpu.memory_space<vmem>>, vector<8x256xbf16>
    tpu.vector_store %arg24[%c56_140, %c0_141], %157 {strides = array<i32>} : memref<72x256xbf16, #tpu.memory_space<vmem>>, vector<8x256xbf16>,
    %c0_142 = arith.constant 0 : index
    %c145_143 = arith.constant 145 : index
    %159 = vector.load %arg23[%c0_142, %c145_143] : memref<8x512xbf16, #tpu.memory_space<vmem>>, vector<8x256xbf16>
    %c8_144 = arith.constant 8 : index
    %c0_145 = arith.constant 0 : index
    %c0_146 = arith.constant 0 : index
    %160 = vector.load %arg2[%c8_144, %c0_145, %c0_146] : memref<9x1x256xbf16, #tpu.memory_space<vmem>>, vector<1x1x256xbf16>
    %161 = vector.shape_cast %160 : vector<1x1x256xbf16> to vector<1x256xbf16>
    %162 = vector.broadcast %161 : vector<1x256xbf16> to vector<8x256xbf16>
    %163 = arith.mulf %159, %162 : vector<8x256xbf16>
    %c64_147 = arith.constant 64 : index
    %c0_148 = arith.constant 0 : index
    %164 = vector.load %arg24[%c64_147, %c0_148] : memref<72x256xbf16, #tpu.memory_space<vmem>>, vector<8x256xbf16>
    tpu.vector_store %arg24[%c64_147, %c0_148], %163 {strides = array<i32>} : memref<72x256xbf16, #tpu.memory_space<vmem>>, vector<8x256xbf16>,
    %c0_149 = arith.constant 0 : index
    %c0_150 = arith.constant 0 : index
    %165 = vector.load %arg24[%c0_149, %c0_150] : memref<72x256xbf16, #tpu.memory_space<vmem>>, vector<72x256xbf16>
    %cst_151 = arith.constant dense<0.000000e+00> : vector<8x256xf32>
    %166 = tpu.matmul %108, %165, %cst_151 {dimension_numbers = #tpu.dot_dimension_numbers<[1], [0], [0], [1], [0, 0, 1, 1], [], []>} : vector<8x72xbf16>, vector<72x256xbf16>, vector<8x256xf32> -> vector<8x256xf32>
    %167 = vector.broadcast %109 : vector<8x1xf32> to vector<8x256xf32>
    %168 = arith.addf %166, %167 : vector<8x256xf32>
    %cst_152 = arith.constant 0.000000e+00 : f32
    %cst_153 = arith.constant 6.000000e+00 : f32
    %169 = vector.broadcast %cst_152 : f32 to vector<8x256xf32>
    %170 = arith.maximumf %169, %168 : vector<8x256xf32>
    %171 = vector.broadcast %cst_153 : f32 to vector<8x256xf32>
    %172 = arith.minimumf %171, %170 : vector<8x256xf32>
    %173 = arith.truncf %172 : vector<8x256xf32> to vector<8x256xbf16>
    %c0_154 = arith.constant 0 : index
    %c0_155 = arith.constant 0 : index
    %174 = vector.load %arg15[%c0_154, %c0_155] : memref<32x8xbf16, #tpu.memory_space<vmem>>, vector<32x8xbf16>
    %c0_156 = arith.constant 0 : index
    %c0_157 = arith.constant 0 : index
    %175 = vector.load %arg16[%c0_156, %c0_157] : memref<32x1xf32, #tpu.memory_space<vmem>>, vector<32x1xf32>
    %cst_158 = arith.constant dense<0.000000e+00> : vector<32x256xf32>
    %176 = tpu.matmul %174, %173, %cst_158 {dimension_numbers = #tpu.dot_dimension_numbers<[1], [0], [0], [1], [0, 0, 1, 1], [], []>} : vector<32x8xbf16>, vector<8x256xbf16>, vector<32x256xf32> -> vector<32x256xf32>
    %177 = vector.broadcast %175 : vector<32x1xf32> to vector<32x256xf32>
    %178 = arith.addf %176, %177 : vector<32x256xf32>
    %179 = arith.truncf %178 : vector<32x256xf32> to vector<32x256xbf16>
    %c0_159 = arith.constant 0 : index
    %c0_160 = arith.constant 0 : index
    %180 = vector.load %arg17[%c0_159, %c0_160] : memref<32x32xbf16, #tpu.memory_space<vmem>>, vector<32x32xbf16>
    %c0_161 = arith.constant 0 : index
    %c0_162 = arith.constant 0 : index
    %181 = vector.load %arg18[%c0_161, %c0_162] : memref<32x1xf32, #tpu.memory_space<vmem>>, vector<32x1xf32>
    %cst_163 = arith.constant dense<0.000000e+00> : vector<32x256xf32>
    %182 = tpu.matmul %180, %179, %cst_163 {dimension_numbers = #tpu.dot_dimension_numbers<[1], [0], [0], [1], [0, 0, 1, 1], [], []>} : vector<32x32xbf16>, vector<32x256xbf16>, vector<32x256xf32> -> vector<32x256xf32>
    %183 = vector.broadcast %181 : vector<32x1xf32> to vector<32x256xf32>
    %184 = arith.addf %182, %183 : vector<32x256xf32>
    %cst_164 = arith.constant 0.000000e+00 : f32
    %cst_165 = arith.constant 6.000000e+00 : f32
    %185 = vector.broadcast %cst_164 : f32 to vector<32x256xf32>
    %186 = arith.maximumf %185, %184 : vector<32x256xf32>
    %187 = vector.broadcast %cst_165 : f32 to vector<32x256xf32>
    %188 = arith.minimumf %187, %186 : vector<32x256xf32>
    %189 = arith.truncf %188 : vector<32x256xf32> to vector<32x256xbf16>
    %c0_166 = arith.constant 0 : index
    %c0_167 = arith.constant 0 : index
    %c0_168 = arith.constant 0 : index
    %190 = vector.load %arg21[%c0_166, %c0_167, %c0_168] : memref<1x256x1xbf16, #tpu.memory_space<vmem>>, vector<1x256x1xbf16>
    %191 = vector.shape_cast %190 : vector<1x256x1xbf16> to vector<256x1xbf16>
    %cst_169 = arith.constant dense<0.000000e+00> : vector<32x1xf32>
    %192 = tpu.matmul %189, %191, %cst_169 {dimension_numbers = #tpu.dot_dimension_numbers<[1], [0], [0], [1], [0, 0, 1, 1], [], []>} : vector<32x256xbf16>, vector<256x1xbf16>, vector<32x1xf32> -> vector<32x1xf32>
    %c0_170 = arith.constant 0 : index
    %c0_171 = arith.constant 0 : index
    %193 = vector.load %arg19[%c0_170, %c0_171] : memref<128x32xf32, #tpu.memory_space<vmem>>, vector<128x32xf32>
    %cst_172 = arith.constant dense<0.000000e+00> : vector<128x1xf32>
    %194 = tpu.matmul %193, %192, %cst_172 {dimension_numbers = #tpu.dot_dimension_numbers<[1], [0], [0], [1], [0, 0, 1, 1], [], []>} : vector<128x32xf32>, vector<32x1xf32>, vector<128x1xf32> -> vector<128x1xf32>
    %c0_173 = arith.constant 0 : index
    %c0_174 = arith.constant 0 : index
    %195 = vector.load %arg20[%c0_173, %c0_174] : memref<128x1xf32, #tpu.memory_space<vmem>>, vector<128x1xf32>
    %196 = arith.addf %194, %195 : vector<128x1xf32>
    %c0_175 = arith.constant 0 : index
    %c0_176 = arith.constant 0 : index
    %c0_177 = arith.constant 0 : index
    %197 = vector.load %arg22[%c0_175, %c0_176, %c0_177] : memref<1x128x1xf32, #tpu.memory_space<vmem>>, vector<1x128x1xf32>
    %198 = vector.shape_cast %197 : vector<1x128x1xf32> to vector<128x1xf32>
    %199 = vector.shape_cast %196 : vector<128x1xf32> to vector<1x128x1xf32>
    tpu.vector_store %arg22[%c0_175, %c0_176, %c0_177], %199 {strides = array<i32>} : memref<1x128x1xf32, #tpu.memory_space<vmem>>, vector<1x128x1xf32>,
    return
  }
  func.func @transform_0(%arg0: i32) -> (i32, i32, i32) {
    %c0_i32 = arith.constant 0 : i32
    %c0_i32_0 = arith.constant 0 : i32
    %c0_i32_1 = arith.constant 0 : i32
    return %arg0, %c0_i32, %c0_i32_0 : i32, i32, i32
  }
  func.func @transform_1(%arg0: i32) -> (i32, i32, i32) {
    %c0_i32 = arith.constant 0 : i32
    %c0_i32_0 = arith.constant 0 : i32
    %c0_i32_1 = arith.constant 0 : i32
    %c0_i32_2 = arith.constant 0 : i32
    return %c0_i32, %c0_i32_0, %c0_i32_1 : i32, i32, i32
  }
  func.func @transform_2(%arg0: i32) -> (i32, i32) {
    %c0_i32 = arith.constant 0 : i32
    %c0_i32_0 = arith.constant 0 : i32
    %c0_i32_1 = arith.constant 0 : i32
    return %c0_i32, %c0_i32_0 : i32, i32
  }
  func.func @transform_3(%arg0: i32) -> (i32, i32) {
    %c0_i32 = arith.constant 0 : i32
    %c0_i32_0 = arith.constant 0 : i32
    %c0_i32_1 = arith.constant 0 : i32
    return %c0_i32, %c0_i32_0 : i32, i32
  }
  func.func @transform_4(%arg0: i32) -> (i32, i32) {
    %c0_i32 = arith.constant 0 : i32
    %c0_i32_0 = arith.constant 0 : i32
    %c0_i32_1 = arith.constant 0 : i32
    return %c0_i32, %c0_i32_0 : i32, i32
  }
  func.func @transform_5(%arg0: i32) -> (i32, i32) {
    %c0_i32 = arith.constant 0 : i32
    %c0_i32_0 = arith.constant 0 : i32
    %c0_i32_1 = arith.constant 0 : i32
    return %c0_i32, %c0_i32_0 : i32, i32
  }
  func.func @transform_6(%arg0: i32) -> (i32, i32) {
    %c0_i32 = arith.constant 0 : i32
    %c0_i32_0 = arith.constant 0 : i32
    %c0_i32_1 = arith.constant 0 : i32
    return %c0_i32, %c0_i32_0 : i32, i32
  }
  func.func @transform_7(%arg0: i32) -> (i32, i32) {
    %c0_i32 = arith.constant 0 : i32
    %c0_i32_0 = arith.constant 0 : i32
    %c0_i32_1 = arith.constant 0 : i32
    return %c0_i32, %c0_i32_0 : i32, i32
  }
  func.func @transform_8(%arg0: i32) -> (i32, i32) {
    %c0_i32 = arith.constant 0 : i32
    %c0_i32_0 = arith.constant 0 : i32
    %c0_i32_1 = arith.constant 0 : i32
    return %c0_i32, %c0_i32_0 : i32, i32
  }
  func.func @transform_9(%arg0: i32) -> (i32, i32) {
    %c0_i32 = arith.constant 0 : i32
    %c0_i32_0 = arith.constant 0 : i32
    %c0_i32_1 = arith.constant 0 : i32
    return %c0_i32, %c0_i32_0 : i32, i32
  }
  func.func @transform_10(%arg0: i32) -> (i32, i32) {
    %c0_i32 = arith.constant 0 : i32
    %c0_i32_0 = arith.constant 0 : i32
    %c0_i32_1 = arith.constant 0 : i32
    return %c0_i32, %c0_i32_0 : i32, i32
  }
  func.func @transform_11(%arg0: i32) -> (i32, i32) {
    %c0_i32 = arith.constant 0 : i32
    %c0_i32_0 = arith.constant 0 : i32
    %c0_i32_1 = arith.constant 0 : i32
    return %c0_i32, %c0_i32_0 : i32, i32
  }
  func.func @transform_12(%arg0: i32) -> (i32, i32) {
    %c0_i32 = arith.constant 0 : i32
    %c0_i32_0 = arith.constant 0 : i32
    %c0_i32_1 = arith.constant 0 : i32
    return %c0_i32, %c0_i32_0 : i32, i32
  }
  func.func @transform_13(%arg0: i32) -> (i32, i32) {
    %c0_i32 = arith.constant 0 : i32
    %c0_i32_0 = arith.constant 0 : i32
    %c0_i32_1 = arith.constant 0 : i32
    return %c0_i32, %c0_i32_0 : i32, i32
  }
  func.func @transform_14(%arg0: i32) -> (i32, i32) {
    %c0_i32 = arith.constant 0 : i32
    %c0_i32_0 = arith.constant 0 : i32
    %c0_i32_1 = arith.constant 0 : i32
    return %c0_i32, %c0_i32_0 : i32, i32
  }
  func.func @transform_15(%arg0: i32) -> (i32, i32) {
    %c0_i32 = arith.constant 0 : i32
    %c0_i32_0 = arith.constant 0 : i32
    %c0_i32_1 = arith.constant 0 : i32
    return %c0_i32, %c0_i32_0 : i32, i32
  }
  func.func @transform_16(%arg0: i32) -> (i32, i32) {
    %c0_i32 = arith.constant 0 : i32
    %c0_i32_0 = arith.constant 0 : i32
    %c0_i32_1 = arith.constant 0 : i32
    return %c0_i32, %c0_i32_0 : i32, i32
  }
  func.func @transform_17(%arg0: i32) -> (i32, i32) {
    %c0_i32 = arith.constant 0 : i32
    %c0_i32_0 = arith.constant 0 : i32
    %c0_i32_1 = arith.constant 0 : i32
    return %c0_i32, %c0_i32_0 : i32, i32
  }
  func.func @transform_18(%arg0: i32) -> (i32, i32) {
    %c0_i32 = arith.constant 0 : i32
    %c0_i32_0 = arith.constant 0 : i32
    %c0_i32_1 = arith.constant 0 : i32
    return %c0_i32, %c0_i32_0 : i32, i32
  }
  func.func @transform_19(%arg0: i32) -> (i32, i32) {
    %c0_i32 = arith.constant 0 : i32
    %c0_i32_0 = arith.constant 0 : i32
    %c0_i32_1 = arith.constant 0 : i32
    return %c0_i32, %c0_i32_0 : i32, i32
  }
  func.func @transform_20(%arg0: i32) -> (i32, i32, i32) {
    %c0_i32 = arith.constant 0 : i32
    %c0_i32_0 = arith.constant 0 : i32
    %c0_i32_1 = arith.constant 0 : i32
    return %arg0, %c0_i32, %c0_i32_0 : i32, i32, i32
  }
  func.func @transform_21(%arg0: i32) -> (i32, i32, i32) {
    %c0_i32 = arith.constant 0 : i32
    %c0_i32_0 = arith.constant 0 : i32
    %c0_i32_1 = arith.constant 0 : i32
    return %arg0, %c0_i32, %c0_i32_0 : i32, i32, i32
  }
}

</mosaic_0001>

<llo_original>
// kernel: forward.1
$region0: #{forward.1}
  #allocation0 [shape = 'u32[]', space=smem, size = 0x4, offset = 0x4, fixed_abs, tag = 'smem constant byte address 0x4 - core index']
  #allocation1 [shape = 'u32[144,128]{1,0:T(1,128)}', space=vmem, size = 0x12000, scoped, tag = 'internal scratch']
  #allocation2 [shape = 'bf16[8,512]{1,0:T(8,128)(2,1)}', space=vmem, size = 0x2000, scoped, tag = 'scratch operand']
  #allocation3 [shape = 'bf16[72,256]{1,0:T(8,128)(2,1)}', space=vmem, size = 0x9000, scoped, tag = 'scratch operand']
  %s0 = inlined_call_operand.vmem [shape: bf16[2,36,256], index: 0, kind: input, shape index: {}]
  %s1 = inlined_call_operand.vmem [shape: bf16[9,1,256], index: 1, kind: input, shape index: {}]
  %s2 = inlined_call_operand.vmem [shape: bf16[16,36], index: 2, kind: input, shape index: {}]
  %s3 = inlined_call_operand.vmem [shape: f32[16,1], index: 3, kind: input, shape index: {}]
  %s4 = inlined_call_operand.vmem [shape: bf16[8,16], index: 4, kind: input, shape index: {}]
  %s5 = inlined_call_operand.vmem [shape: f32[8,1], index: 5, kind: input, shape index: {}]
  %s6 = inlined_call_operand.vmem [shape: bf16[8,72], index: 6, kind: input, shape index: {}]
  %s7 = inlined_call_operand.vmem [shape: f32[8,1], index: 7, kind: input, shape index: {}]
  %s8 = inlined_call_operand.vmem [shape: bf16[16,8], index: 8, kind: input, shape index: {}]
  %s9 = inlined_call_operand.vmem [shape: f32[16,1], index: 9, kind: input, shape index: {}]
  %s10 = inlined_call_operand.vmem [shape: bf16[8,16], index: 10, kind: input, shape index: {}]
  %s11 = inlined_call_operand.vmem [shape: f32[8,1], index: 11, kind: input, shape index: {}]
  %s12 = inlined_call_operand.vmem [shape: bf16[8,72], index: 12, kind: input, shape index: {}]
  %s13 = inlined_call_operand.vmem [shape: f32[8,1], index: 13, kind: input, shape index: {}]
  %s14 = inlined_call_operand.vmem [shape: bf16[32,8], index: 14, kind: input, shape index: {}]
  %s15 = inlined_call_operand.vmem [shape: f32[32,1], index: 15, kind: input, shape index: {}]
  %s16 = inlined_call_operand.vmem [shape: bf16[32,32], index: 16, kind: input, shape index: {}]
  %s17 = inlined_call_operand.vmem [shape: f32[32,1], index: 17, kind: input, shape index: {}]
  %s18 = inlined_call_operand.vmem [shape: f32[128,32], index: 18, kind: input, shape index: {}]
  %s19 = inlined_call_operand.vmem [shape: f32[128,1], index: 19, kind: input, shape index: {}]
  %s20 = inlined_call_operand.vmem [shape: bf16[2,256,1], index: 20, kind: input, shape index: {}]
  %s21 = inlined_call_operand.vmem [shape: f32[2,128,1], index: 21, kind: output, shape index: {}]
  %s22 = sld [smem:[#allocation0]]
  $region117: #{forward.1} parent=0
    _
  %s24 = ssub.s32 1, %s22
  %s25 = scalar_select 0, %s24, %s22
  loop: start=0, step=1, limit=4
  $region2: #{forward.1} parent=0 // loop_pre_header
    _
  $region3: #{forward.1} parent=0 // loop_header
    %s27 = sphi 0, %s31
    %p28 = scmp.ge.s32.totalorder %s27, 4
    %s37 = sphi 0, %s39
    %s40 = sphi 0, %s37
    %s41 = sphi 0, %s40
    %s57 = sphi 0, %s41
    %s61 = sphi 0, %s61
    %s63 = sphi 0, %s61
    %s64 = sphi 0, %s63
    %s78 = sphi 0, %s64
    %s82 = sphi 0, %s82
    %s84 = sphi 0, %s82
    %s85 = sphi 0, %s84
    %s99 = sphi 0, %s85
    %s103 = sphi 0, %s103
    %s105 = sphi 0, %s103
    %s106 = sphi 0, %s105
    %s120 = sphi 0, %s106
    %s124 = sphi 0, %s124
    %s126 = sphi 0, %s124
    %s127 = sphi 0, %s126
    %s141 = sphi 0, %s127
    %s145 = sphi 0, %s145
    %s147 = sphi 0, %s145
    %s148 = sphi 0, %s147
    %s162 = sphi 0, %s148
    %s166 = sphi 0, %s166
    %s168 = sphi 0, %s166
    %s169 = sphi 0, %s168
    %s183 = sphi 0, %s169
    %s187 = sphi 0, %s187
    %s189 = sphi 0, %s187
    %s190 = sphi 0, %s189
    %s204 = sphi 0, %s190
    %s208 = sphi 0, %s208
    %s210 = sphi 0, %s208
    %s211 = sphi 0, %s210
    %s225 = sphi 0, %s211
    %s229 = sphi 0, %s229
    %s231 = sphi 0, %s229
    %s232 = sphi 0, %s231
    %s246 = sphi 0, %s232
    %s250 = sphi 0, %s250
    %s252 = sphi 0, %s250
    %s253 = sphi 0, %s252
    %s267 = sphi 0, %s253
    %s271 = sphi 0, %s271
    %s273 = sphi 0, %s271
    %s274 = sphi 0, %s273
    %s288 = sphi 0, %s274
    %s292 = sphi 0, %s292
    %s294 = sphi 0, %s292
    %s295 = sphi 0, %s294
    %s309 = sphi 0, %s295
    %s313 = sphi 0, %s313
    %s315 = sphi 0, %s313
    %s316 = sphi 0, %s315
    %s330 = sphi 0, %s316
    %s334 = sphi 0, %s334
    %s336 = sphi 0, %s334
    %s337 = sphi 0, %s336
    %s351 = sphi 0, %s337
    %s355 = sphi 0, %s355
    %s357 = sphi 0, %s355
    %s358 = sphi 0, %s357
    %s372 = sphi 0, %s358
    %s376 = sphi 0, %s376
    %s378 = sphi 0, %s376
    %s379 = sphi 0, %s378
    %s393 = sphi 0, %s379
    %s397 = sphi 0, %s397
    %s399 = sphi 0, %s397
    %s400 = sphi 0, %s399
    %s414 = sphi 0, %s400
    %s418 = sphi 0, %s418
    %s420 = sphi 0, %s418
    %s421 = sphi 0, %s420
    %s435 = sphi 0, %s421
    %s439 = sphi 0, %s439
    %s441 = sphi 0, %s439
    %s442 = sphi 0, %s441
    %s456 = sphi 0, %s442
    %s462 = sphi 0, %s464
    %s465 = sphi 0, %s462
    %s466 = sphi 0, %s465
    %s482 = sphi 0, %s466
    %s488 = sphi 0, %s490
    %s491 = sphi 0, %s488
    %s492 = sphi 0, %s491
    %s508 = sphi 0, %s492
  $region4: #{forward.1} parent=0 // loop_header_branch
    %30 = sbr.rel (%p28) target = $region8
  $region5: #{forward.1} parent=0 // loop_body
    %s32 = ssub.s32 %s27, 1
    %s33 = ssub.s32 %s27, 2
    %s34 = sadd.s32 %s27, 1
    %s35 = ssub.s32 %s27, %s34
    %p36 = scmp.eq.s32.totalorder %s35, 0
    %s38 = sadd.s32 %s37, 1
    %s39 = scalar_select %p36, %s37, %s38
    %p42 = pneg %p36
    %p43 = scmp.eq.s32.totalorder %s27, 1
    %p44 = por %p42, %p43
    %p45 = scmp.ne.s32.totalorder %s37, %s40
    %p46 = scmp.eq.s32.totalorder %s27, 0
    %p47 = por %p45, %p46
    %p48 = scmp.ne.s32.totalorder %s37, %s40
    %p49 = scmp.eq.s32.totalorder %s32, 1
    %p50 = por %p48, %p49
    %p51 = scmp.ne.s32.totalorder %s40, %s41
    %p52 = scmp.eq.s32.totalorder %s32, 0
    %p53 = por %p51, %p52
    %p54 = scmp.ne.s32.totalorder %s40, %s41
    %p55 = scmp.eq.s32.totalorder %s33, 1
    %p56 = por %p54, %p55
    %p58 = scmp.ne.s32.totalorder %s41, %s57
    %p59 = scmp.eq.s32.totalorder %s33, 0
    %p60 = por %p58, %p59
    %s62 = sadd.s32 %s61, 1
    %p65 = scmp.eq.s32.totalorder %s27, 1
    %p66 = scmp.ne.s32.totalorder %s61, %s63
    %p67 = scmp.eq.s32.totalorder %s27, 0
    %p68 = por %p66, %p67
    %p69 = scmp.ne.s32.totalorder %s61, %s63
    %p70 = scmp.eq.s32.totalorder %s32, 1
    %p71 = por %p69, %p70
    %p72 = scmp.ne.s32.totalorder %s63, %s64
    %p73 = scmp.eq.s32.totalorder %s32, 0
    %p74 = por %p72, %p73
    %p75 = scmp.ne.s32.totalorder %s63, %s64
    %p76 = scmp.eq.s32.totalorder %s33, 1
    %p77 = por %p75, %p76
    %p79 = scmp.ne.s32.totalorder %s64, %s78
    %p80 = scmp.eq.s32.totalorder %s33, 0
    %p81 = por %p79, %p80
    %s83 = sadd.s32 %s82, 1
    %p86 = scmp.eq.s32.totalorder %s27, 1
    %p87 = scmp.ne.s32.totalorder %s82, %s84
    %p88 = scmp.eq.s32.totalorder %s27, 0
    %p89 = por %p87, %p88
    %p90 = scmp.ne.s32.totalorder %s82, %s84
    %p91 = scmp.eq.s32.totalorder %s32, 1
    %p92 = por %p90, %p91
    %p93 = scmp.ne.s32.totalorder %s84, %s85
    %p94 = scmp.eq.s32.totalorder %s32, 0
    %p95 = por %p93, %p94
    %p96 = scmp.ne.s32.totalorder %s84, %s85
    %p97 = scmp.eq.s32.totalorder %s33, 1
    %p98 = por %p96, %p97
    %p100 = scmp.ne.s32.totalorder %s85, %s99
    %p101 = scmp.eq.s32.totalorder %s33, 0
    %p102 = por %p100, %p101
    %s104 = sadd.s32 %s103, 1
    %p107 = scmp.eq.s32.totalorder %s27, 1
    %p108 = scmp.ne.s32.totalorder %s103, %s105
    %p109 = scmp.eq.s32.totalorder %s27, 0
    %p110 = por %p108, %p109
    %p111 = scmp.ne.s32.totalorder %s103, %s105
    %p112 = scmp.eq.s32.totalorder %s32, 1
    %p113 = por %p111, %p112
    %p114 = scmp.ne.s32.totalorder %s105, %s106
    %p115 = scmp.eq.s32.totalorder %s32, 0
    %p116 = por %p114, %p115
    %p117 = scmp.ne.s32.totalorder %s105, %s106
    %p118 = scmp.eq.s32.totalorder %s33, 1
    %p119 = por %p117, %p118
    %p121 = scmp.ne.s32.totalorder %s106, %s120
    %p122 = scmp.eq.s32.totalorder %s33, 0
    %p123 = por %p121, %p122
    %s125 = sadd.s32 %s124, 1
    %p128 = scmp.eq.s32.totalorder %s27, 1
    %p129 = scmp.ne.s32.totalorder %s124, %s126
    %p130 = scmp.eq.s32.totalorder %s27, 0
    %p131 = por %p129, %p130
    %p132 = scmp.ne.s32.totalorder %s124, %s126
    %p133 = scmp.eq.s32.totalorder %s32, 1
    %p134 = por %p132, %p133
    %p135 = scmp.ne.s32.totalorder %s126, %s127
    %p136 = scmp.eq.s32.totalorder %s32, 0
    %p137 = por %p135, %p136
    %p138 = scmp.ne.s32.totalorder %s126, %s127
    %p139 = scmp.eq.s32.totalorder %s33, 1
    %p140 = por %p138, %p139
    %p142 = scmp.ne.s32.totalorder %s127, %s141
    %p143 = scmp.eq.s32.totalorder %s33, 0
    %p144 = por %p142, %p143
    %s146 = sadd.s32 %s145, 1
    %p149 = scmp.eq.s32.totalorder %s27, 1
    %p150 = scmp.ne.s32.totalorder %s145, %s147
    %p151 = scmp.eq.s32.totalorder %s27, 0
    %p152 = por %p150, %p151
    %p153 = scmp.ne.s32.totalorder %s145, %s147
    %p154 = scmp.eq.s32.totalorder %s32, 1
    %p155 = por %p153, %p154
    %p156 = scmp.ne.s32.totalorder %s147, %s148
    %p157 = scmp.eq.s32.totalorder %s32, 0
    %p158 = por %p156, %p157
    %p159 = scmp.ne.s32.totalorder %s147, %s148
    %p160 = scmp.eq.s32.totalorder %s33, 1
    %p161 = por %p159, %p160
    %p163 = scmp.ne.s32.totalorder %s148, %s162
    %p164 = scmp.eq.s32.totalorder %s33, 0
    %p165 = por %p163, %p164
    %s167 = sadd.s32 %s166, 1
    %p170 = scmp.eq.s32.totalorder %s27, 1
    %p171 = scmp.ne.s32.totalorder %s166, %s168
    %p172 = scmp.eq.s32.totalorder %s27, 0
    %p173 = por %p171, %p172
    %p174 = scmp.ne.s32.totalorder %s166, %s168
    %p175 = scmp.eq.s32.totalorder %s32, 1
    %p176 = por %p174, %p175
    %p177 = scmp.ne.s32.totalorder %s168, %s169
    %p178 = scmp.eq.s32.totalorder %s32, 0
    %p179 = por %p177, %p178
    %p180 = scmp.ne.s32.totalorder %s168, %s169
    %p181 = scmp.eq.s32.totalorder %s33, 1
    %p182 = por %p180, %p181
    %p184 = scmp.ne.s32.totalorder %s169, %s183
    %p185 = scmp.eq.s32.totalorder %s33, 0
    %p186 = por %p184, %p185
    %s188 = sadd.s32 %s187, 1
    %p191 = scmp.eq.s32.totalorder %s27, 1
    %p192 = scmp.ne.s32.totalorder %s187, %s189
    %p193 = scmp.eq.s32.totalorder %s27, 0
    %p194 = por %p192, %p193
    %p195 = scmp.ne.s32.totalorder %s187, %s189
    %p196 = scmp.eq.s32.totalorder %s32, 1
    %p197 = por %p195, %p196
    %p198 = scmp.ne.s32.totalorder %s189, %s190
    %p199 = scmp.eq.s32.totalorder %s32, 0
    %p200 = por %p198, %p199
    %p201 = scmp.ne.s32.totalorder %s189, %s190
    %p202 = scmp.eq.s32.totalorder %s33, 1
    %p203 = por %p201, %p202
    %p205 = scmp.ne.s32.totalorder %s190, %s204
    %p206 = scmp.eq.s32.totalorder %s33, 0
    %p207 = por %p205, %p206
    %s209 = sadd.s32 %s208, 1
    %p212 = scmp.eq.s32.totalorder %s27, 1
    %p213 = scmp.ne.s32.totalorder %s208, %s210
    %p214 = scmp.eq.s32.totalorder %s27, 0
    %p215 = por %p213, %p214
    %p216 = scmp.ne.s32.totalorder %s208, %s210
    %p217 = scmp.eq.s32.totalorder %s32, 1
    %p218 = por %p216, %p217
    %p219 = scmp.ne.s32.totalorder %s210, %s211
    %p220 = scmp.eq.s32.totalorder %s32, 0
    %p221 = por %p219, %p220
    %p222 = scmp.ne.s32.totalorder %s210, %s211
    %p223 = scmp.eq.s32.totalorder %s33, 1
    %p224 = por %p222, %p223
    %p226 = scmp.ne.s32.totalorder %s211, %s225
    %p227 = scmp.eq.s32.totalorder %s33, 0
    %p228 = por %p226, %p227
    %s230 = sadd.s32 %s229, 1
    %p233 = scmp.eq.s32.totalorder %s27, 1
    %p234 = scmp.ne.s32.totalorder %s229, %s231
    %p235 = scmp.eq.s32.totalorder %s27, 0
    %p236 = por %p234, %p235
    %p237 = scmp.ne.s32.totalorder %s229, %s231
    %p238 = scmp.eq.s32.totalorder %s32, 1
    %p239 = por %p237, %p238
    %p240 = scmp.ne.s32.totalorder %s231, %s232
    %p241 = scmp.eq.s32.totalorder %s32, 0
    %p242 = por %p240, %p241
    %p243 = scmp.ne.s32.totalorder %s231, %s232
    %p244 = scmp.eq.s32.totalorder %s33, 1
    %p245 = por %p243, %p244
    %p247 = scmp.ne.s32.totalorder %s232, %s246
    %p248 = scmp.eq.s32.totalorder %s33, 0
    %p249 = por %p247, %p248
    %s251 = sadd.s32 %s250, 1
    %p254 = scmp.eq.s32.totalorder %s27, 1
    %p255 = scmp.ne.s32.totalorder %s250, %s252
    %p256 = scmp.eq.s32.totalorder %s27, 0
    %p257 = por %p255, %p256
    %p258 = scmp.ne.s32.totalorder %s250, %s252
    %p259 = scmp.eq.s32.totalorder %s32, 1
    %p260 = por %p258, %p259
    %p261 = scmp.ne.s32.totalorder %s252, %s253
    %p262 = scmp.eq.s32.totalorder %s32, 0
    %p263 = por %p261, %p262
    %p264 = scmp.ne.s32.totalorder %s252, %s253
    %p265 = scmp.eq.s32.totalorder %s33, 1
    %p266 = por %p264, %p265
    %p268 = scmp.ne.s32.totalorder %s253, %s267
    %p269 = scmp.eq.s32.totalorder %s33, 0
    %p270 = por %p268, %p269
    %s272 = sadd.s32 %s271, 1
    %p275 = scmp.eq.s32.totalorder %s27, 1
    %p276 = scmp.ne.s32.totalorder %s271, %s273
    %p277 = scmp.eq.s32.totalorder %s27, 0
    %p278 = por %p276, %p277
    %p279 = scmp.ne.s32.totalorder %s271, %s273
    %p280 = scmp.eq.s32.totalorder %s32, 1
    %p281 = por %p279, %p280
    %p282 = scmp.ne.s32.totalorder %s273, %s274
    %p283 = scmp.eq.s32.totalorder %s32, 0
    %p284 = por %p282, %p283
    %p285 = scmp.ne.s32.totalorder %s273, %s274
    %p286 = scmp.eq.s32.totalorder %s33, 1
    %p287 = por %p285, %p286
    %p289 = scmp.ne.s32.totalorder %s274, %s288
    %p290 = scmp.eq.s32.totalorder %s33, 0
    %p291 = por %p289, %p290
    %s293 = sadd.s32 %s292, 1
    %p296 = scmp.eq.s32.totalorder %s27, 1
    %p297 = scmp.ne.s32.totalorder %s292, %s294
    %p298 = scmp.eq.s32.totalorder %s27, 0
    %p299 = por %p297, %p298
    %p300 = scmp.ne.s32.totalorder %s292, %s294
    %p301 = scmp.eq.s32.totalorder %s32, 1
    %p302 = por %p300, %p301
    %p303 = scmp.ne.s32.totalorder %s294, %s295
    %p304 = scmp.eq.s32.totalorder %s32, 0
    %p305 = por %p303, %p304
    %p306 = scmp.ne.s32.totalorder %s294, %s295
    %p307 = scmp.eq.s32.totalorder %s33, 1
    %p308 = por %p306, %p307
    %p310 = scmp.ne.s32.totalorder %s295, %s309
    %p311 = scmp.eq.s32.totalorder %s33, 0
    %p312 = por %p310, %p311
    %s314 = sadd.s32 %s313, 1
    %p317 = scmp.eq.s32.totalorder %s27, 1
    %p318 = scmp.ne.s32.totalorder %s313, %s315
    %p319 = scmp.eq.s32.totalorder %s27, 0
    %p320 = por %p318, %p319
    %p321 = scmp.ne.s32.totalorder %s313, %s315
    %p322 = scmp.eq.s32.totalorder %s32, 1
    %p323 = por %p321, %p322
    %p324 = scmp.ne.s32.totalorder %s315, %s316
    %p325 = scmp.eq.s32.totalorder %s32, 0
    %p326 = por %p324, %p325
    %p327 = scmp.ne.s32.totalorder %s315, %s316
    %p328 = scmp.eq.s32.totalorder %s33, 1
    %p329 = por %p327, %p328
    %p331 = scmp.ne.s32.totalorder %s316, %s330
    %p332 = scmp.eq.s32.totalorder %s33, 0
    %p333 = por %p331, %p332
    %s335 = sadd.s32 %s334, 1
    %p338 = scmp.eq.s32.totalorder %s27, 1
    %p339 = scmp.ne.s32.totalorder %s334, %s336
    %p340 = scmp.eq.s32.totalorder %s27, 0
    %p341 = por %p339, %p340
    %p342 = scmp.ne.s32.totalorder %s334, %s336
    %p343 = scmp.eq.s32.totalorder %s32, 1
    %p344 = por %p342, %p343
    %p345 = scmp.ne.s32.totalorder %s336, %s337
    %p346 = scmp.eq.s32.totalorder %s32, 0
    %p347 = por %p345, %p346
    %p348 = scmp.ne.s32.totalorder %s336, %s337
    %p349 = scmp.eq.s32.totalorder %s33, 1
    %p350 = por %p348, %p349
    %p352 = scmp.ne.s32.totalorder %s337, %s351
    %p353 = scmp.eq.s32.totalorder %s33, 0
    %p354 = por %p352, %p353
    %s356 = sadd.s32 %s355, 1
    %p359 = scmp.eq.s32.totalorder %s27, 1
    %p360 = scmp.ne.s32.totalorder %s355, %s357
    %p361 = scmp.eq.s32.totalorder %s27, 0
    %p362 = por %p360, %p361
    %p363 = scmp.ne.s32.totalorder %s355, %s357
    %p364 = scmp.eq.s32.totalorder %s32, 1
    %p365 = por %p363, %p364
    %p366 = scmp.ne.s32.totalorder %s357, %s358
    %p367 = scmp.eq.s32.totalorder %s32, 0
    %p368 = por %p366, %p367
    %p369 = scmp.ne.s32.totalorder %s357, %s358
    %p370 = scmp.eq.s32.totalorder %s33, 1
    %p371 = por %p369, %p370
    %p373 = scmp.ne.s32.totalorder %s358, %s372
    %p374 = scmp.eq.s32.totalorder %s33, 0
    %p375 = por %p373, %p374
    %s377 = sadd.s32 %s376, 1
    %p380 = scmp.eq.s32.totalorder %s27, 1
    %p381 = scmp.ne.s32.totalorder %s376, %s378
    %p382 = scmp.eq.s32.totalorder %s27, 0
    %p383 = por %p381, %p382
    %p384 = scmp.ne.s32.totalorder %s376, %s378
    %p385 = scmp.eq.s32.totalorder %s32, 1
    %p386 = por %p384, %p385
    %p387 = scmp.ne.s32.totalorder %s378, %s379
    %p388 = scmp.eq.s32.totalorder %s32, 0
    %p389 = por %p387, %p388
    %p390 = scmp.ne.s32.totalorder %s378, %s379
    %p391 = scmp.eq.s32.totalorder %s33, 1
    %p392 = por %p390, %p391
    %p394 = scmp.ne.s32.totalorder %s379, %s393
    %p395 = scmp.eq.s32.totalorder %s33, 0
    %p396 = por %p394, %p395
    %s398 = sadd.s32 %s397, 1
    %p401 = scmp.eq.s32.totalorder %s27, 1
    %p402 = scmp.ne.s32.totalorder %s397, %s399
    %p403 = scmp.eq.s32.totalorder %s27, 0
    %p404 = por %p402, %p403
    %p405 = scmp.ne.s32.totalorder %s397, %s399
    %p406 = scmp.eq.s32.totalorder %s32, 1
    %p407 = por %p405, %p406
    %p408 = scmp.ne.s32.totalorder %s399, %s400
    %p409 = scmp.eq.s32.totalorder %s32, 0
    %p410 = por %p408, %p409
    %p411 = scmp.ne.s32.totalorder %s399, %s400
    %p412 = scmp.eq.s32.totalorder %s33, 1
    %p413 = por %p411, %p412
    %p415 = scmp.ne.s32.totalorder %s400, %s414
    %p416 = scmp.eq.s32.totalorder %s33, 0
    %p417 = por %p415, %p416
    %s419 = sadd.s32 %s418, 1
    %p422 = scmp.eq.s32.totalorder %s27, 1
    %p423 = scmp.ne.s32.totalorder %s418, %s420
    %p424 = scmp.eq.s32.totalorder %s27, 0
    %p425 = por %p423, %p424
    %p426 = scmp.ne.s32.totalorder %s418, %s420
    %p427 = scmp.eq.s32.totalorder %s32, 1
    %p428 = por %p426, %p427
    %p429 = scmp.ne.s32.totalorder %s420, %s421
    %p430 = scmp.eq.s32.totalorder %s32, 0
    %p431 = por %p429, %p430
    %p432 = scmp.ne.s32.totalorder %s420, %s421
    %p433 = scmp.eq.s32.totalorder %s33, 1
    %p434 = por %p432, %p433
    %p436 = scmp.ne.s32.totalorder %s421, %s435
    %p437 = scmp.eq.s32.totalorder %s33, 0
    %p438 = por %p436, %p437
    %s440 = sadd.s32 %s439, 1
    %p443 = scmp.eq.s32.totalorder %s27, 1
    %p444 = scmp.ne.s32.totalorder %s439, %s441
    %p445 = scmp.eq.s32.totalorder %s27, 0
    %p446 = por %p444, %p445
    %p447 = scmp.ne.s32.totalorder %s439, %s441
    %p448 = scmp.eq.s32.totalorder %s32, 1
    %p449 = por %p447, %p448
    %p450 = scmp.ne.s32.totalorder %s441, %s442
    %p451 = scmp.eq.s32.totalorder %s32, 0
    %p452 = por %p450, %p451
    %p453 = scmp.ne.s32.totalorder %s441, %s442
    %p454 = scmp.eq.s32.totalorder %s33, 1
    %p455 = por %p453, %p454
    %p457 = scmp.ne.s32.totalorder %s442, %s456
    %p458 = scmp.eq.s32.totalorder %s33, 0
    %p459 = por %p457, %p458
    %s460 = ssub.s32 %s27, %s34
    %p461 = scmp.eq.s32.totalorder %s460, 0
    %s463 = sadd.s32 %s462, 1
    %s464 = scalar_select %p461, %s462, %s463
    %p467 = pneg %p461
    %p468 = scmp.eq.s32.totalorder %s27, 1
    %p469 = por %p467, %p468
    %p470 = scmp.ne.s32.totalorder %s462, %s465
    %p471 = scmp.eq.s32.totalorder %s27, 0
    %p472 = por %p470, %p471
    %p473 = scmp.ne.s32.totalorder %s462, %s465
    %p474 = scmp.eq.s32.totalorder %s32, 1
    %p475 = por %p473, %p474
    %p476 = scmp.ne.s32.totalorder %s465, %s466
    %p477 = scmp.eq.s32.totalorder %s32, 0
    %p478 = por %p476, %p477
    %p479 = scmp.ne.s32.totalorder %s465, %s466
    %p480 = scmp.eq.s32.totalorder %s33, 1
    %p481 = por %p479, %p480
    %p483 = scmp.ne.s32.totalorder %s466, %s482
    %p484 = scmp.eq.s32.totalorder %s33, 0
    %p485 = por %p483, %p484
    %s486 = ssub.s32 %s27, %s34
    %p487 = scmp.eq.s32.totalorder %s486, 0
    %s489 = sadd.s32 %s488, 1
    %s490 = scalar_select %p487, %s488, %s489
    %p493 = pneg %p487
    %p494 = scmp.eq.s32.totalorder %s27, 1
    %p495 = por %p493, %p494
    %p496 = scmp.ne.s32.totalorder %s488, %s491
    %p497 = scmp.eq.s32.totalorder %s27, 0
    %p498 = por %p496, %p497
    %p499 = scmp.ne.s32.totalorder %s488, %s491
    %p500 = scmp.eq.s32.totalorder %s32, 1
    %p501 = por %p499, %p500
    %p502 = scmp.ne.s32.totalorder %s491, %s492
    %p503 = scmp.eq.s32.totalorder %s32, 0
    %p504 = por %p502, %p503
    %p505 = scmp.ne.s32.totalorder %s491, %s492
    %p506 = scmp.eq.s32.totalorder %s33, 1
    %p507 = por %p505, %p506
    %p509 = scmp.ne.s32.totalorder %s492, %s508
    %p510 = scmp.eq.s32.totalorder %s33, 0
    %p511 = por %p509, %p510
    %p512 = scmp.le.s32.totalorder 1, %s27
    %p513 = scmp.lt.s32.totalorder %s27, 3
    %p514 = pnand %p512, %p513
    %p515 = pneg %p514
    // Predicated region
    $region9: #{forward.1} parent=5 // pred_check
      _
    $region10: #{forward.1} parent=5 // pred_check_branch
      %517 = sbr.rel (%p514) target = $region12
    $region11: #{forward.1} parent=5 // pred_region
      %s518 = ssub.s32 %s27, 1
      // Predicated region
      $region13: #{forward.1} parent=11 // pred_check
        %p519 = pneg %p74
      $region14: #{forward.1} parent=11 // pred_check_branch
        %521 = sbr.rel (%p519) target = $region16
      $region15: #{forward.1} parent=11 // pred_region
        _
      $region16: #{forward.1} parent=11 // pred_fallthru
        _
      // Predicated region
      $region17: #{forward.1} parent=11 // pred_check
        %p522 = pneg %p95
      $region18: #{forward.1} parent=11 // pred_check_branch
        %524 = sbr.rel (%p522) target = $region20
      $region19: #{forward.1} parent=11 // pred_region
        _
      $region20: #{forward.1} parent=11 // pred_fallthru
        _
      // Predicated region
      $region21: #{forward.1} parent=11 // pred_check
        %p525 = pneg %p116
      $region22: #{forward.1} parent=11 // pred_check_branch
        %527 = sbr.rel (%p525) target = $region24
      $region23: #{forward.1} parent=11 // pred_region
        _
      $region24: #{forward.1} parent=11 // pred_fallthru
        _
      // Predicated region
      $region25: #{forward.1} parent=11 // pred_check
        %p528 = pneg %p137
      $region26: #{forward.1} parent=11 // pred_check_branch
        %530 = sbr.rel (%p528) target = $region28
      $region27: #{forward.1} parent=11 // pred_region
        _
      $region28: #{forward.1} parent=11 // pred_fallthru
        _
      // Predicated region
      $region29: #{forward.1} parent=11 // pred_check
        %p531 = pneg %p158
      $region30: #{forward.1} parent=11 // pred_check_branch
        %533 = sbr.rel (%p531) target = $region32
      $region31: #{forward.1} parent=11 // pred_region
        _
      $region32: #{forward.1} parent=11 // pred_fallthru
        _
      // Predicated region
      $region33: #{forward.1} parent=11 // pred_check
        %p534 = pneg %p179
      $region34: #{forward.1} parent=11 // pred_check_branch
        %536 = sbr.rel (%p534) target = $region36
      $region35: #{forward.1} parent=11 // pred_region
        _
      $region36: #{forward.1} parent=11 // pred_fallthru
        _
      // Predicated region
      $region37: #{forward.1} parent=11 // pred_check
        %p537 = pneg %p200
      $region38: #{forward.1} parent=11 // pred_check_branch
        %539 = sbr.rel (%p537) target = $region40
      $region39: #{forward.1} parent=11 // pred_region
        _
      $region40: #{forward.1} parent=11 // pred_fallthru
        _
      // Predicated region
      $region41: #{forward.1} parent=11 // pred_check
        %p540 = pneg %p221
      $region42: #{forward.1} parent=11 // pred_check_branch
        %542 = sbr.rel (%p540) target = $region44
      $region43: #{forward.1} parent=11 // pred_region
        _
      $region44: #{forward.1} parent=11 // pred_fallthru
        _
      // Predicated region
      $region45: #{forward.1} parent=11 // pred_check
        %p543 = pneg %p242
      $region46: #{forward.1} parent=11 // pred_check_branch
        %545 = sbr.rel (%p543) target = $region48
      $region47: #{forward.1} parent=11 // pred_region
        _
      $region48: #{forward.1} parent=11 // pred_fallthru
        _
      // Predicated region
      $region49: #{forward.1} parent=11 // pred_check
        %p546 = pneg %p263
      $region50: #{forward.1} parent=11 // pred_check_branch
        %548 = sbr.rel (%p546) target = $region52
      $region51: #{forward.1} parent=11 // pred_region
        _
      $region52: #{forward.1} parent=11 // pred_fallthru
        _
      // Predicated region
      $region53: #{forward.1} parent=11 // pred_check
        %p549 = pneg %p284
      $region54: #{forward.1} parent=11 // pred_check_branch
        %551 = sbr.rel (%p549) target = $region56
      $region55: #{forward.1} parent=11 // pred_region
        _
      $region56: #{forward.1} parent=11 // pred_fallthru
        _
      // Predicated region
      $region57: #{forward.1} parent=11 // pred_check
        %p552 = pneg %p305
      $region58: #{forward.1} parent=11 // pred_check_branch
        %554 = sbr.rel (%p552) target = $region60
      $region59: #{forward.1} parent=11 // pred_region
        _
      $region60: #{forward.1} parent=11 // pred_fallthru
        _
      // Predicated region
      $region61: #{forward.1} parent=11 // pred_check
        %p555 = pneg %p326
      $region62: #{forward.1} parent=11 // pred_check_branch
        %557 = sbr.rel (%p555) target = $region64
      $region63: #{forward.1} parent=11 // pred_region
        _
      $region64: #{forward.1} parent=11 // pred_fallthru
        _
      // Predicated region
      $region65: #{forward.1} parent=11 // pred_check
        %p558 = pneg %p347
      $region66: #{forward.1} parent=11 // pred_check_branch
        %560 = sbr.rel (%p558) target = $region68
      $region67: #{forward.1} parent=11 // pred_region
        _
      $region68: #{forward.1} parent=11 // pred_fallthru
        _
      // Predicated region
      $region69: #{forward.1} parent=11 // pred_check
        %p561 = pneg %p368
      $region70: #{forward.1} parent=11 // pred_check_branch
        %563 = sbr.rel (%p561) target = $region72
      $region71: #{forward.1} parent=11 // pred_region
        _
      $region72: #{forward.1} parent=11 // pred_fallthru
        _
      // Predicated region
      $region73: #{forward.1} parent=11 // pred_check
        %p564 = pneg %p389
      $region74: #{forward.1} parent=11 // pred_check_branch
        %566 = sbr.rel (%p564) target = $region76
      $region75: #{forward.1} parent=11 // pred_region
        _
      $region76: #{forward.1} parent=11 // pred_fallthru
        _
      // Predicated region
      $region77: #{forward.1} parent=11 // pred_check
        %p567 = pneg %p410
      $region78: #{forward.1} parent=11 // pred_check_branch
        %569 = sbr.rel (%p567) target = $region80
      $region79: #{forward.1} parent=11 // pred_region
        _
      $region80: #{forward.1} parent=11 // pred_fallthru
        _
      // Predicated region
      $region81: #{forward.1} parent=11 // pred_check
        %p570 = pneg %p431
      $region82: #{forward.1} parent=11 // pred_check_branch
        %572 = sbr.rel (%p570) target = $region84
      $region83: #{forward.1} parent=11 // pred_region
        _
      $region84: #{forward.1} parent=11 // pred_fallthru
        _
      // Predicated region
      $region85: #{forward.1} parent=11 // pred_check
        %p573 = pneg %p452
      $region86: #{forward.1} parent=11 // pred_check_branch
        %575 = sbr.rel (%p573) target = $region88
      $region87: #{forward.1} parent=11 // pred_region
        _
      $region88: #{forward.1} parent=11 // pred_fallthru
        _
    $region12: #{forward.1} parent=5 // pred_fallthru
      _
    %p576 = scmp.lt.s32.totalorder %s27, 2
    // Predicated region
    $region89: #{forward.1} parent=5 // pred_check
      %p577 = pneg %p576
    $region90: #{forward.1} parent=5 // pred_check_branch
      %579 = sbr.rel (%p577) target = $region92
    $region91: #{forward.1} parent=5 // pred_region
      // Predicated region
      $region93: #{forward.1} parent=91 // pred_check
        %p580 = pneg %p47
      $region94: #{forward.1} parent=91 // pred_check_branch
        %582 = sbr.rel (%p580) target = $region96
      $region95: #{forward.1} parent=91 // pred_region
        %p583 = scmp.lt.s32.totalorder %s27, 1
        %s584 = scalar_select %p583, %s27, 1
        %s585 = smul.addr %s584, 10
        %s586 = smul.addr %s585, 4
        %s587 = scalar_lea.vmem %s0, %s586
      $region96: #{forward.1} parent=91 // pred_fallthru
        _
      // Predicated region
      $region97: #{forward.1} parent=91 // pred_check
        %p588 = pneg %p472
      $region98: #{forward.1} parent=91 // pred_check_branch
        %590 = sbr.rel (%p588) target = $region100
      $region99: #{forward.1} parent=91 // pred_region
        %p591 = scmp.lt.s32.totalorder %s27, 1
        %s592 = scalar_select %p591, %s27, 1
        %s593 = smul.addr %s592, 32
        %s594 = smul.addr %s593, 4
        %s595 = scalar_lea.vmem %s20, %s594
      $region100: #{forward.1} parent=91 // pred_fallthru
        _
    $region92: #{forward.1} parent=5 // pred_fallthru
      _
    %p596 = scmp.le.s32.totalorder 1, %s27
    %p597 = scmp.lt.s32.totalorder %s27, 3
    %p598 = pnand %p596, %p597
    %p599 = pneg %p598
    // Predicated region
    $region101: #{forward.1} parent=5 // pred_check
      _
    $region102: #{forward.1} parent=5 // pred_check_branch
      %601 = sbr.rel (%p598) target = $region104
    $region103: #{forward.1} parent=5 // pred_region
      %s602 = ssub.s32 %s27, 1
      %p603 = scmp.lt.s32.totalorder %s32, 1
      %s604 = scalar_select %p603, %s32, 1
      %s605 = smul.addr %s604, 10
      %s606 = smul.addr %s605, 4
      %s607 = scalar_lea.vmem %s0, %s606
      %p608 = pneg %p53
      %p609 = pneg %p50
      %p610 = pneg %p74
      %p611 = pneg %p71
      %p612 = pneg %p95
      %p613 = pneg %p92
      %p614 = pneg %p116
      %p615 = pneg %p113
      %p616 = pneg %p137
      %p617 = pneg %p134
      %p618 = pneg %p158
      %p619 = pneg %p155
      %p620 = pneg %p179
      %p621 = pneg %p176
      %p622 = pneg %p200
      %p623 = pneg %p197
      %p624 = pneg %p221
      %p625 = pneg %p218
      %p626 = pneg %p242
      %p627 = pneg %p239
      %p628 = pneg %p263
      %p629 = pneg %p260
      %p630 = pneg %p284
      %p631 = pneg %p281
      %p632 = pneg %p305
      %p633 = pneg %p302
      %p634 = pneg %p326
      %p635 = pneg %p323
      %p636 = pneg %p347
      %p637 = pneg %p344
      %p638 = pneg %p368
      %p639 = pneg %p365
      %p640 = pneg %p389
      %p641 = pneg %p386
      %p642 = pneg %p410
      %p643 = pneg %p407
      %p644 = pneg %p431
      %p645 = pneg %p428
      %p646 = pneg %p452
      %p647 = pneg %p449
      %p648 = scmp.lt.s32.totalorder %s32, 1
      %s649 = scalar_select %p648, %s32, 1
      %s650 = smul.addr %s649, 32
      %s651 = smul.addr %s650, 4
      %s652 = scalar_lea.vmem %s20, %s651
      %p653 = pneg %p478
      %p654 = pneg %p475
      %p655 = pneg %p504
      %p656 = pneg %p501
      %p657 = scmp.lt.s32.totalorder %s32, 1
      %s658 = scalar_select %p657, %s32, 1
      %s659 = smul.addr %s658, 16
      %s660 = smul.addr %s659, 8
      %s661 = scalar_lea.vmem %s21, %s660
      %p662 = scmp.lt.s32.totalorder %s32, 1
      %s663 = scalar_select %p662, %s32, 1
      %s664 = smul.addr %s663, 10
      %s665 = smul.addr %s664, 4
      %s666 = scalar_lea.vmem %s0, %s665
      %p667 = scmp.lt.s32.totalorder %s32, 1
      %s668 = scalar_select %p667, %s32, 1
      %s669 = smul.addr %s668, 32
      %s670 = smul.addr %s669, 4
      %s671 = scalar_lea.vmem %s20, %s670
      %p672 = scmp.lt.s32.totalorder %s32, 1
      %s673 = scalar_select %p672, %s32, 1
      %s674 = smul.addr %s673, 16
      %s675 = smul.addr %s674, 8
      %s676 = scalar_lea.vmem %s21, %s675
      %678 = vst [vmem:[#allocation2] sm:$0xff] 0
      %679 = vst [vmem:[#allocation2 + $0x8] sm:$0xff] 0
      %v680 = vld [vmem:[%s2] sm:$0xf]
      %v681 = vld [vmem:[%s2 + $0x4] sm:$0xf]
      %v682 = vld [vmem:[%s3] sm:$0xff]
      %v683 = vld [vmem:[%s3 + $0x8] sm:$0xff]
      %v684 = vld [vmem:[%s666] sm:$0xff]
      %v685 = vld [vmem:[%s666 + $0x8] sm:$0xff]
      %v686 = vld [vmem:[%s666 + $0x10] sm:$0xff]
      %v687 = vld [vmem:[%s666 + $0x18] sm:$0xff]
      %v688 = vld [vmem:[%s666 + $0x20] sm:$0x33]
      %690 = vset.pattern.permute.xlu0 0
      %691 = vperm.xlu0 %690, %v682
      %v692 = vpop.permute.xlu0 %691
      %695 = vset.pattern.permute.xlu0 0
      %696 = vperm.xlu0 %695, %v683
      %v697 = vpop.permute.xlu0 %696
      %v701 = vunpack.c.l.b16 %v680
      %v702 = vunpack.c.l.b16 %v681
      %v703 = vpack.c.b16 %v702, %v701
      %v709 = vunpack.c.l.b16 %v684
      %v710 = vunpack.c.h.b16 %v684
      %v711 = vunpack.c.l.b16 %v685
      %v712 = vunpack.c.h.b16 %v685
      %v713 = vunpack.c.l.b16 %v686
      %v714 = vunpack.c.h.b16 %v686
      %v715 = vunpack.c.l.b16 %v687
      %v716 = vunpack.c.h.b16 %v687
      %v717 = vunpack.c.l.b16 %v688
      %v718 = vunpack.c.h.b16 %v688
      %v719 = vpack.c.b16 %v711, %v709
      %v720 = vpack.c.b16 %v712, %v710
      %v721 = vpack.c.b16 %v715, %v713
      %v722 = vpack.c.b16 %v716, %v714
      %v723 = vpack.c.b16 %v717, %v717
      %v724 = vpack.c.b16 %v718, %v718
      %vm729 = vcmask 293888
      %v731 = vsel %vm729, %v703, 0
      %vm733 = vcmask 1041408
      %v735 = vsel %vm733, %v723, 0
      %v738 = vsel %vm733, %v724, 0
      %740 = vmatprep.subr.bf16.mxu0 %v720
      %741 = vmatpush1.bf16.msra.mxu0 %v719
      %742 = vmatprep.subr.bf16.mxu0 %v722
      %743 = vmatpush1.bf16.msra.mxu0 %v721
      %744 = vmatprep.subr.bf16.mxu0 %v738
      %745 = vmatpush1.bf16.msra.mxu0 %v735
      %746 = vmatprep.subr.bf16.mxu0 0
      %747 = vmatpush1.bf16.msra.mxu0 0
      %748 = vmatprep.subr.bf16.mxu0 0
      %749 = vmatpush1.bf16.msra.mxu0 0
      %750 = vmatprep.subr.bf16.mxu0 0
      %751 = vmatpush1.bf16.msra.mxu0 0
      %752 = vmatprep.subr.bf16.mxu0 0
      %753 = vmatpush1.bf16.msra.mxu0 0
      %754 = vmatprep.subr.bf16.mxu0 0
      %755 = vmatpush1.bf16.msra.mxu0 0
      %756 = vmatprep.subr.bf16.mxu0 0
      %757 = vmatpush1.bf16.msra.mxu0 0
      %758 = vmatprep.subr.bf16.mxu0 0
      %759 = vmatpush1.bf16.msra.mxu0 0
      %760 = vmatprep.subr.bf16.mxu0 0
      %761 = vmatpush1.bf16.msra.mxu0 0
      %762 = vmatprep.subr.bf16.mxu0 0
      %763 = vmatpush1.bf16.msra.mxu0 0
      %764 = vmatprep.subr.bf16.mxu0 0
      %765 = vmatpush1.bf16.msra.mxu0 0
      %766 = vmatprep.subr.bf16.mxu0 0
      %767 = vmatpush1.bf16.msra.mxu0 0
      %768 = vmatprep.subr.bf16.mxu0 0
      %769 = vmatpush1.bf16.msra.mxu0 0
      %770 = vmatprep.subr.bf16.mxu0 0
      %771 = vmatpush1.bf16.msra.mxu0 0
      %772 = vmatprep.mubr.bf16.mxu0 0
      %773 = vmatmul.mubr.bf16.gmra.mrb[0].mxu0 %v731
      %v774 = vpop.f32.mrb[0].mxu0
      %v775 = vadd.f32 %v692, %v774
      %v776 = vpop.f32.mrb[0].mxu0
      %v777 = vadd.f32 %v692, %v776
      %v778 = vpop.f32.mrb[0].mxu0
      %v779 = vadd.f32 %v697, %v778
      %v780 = vpop.f32.mrb[0].mxu0
      %v781 = vadd.f32 %v697, %v780
      %782 = vdwg.mxu0
      %v783 = vmax.f32 %v775, 0.0
      %v784 = vmax.f32 %v777, 0.0
      %v785 = vmax.f32 %v779, 0.0
      %v786 = vmax.f32 %v781, 0.0
      %v787 = vmin.f32 %v783, 6.0
      %v788 = vmin.f32 %v784, 6.0
      %v789 = vmin.f32 %v785, 6.0
      %v790 = vmin.f32 %v786, 6.0
      %v791 = vpack.c.bf16 %v789, %v787
      %v792 = vpack.c.bf16 %v790, %v788
      %v793 = vld [vmem:[%s4] sm:$0xf]
      %v794 = vld [vmem:[%s5] sm:$0xff]
      %796 = vset.pattern.permute.xlu0 0
      %797 = vperm.xlu0 %796, %v794
      %v798 = vpop.permute.xlu0 %797
      %vm800 = vcmask 130048
      %v802 = vsel %vm800, %v793, 0
      %804 = vmatprep.subr.bf16.mxu0 %v792
      %805 = vmatpush1.bf16.msra.mxu0 %v791
      %806 = vmatprep.subr.bf16.mxu0 0
      %807 = vmatpush1.bf16.msra.mxu0 0
      %808 = vmatprep.subr.bf16.mxu0 0
      %809 = vmatpush1.bf16.msra.mxu0 0
      %810 = vmatprep.subr.bf16.mxu0 0
      %811 = vmatpush1.bf16.msra.mxu0 0
      %812 = vmatprep.subr.bf16.mxu0 0
      %813 = vmatpush1.bf16.msra.mxu0 0
      %814 = vmatprep.subr.bf16.mxu0 0
      %815 = vmatpush1.bf16.msra.mxu0 0
      %816 = vmatprep.subr.bf16.mxu0 0
      %817 = vmatpush1.bf16.msra.mxu0 0
      %818 = vmatprep.subr.bf16.mxu0 0
      %819 = vmatpush1.bf16.msra.mxu0 0
      %820 = vmatprep.subr.bf16.mxu0 0
      %821 = vmatpush1.bf16.msra.mxu0 0
      %822 = vmatprep.subr.bf16.mxu0 0
      %823 = vmatpush1.bf16.msra.mxu0 0
      %824 = vmatprep.subr.bf16.mxu0 0
      %825 = vmatpush1.bf16.msra.mxu0 0
      %826 = vmatprep.subr.bf16.mxu0 0
      %827 = vmatpush1.bf16.msra.mxu0 0
      %828 = vmatprep.subr.bf16.mxu0 0
      %829 = vmatpush1.bf16.msra.mxu0 0
      %830 = vmatprep.subr.bf16.mxu0 0
      %831 = vmatpush1.bf16.msra.mxu0 0
      %832 = vmatprep.subr.bf16.mxu0 0
      %833 = vmatpush1.bf16.msra.mxu0 0
      %834 = vmatprep.subr.bf16.mxu0 0
      %835 = vmatpush1.bf16.msra.mxu0 0
      %836 = vmatprep.mubr.bf16.mxu0 0
      %837 = vmatmul.mubr.bf16.gmra.mrb[0].mxu0 %v802
      %v838 = vpop.f32.mrb[0].mxu0
      %v839 = vadd.f32 %v798, %v838
      %v840 = vpop.f32.mrb[0].mxu0
      %v841 = vadd.f32 %v798, %v840
      %v842 = vpop.f32.mrb[0].mxu0
      %v843 = vpop.f32.mrb[0].mxu0
      %844 = vdwg.mxu0
      %v845 = vmax.f32 %v839, 0.0
      %v846 = vmax.f32 %v841, 0.0
      %v847 = vmin.f32 %v845, 6.0
      %v848 = vmin.f32 %v846, 6.0
      %v849 = vpack.c.bf16 %v847, %v847
      %v850 = vpack.c.bf16 %v848, %v848
      %v851 = vld [vmem:[%s6] sm:$0xf]
      %v852 = vld [vmem:[%s7] sm:$0xff]
      %v855 = vunpack.c.l.b16 %v849
      %v856 = vunpack.c.l.b16 %v850
      %v857 = vpack.c.b16 %v856, %v855
      %859 = vst [vmem:[#allocation2 + $0x4] sm:$0xff] %v857
      %v860 = vld [vmem:[#allocation2] sm:$0xff]
      %v861 = vld [vmem:[#allocation2 + $0x8] sm:$0xf]
      %v862 = vld [vmem:[%s1] sm:$0x3]
      %v865 = vunpack.c.l.s4 1966171168
      %v866 = vunpack.c.0.s8 %v865
      %v867 = vlaneseq
      %v868 = vshrl.u32 %v867, 7
      %v869 = vsub.s32 %v866, %v868
      %v870 = vrot.slane %v862, %v869
      %v871 = vcombine.high %v870, %v870
      %v873 = vunpack.c.l.s4 1966171168
      %v874 = vunpack.c.0.s8 %v873
      %v875 = vlaneseq
      %v876 = vshrl.u32 %v875, 7
      %v877 = vsub.s32 %v874, %v876
      %v878 = vrot.slane %v870, %v877
      %v880 = vunpack.c.l.s4 1966171168
      %v881 = vunpack.c.0.s8 %v880
      %v882 = vlaneseq
      %v883 = vshrl.u32 %v882, 7
      %v884 = vsub.s32 %v881, %v883
      %v885 = vrot.slane %v871, %v884
      %v887 = vpack.i.b16 %v878, %v878
      %v889 = vlaneseq
      %v890 = vshrl.u32 %v889, 7
      %v891 = vsub.s32 0, %v890
      %v892 = vrot.slane %v887, %v891
      %v894 = vpack.i.b16 %v885, %v885
      %v896 = vlaneseq
      %v897 = vshrl.u32 %v896, 7
      %v898 = vsub.s32 0, %v897
      %v899 = vrot.slane %v894, %v898
      %v902 = vunpack.c.l.b16 %v892
      %v903 = vunpack.c.l.b16 %v899
      %v904 = vpack.c.b16 %v903, %v902
      %905 = vrot.lane.b32.xlu0 %v904, 111
      %v906 = vpop.permute.xlu0 %905
      %v907 = vrot.slane %v906, 4
      %vm908 = vcmask 908288
      %v909 = vsel %vm908, %v907, %v906
      %v912 = vmul.bf16 %v860, %v909
      %v913 = vmul.bf16 %v861, %v907
      %916 = vrot.lane.b32.xlu0 %v912, 17
      %v917 = vpop.permute.xlu0 %916
      %918 = vrot.lane.b32.xlu0 %v913, 17
      %v919 = vpop.permute.xlu0 %918
      %v920 = vrot.slane %v917, 4
      %v921 = vrot.slane %v919, 4
      %vm922 = vcmask 1043456
      %v923 = vsel %vm922, %v920, %v921
      %vm924 = vcmask 138240
      %v925 = vsel %vm924, %v917, %v923
      %927 = vst [vmem:[#allocation3] sm:$0xff] %v925
      %v928 = vld [vmem:[#allocation2] sm:$0xff]
      %v929 = vld [vmem:[#allocation2 + $0x8] sm:$0xf]
      %s930 = scalar_lea.vmem %s1, 2
      %v931 = vld [vmem:[%s930] sm:$0x3]
      %v934 = vunpack.c.l.s4 1966171168
      %v935 = vunpack.c.0.s8 %v934
      %v936 = vlaneseq
      %v937 = vshrl.u32 %v936, 7
      %v938 = vsub.s32 %v935, %v937
      %v939 = vrot.slane %v931, %v938
      %v940 = vcombine.high %v939, %v939
      %v942 = vunpack.c.l.s4 1966171168
      %v943 = vunpack.c.0.s8 %v942
      %v944 = vlaneseq
      %v945 = vshrl.u32 %v944, 7
      %v946 = vsub.s32 %v943, %v945
      %v947 = vrot.slane %v939, %v946
      %v949 = vunpack.c.l.s4 1966171168
      %v950 = vunpack.c.0.s8 %v949
      %v951 = vlaneseq
      %v952 = vshrl.u32 %v951, 7
      %v953 = vsub.s32 %v950, %v952
      %v954 = vrot.slane %v940, %v953
      %v956 = vpack.i.b16 %v947, %v947
      %v958 = vlaneseq
      %v959 = vshrl.u32 %v958, 7
      %v960 = vsub.s32 0, %v959
      %v961 = vrot.slane %v956, %v960
      %v963 = vpack.i.b16 %v954, %v954
      %v965 = vlaneseq
      %v966 = vshrl.u32 %v965, 7
      %v967 = vsub.s32 0, %v966
      %v968 = vrot.slane %v963, %v967
      %v971 = vunpack.c.l.b16 %v961
      %v972 = vunpack.c.l.b16 %v968
      %v973 = vpack.c.b16 %v972, %v971
      %974 = vrot.lane.b32.xlu0 %v973, 112
      %v975 = vpop.permute.xlu0 %974
      %v976 = vrot.slane %v975, 4
      %vm977 = vcmask 916480
      %v978 = vsel %vm977, %v976, %v975
      %v981 = vmul.bf16 %v928, %v978
      %v982 = vmul.bf16 %v929, %v976
      %985 = vrot.lane.b32.xlu0 %v981, 16
      %v986 = vpop.permute.xlu0 %985
      %987 = vrot.lane.b32.xlu0 %v982, 16
      %v988 = vpop.permute.xlu0 %987
      %v989 = vrot.slane %v986, 4
      %v990 = vrot.slane %v988, 4
      %v991 = vsel %vm922, %v989, %v990
      %vm992 = vcmask 130048
      %v993 = vsel %vm992, %v986, %v991
      %995 = vst [vmem:[#allocation3 + $0x8] sm:$0xff] %v993
      %v996 = vld [vmem:[#allocation2] sm:$0xff]
      %v997 = vld [vmem:[#allocation2 + $0x8] sm:$0xf]
      %s998 = scalar_lea.vmem %s1, 4
      %v999 = vld [vmem:[%s998] sm:$0x3]
      %v1002 = vunpack.c.l.s4 1966171168
      %v1003 = vunpack.c.0.s8 %v1002
      %v1004 = vlaneseq
      %v1005 = vshrl.u32 %v1004, 7
      %v1006 = vsub.s32 %v1003, %v1005
      %v1007 = vrot.slane %v999, %v1006
      %v1008 = vcombine.high %v1007, %v1007
      %v1010 = vunpack.c.l.s4 1966171168
      %v1011 = vunpack.c.0.s8 %v1010
      %v1012 = vlaneseq
      %v1013 = vshrl.u32 %v1012, 7
      %v1014 = vsub.s32 %v1011, %v1013
      %v1015 = vrot.slane %v1007, %v1014
      %v1017 = vunpack.c.l.s4 1966171168
      %v1018 = vunpack.c.0.s8 %v1017
      %v1019 = vlaneseq
      %v1020 = vshrl.u32 %v1019, 7
      %v1021 = vsub.s32 %v1018, %v1020
      %v1022 = vrot.slane %v1008, %v1021
      %v1024 = vpack.i.b16 %v1015, %v1015
      %v1026 = vlaneseq
      %v1027 = vshrl.u32 %v1026, 7
      %v1028 = vsub.s32 0, %v1027
      %v1029 = vrot.slane %v1024, %v1028
      %v1031 = vpack.i.b16 %v1022, %v1022
      %v1033 = vlaneseq
      %v1034 = vshrl.u32 %v1033, 7
      %v1035 = vsub.s32 0, %v1034
      %v1036 = vrot.slane %v1031, %v1035
      %v1039 = vunpack.c.l.b16 %v1029
      %v1040 = vunpack.c.l.b16 %v1036
      %v1041 = vpack.c.b16 %v1040, %v1039
      %1042 = vrot.lane.b32.xlu0 %v1041, 113
      %v1043 = vpop.permute.xlu0 %1042
      %v1044 = vrot.slane %v1043, 4
      %vm1045 = vcmask 924672
      %v1046 = vsel %vm1045, %v1044, %v1043
      %v1049 = vmul.bf16 %v996, %v1046
      %v1050 = vmul.bf16 %v997, %v1044
      %1053 = vrot.lane.b32.xlu0 %v1049, 15
      %v1054 = vpop.permute.xlu0 %1053
      %1055 = vrot.lane.b32.xlu0 %v1050, 15
      %v1056 = vpop.permute.xlu0 %1055
      %v1057 = vrot.slane %v1054, 4
      %v1058 = vrot.slane %v1056, 4
      %v1059 = vsel %vm922, %v1057, %v1058
      %vm1060 = vcmask 121856
      %v1061 = vsel %vm1060, %v1054, %v1059
      %1063 = vst [vmem:[#allocation3 + $0x10] sm:$0xff] %v1061
      %v1064 = vld [vmem:[#allocation2] sm:$0xff]
      %v1065 = vld [vmem:[#allocation2 + $0x8] sm:$0xf]
      %s1066 = scalar_lea.vmem %s1, 6
      %v1067 = vld [vmem:[%s1066] sm:$0x3]
      %v1070 = vunpack.c.l.s4 1966171168
      %v1071 = vunpack.c.0.s8 %v1070
      %v1072 = vlaneseq
      %v1073 = vshrl.u32 %v1072, 7
      %v1074 = vsub.s32 %v1071, %v1073
      %v1075 = vrot.slane %v1067, %v1074
      %v1076 = vcombine.high %v1075, %v1075
      %v1078 = vunpack.c.l.s4 1966171168
      %v1079 = vunpack.c.0.s8 %v1078
      %v1080 = vlaneseq
      %v1081 = vshrl.u32 %v1080, 7
      %v1082 = vsub.s32 %v1079, %v1081
      %v1083 = vrot.slane %v1075, %v1082
      %v1085 = vunpack.c.l.s4 1966171168
      %v1086 = vunpack.c.0.s8 %v1085
      %v1087 = vlaneseq
      %v1088 = vshrl.u32 %v1087, 7
      %v1089 = vsub.s32 %v1086, %v1088
      %v1090 = vrot.slane %v1076, %v1089
      %v1092 = vpack.i.b16 %v1083, %v1083
      %v1094 = vlaneseq
      %v1095 = vshrl.u32 %v1094, 7
      %v1096 = vsub.s32 0, %v1095
      %v1097 = vrot.slane %v1092, %v1096
      %v1099 = vpack.i.b16 %v1090, %v1090
      %v1101 = vlaneseq
      %v1102 = vshrl.u32 %v1101, 7
      %v1103 = vsub.s32 0, %v1102
      %v1104 = vrot.slane %v1099, %v1103
      %v1107 = vunpack.c.l.b16 %v1097
      %v1108 = vunpack.c.l.b16 %v1104
      %v1109 = vpack.c.b16 %v1108, %v1107
      %1110 = vrot.lane.b32.xlu0 %v1109, 127
      %v1111 = vpop.permute.xlu0 %1110
      %v1112 = vrot.slane %v1111, 4
      %vm1113 = vcmask 1039360
      %v1114 = vsel %vm1113, %v1112, %v1111
      %v1117 = vmul.bf16 %v1064, %v1114
      %v1118 = vmul.bf16 %v1065, %v1112
      %1121 = vrot.lane.b32.xlu0 %v1117, 1
      %v1122 = vpop.permute.xlu0 %1121
      %1123 = vrot.lane.b32.xlu0 %v1118, 1
      %v1124 = vpop.permute.xlu0 %1123
      %v1125 = vrot.slane %v1122, 4
      %v1126 = vrot.slane %v1124, 4
      %v1127 = vsel %vm922, %v1125, %v1126
      %vm1128 = vcmask 7168
      %v1129 = vsel %vm1128, %v1122, %v1127
      %1131 = vst [vmem:[#allocation3 + $0x18] sm:$0xff] %v1129
      %v1132 = vld [vmem:[#allocation2 + $0x4] sm:$0xff]
      %s1133 = scalar_lea.vmem %s1, 8
      %v1134 = vld [vmem:[%s1133] sm:$0x3]
      %v1137 = vunpack.c.l.s4 1966171168
      %v1138 = vunpack.c.0.s8 %v1137
      %v1139 = vlaneseq
      %v1140 = vshrl.u32 %v1139, 7
      %v1141 = vsub.s32 %v1138, %v1140
      %v1142 = vrot.slane %v1134, %v1141
      %v1143 = vcombine.high %v1142, %v1142
      %v1145 = vunpack.c.l.s4 1966171168
      %v1146 = vunpack.c.0.s8 %v1145
      %v1147 = vlaneseq
      %v1148 = vshrl.u32 %v1147, 7
      %v1149 = vsub.s32 %v1146, %v1148
      %v1150 = vrot.slane %v1142, %v1149
      %v1152 = vunpack.c.l.s4 1966171168
      %v1153 = vunpack.c.0.s8 %v1152
      %v1154 = vlaneseq
      %v1155 = vshrl.u32 %v1154, 7
      %v1156 = vsub.s32 %v1153, %v1155
      %v1157 = vrot.slane %v1143, %v1156
      %v1159 = vpack.i.b16 %v1150, %v1150
      %v1161 = vlaneseq
      %v1162 = vshrl.u32 %v1161, 7
      %v1163 = vsub.s32 0, %v1162
      %v1164 = vrot.slane %v1159, %v1163
      %v1166 = vpack.i.b16 %v1157, %v1157
      %v1168 = vlaneseq
      %v1169 = vshrl.u32 %v1168, 7
      %v1170 = vsub.s32 0, %v1169
      %v1171 = vrot.slane %v1166, %v1170
      %v1174 = vunpack.c.l.b16 %v1164
      %v1175 = vunpack.c.l.b16 %v1171
      %v1176 = vpack.c.b16 %v1175, %v1174
      %v1178 = vmul.bf16 %v1132, %v1176
      %1179 = vst [vmem:[#allocation3 + $0x20] sm:$0xff] %v1178
      %v1180 = vld [vmem:[#allocation2 + $0x4] sm:$0xff]
      %v1181 = vld [vmem:[#allocation2 + $0xc] sm:$0xf]
      %s1182 = scalar_lea.vmem %s1, 10
      %v1183 = vld [vmem:[%s1182] sm:$0x3]
      %v1186 = vunpack.c.l.s4 1966171168
      %v1187 = vunpack.c.0.s8 %v1186
      %v1188 = vlaneseq
      %v1189 = vshrl.u32 %v1188, 7
      %v1190 = vsub.s32 %v1187, %v1189
      %v1191 = vrot.slane %v1183, %v1190
      %v1192 = vcombine.high %v1191, %v1191
      %v1194 = vunpack.c.l.s4 1966171168
      %v1195 = vunpack.c.0.s8 %v1194
      %v1196 = vlaneseq
      %v1197 = vshrl.u32 %v1196, 7
      %v1198 = vsub.s32 %v1195, %v1197
      %v1199 = vrot.slane %v1191, %v1198
      %v1201 = vunpack.c.l.s4 1966171168
      %v1202 = vunpack.c.0.s8 %v1201
      %v1203 = vlaneseq
      %v1204 = vshrl.u32 %v1203, 7
      %v1205 = vsub.s32 %v1202, %v1204
      %v1206 = vrot.slane %v1192, %v1205
      %v1208 = vpack.i.b16 %v1199, %v1199
      %v1210 = vlaneseq
      %v1211 = vshrl.u32 %v1210, 7
      %v1212 = vsub.s32 0, %v1211
      %v1213 = vrot.slane %v1208, %v1212
      %v1215 = vpack.i.b16 %v1206, %v1206
      %v1217 = vlaneseq
      %v1218 = vshrl.u32 %v1217, 7
      %v1219 = vsub.s32 0, %v1218
      %v1220 = vrot.slane %v1215, %v1219
      %v1223 = vunpack.c.l.b16 %v1213
      %v1224 = vunpack.c.l.b16 %v1220
      %v1225 = vpack.c.b16 %v1224, %v1223
      %1226 = vrot.lane.b32.xlu0 %v1225, 1
      %v1227 = vpop.permute.xlu0 %1226
      %v1228 = vrot.slane %v1227, 4
      %v1229 = vsel %vm1128, %v1228, %v1227
      %v1232 = vmul.bf16 %v1180, %v1229
      %v1233 = vmul.bf16 %v1181, %v1228
      %1236 = vrot.lane.b32.xlu0 %v1232, 127
      %v1237 = vpop.permute.xlu0 %1236
      %1238 = vrot.lane.b32.xlu0 %v1233, 127
      %v1239 = vpop.permute.xlu0 %1238
      %v1240 = vrot.slane %v1237, 4
      %v1241 = vrot.slane %v1239, 4
      %v1242 = vsel %vm922, %v1240, %v1241
      %v1243 = vsel %vm1113, %v1237, %v1242
      %1245 = vst [vmem:[#allocation3 + $0x28] sm:$0xff] %v1243
      %v1246 = vld [vmem:[#allocation2 + $0x4] sm:$0xff]
      %v1247 = vld [vmem:[#allocation2 + $0xc] sm:$0xf]
      %s1248 = scalar_lea.vmem %s1, 12
      %v1249 = vld [vmem:[%s1248] sm:$0x3]
      %v1252 = vunpack.c.l.s4 1966171168
      %v1253 = vunpack.c.0.s8 %v1252
      %v1254 = vlaneseq
      %v1255 = vshrl.u32 %v1254, 7
      %v1256 = vsub.s32 %v1253, %v1255
      %v1257 = vrot.slane %v1249, %v1256
      %v1258 = vcombine.high %v1257, %v1257
      %v1260 = vunpack.c.l.s4 1966171168
      %v1261 = vunpack.c.0.s8 %v1260
      %v1262 = vlaneseq
      %v1263 = vshrl.u32 %v1262, 7
      %v1264 = vsub.s32 %v1261, %v1263
      %v1265 = vrot.slane %v1257, %v1264
      %v1267 = vunpack.c.l.s4 1966171168
      %v1268 = vunpack.c.0.s8 %v1267
      %v1269 = vlaneseq
      %v1270 = vshrl.u32 %v1269, 7
      %v1271 = vsub.s32 %v1268, %v1270
      %v1272 = vrot.slane %v1258, %v1271
      %v1274 = vpack.i.b16 %v1265, %v1265
      %v1276 = vlaneseq
      %v1277 = vshrl.u32 %v1276, 7
      %v1278 = vsub.s32 0, %v1277
      %v1279 = vrot.slane %v1274, %v1278
      %v1281 = vpack.i.b16 %v1272, %v1272
      %v1283 = vlaneseq
      %v1284 = vshrl.u32 %v1283, 7
      %v1285 = vsub.s32 0, %v1284
      %v1286 = vrot.slane %v1281, %v1285
      %v1289 = vunpack.c.l.b16 %v1279
      %v1290 = vunpack.c.l.b16 %v1286
      %v1291 = vpack.c.b16 %v1290, %v1289
      %1292 = vrot.lane.b32.xlu0 %v1291, 15
      %v1293 = vpop.permute.xlu0 %1292
      %v1294 = vrot.slane %v1293, 4
      %v1295 = vsel %vm1060, %v1294, %v1293
      %v1298 = vmul.bf16 %v1246, %v1295
      %v1299 = vmul.bf16 %v1247, %v1294
      %1302 = vrot.lane.b32.xlu0 %v1298, 113
      %v1303 = vpop.permute.xlu0 %1302
      %1304 = vrot.lane.b32.xlu0 %v1299, 113
      %v1305 = vpop.permute.xlu0 %1304
      %v1306 = vrot.slane %v1303, 4
      %v1307 = vrot.slane %v1305, 4
      %v1308 = vsel %vm922, %v1306, %v1307
      %v1309 = vsel %vm1045, %v1303, %v1308
      %1311 = vst [vmem:[#allocation3 + $0x30] sm:$0xff] %v1309
      %v1312 = vld [vmem:[#allocation2 + $0x4] sm:$0xff]
      %v1313 = vld [vmem:[#allocation2 + $0xc] sm:$0xf]
      %s1314 = scalar_lea.vmem %s1, 14
      %v1315 = vld [vmem:[%s1314] sm:$0x3]
      %v1318 = vunpack.c.l.s4 1966171168
      %v1319 = vunpack.c.0.s8 %v1318
      %v1320 = vlaneseq
      %v1321 = vshrl.u32 %v1320, 7
      %v1322 = vsub.s32 %v1319, %v1321
      %v1323 = vrot.slane %v1315, %v1322
      %v1324 = vcombine.high %v1323, %v1323
      %v1326 = vunpack.c.l.s4 1966171168
      %v1327 = vunpack.c.0.s8 %v1326
      %v1328 = vlaneseq
      %v1329 = vshrl.u32 %v1328, 7
      %v1330 = vsub.s32 %v1327, %v1329
      %v1331 = vrot.slane %v1323, %v1330
      %v1333 = vunpack.c.l.s4 1966171168
      %v1334 = vunpack.c.0.s8 %v1333
      %v1335 = vlaneseq
      %v1336 = vshrl.u32 %v1335, 7
      %v1337 = vsub.s32 %v1334, %v1336
      %v1338 = vrot.slane %v1324, %v1337
      %v1340 = vpack.i.b16 %v1331, %v1331
      %v1342 = vlaneseq
      %v1343 = vshrl.u32 %v1342, 7
      %v1344 = vsub.s32 0, %v1343
      %v1345 = vrot.slane %v1340, %v1344
      %v1347 = vpack.i.b16 %v1338, %v1338
      %v1349 = vlaneseq
      %v1350 = vshrl.u32 %v1349, 7
      %v1351 = vsub.s32 0, %v1350
      %v1352 = vrot.slane %v1347, %v1351
      %v1355 = vunpack.c.l.b16 %v1345
      %v1356 = vunpack.c.l.b16 %v1352
      %v1357 = vpack.c.b16 %v1356, %v1355
      %1358 = vrot.lane.b32.xlu0 %v1357, 16
      %v1359 = vpop.permute.xlu0 %1358
      %v1360 = vrot.slane %v1359, 4
      %v1361 = vsel %vm992, %v1360, %v1359
      %v1364 = vmul.bf16 %v1312, %v1361
      %v1365 = vmul.bf16 %v1313, %v1360
      %1368 = vrot.lane.b32.xlu0 %v1364, 112
      %v1369 = vpop.permute.xlu0 %1368
      %1370 = vrot.lane.b32.xlu0 %v1365, 112
      %v1371 = vpop.permute.xlu0 %1370
      %v1372 = vrot.slane %v1369, 4
      %v1373 = vrot.slane %v1371, 4
      %v1374 = vsel %vm922, %v1372, %v1373
      %v1375 = vsel %vm977, %v1369, %v1374
      %1377 = vst [vmem:[#allocation3 + $0x38] sm:$0xff] %v1375
      %v1378 = vld [vmem:[#allocation2 + $0x4] sm:$0xff]
      %v1379 = vld [vmem:[#allocation2 + $0xc] sm:$0xf]
      %s1380 = scalar_lea.vmem %s1, 16
      %v1381 = vld [vmem:[%s1380] sm:$0x3]
      %v1384 = vunpack.c.l.s4 1966171168
      %v1385 = vunpack.c.0.s8 %v1384
      %v1386 = vlaneseq
      %v1387 = vshrl.u32 %v1386, 7
      %v1388 = vsub.s32 %v1385, %v1387
      %v1389 = vrot.slane %v1381, %v1388
      %v1390 = vcombine.high %v1389, %v1389
      %v1392 = vunpack.c.l.s4 1966171168
      %v1393 = vunpack.c.0.s8 %v1392
      %v1394 = vlaneseq
      %v1395 = vshrl.u32 %v1394, 7
      %v1396 = vsub.s32 %v1393, %v1395
      %v1397 = vrot.slane %v1389, %v1396
      %v1399 = vunpack.c.l.s4 1966171168
      %v1400 = vunpack.c.0.s8 %v1399
      %v1401 = vlaneseq
      %v1402 = vshrl.u32 %v1401, 7
      %v1403 = vsub.s32 %v1400, %v1402
      %v1404 = vrot.slane %v1390, %v1403
      %v1406 = vpack.i.b16 %v1397, %v1397
      %v1408 = vlaneseq
      %v1409 = vshrl.u32 %v1408, 7
      %v1410 = vsub.s32 0, %v1409
      %v1411 = vrot.slane %v1406, %v1410
      %v1413 = vpack.i.b16 %v1404, %v1404
      %v1415 = vlaneseq
      %v1416 = vshrl.u32 %v1415, 7
      %v1417 = vsub.s32 0, %v1416
      %v1418 = vrot.slane %v1413, %v1417
      %v1421 = vunpack.c.l.b16 %v1411
      %v1422 = vunpack.c.l.b16 %v1418
      %v1423 = vpack.c.b16 %v1422, %v1421
      %1424 = vrot.lane.b32.xlu0 %v1423, 17
      %v1425 = vpop.permute.xlu0 %1424
      %v1426 = vrot.slane %v1425, 4
      %v1427 = vsel %vm924, %v1426, %v1425
      %v1430 = vmul.bf16 %v1378, %v1427
      %v1431 = vmul.bf16 %v1379, %v1426
      %1434 = vrot.lane.b32.xlu0 %v1430, 111
      %v1435 = vpop.permute.xlu0 %1434
      %1436 = vrot.lane.b32.xlu0 %v1431, 111
      %v1437 = vpop.permute.xlu0 %1436
      %v1438 = vrot.slane %v1435, 4
      %v1439 = vrot.slane %v1437, 4
      %v1440 = vsel %vm922, %v1438, %v1439
      %v1441 = vsel %vm908, %v1435, %v1440
      %1443 = vst [vmem:[#allocation3 + $0x40] sm:$0xff] %v1441
      %v1444 = vld [vmem:[#allocation3] sm:$0xff]
      %v1445 = vld [vmem:[#allocation3 + $0x8] sm:$0xff]
      %v1446 = vld [vmem:[#allocation3 + $0x10] sm:$0xff]
      %v1447 = vld [vmem:[#allocation3 + $0x18] sm:$0xff]
      %v1448 = vld [vmem:[#allocation3 + $0x20] sm:$0xff]
      %v1449 = vld [vmem:[#allocation3 + $0x28] sm:$0xff]
      %v1450 = vld [vmem:[#allocation3 + $0x30] sm:$0xff]
      %v1451 = vld [vmem:[#allocation3 + $0x38] sm:$0xff]
      %v1452 = vld [vmem:[#allocation3 + $0x40] sm:$0xff]
      %1454 = vset.pattern.permute.xlu0 0
      %1455 = vperm.xlu0 %1454, %v852
      %v1456 = vpop.permute.xlu0 %1455
      %v1467 = vunpack.c.l.b16 %v1444
      %v1468 = vunpack.c.h.b16 %v1444
      %v1469 = vunpack.c.l.b16 %v1445
      %v1470 = vunpack.c.h.b16 %v1445
      %v1471 = vunpack.c.l.b16 %v1446
      %v1472 = vunpack.c.h.b16 %v1446
      %v1473 = vunpack.c.l.b16 %v1447
      %v1474 = vunpack.c.h.b16 %v1447
      %v1475 = vunpack.c.l.b16 %v1448
      %v1476 = vunpack.c.h.b16 %v1448
      %v1477 = vunpack.c.l.b16 %v1449
      %v1478 = vunpack.c.h.b16 %v1449
      %v1479 = vunpack.c.l.b16 %v1450
      %v1480 = vunpack.c.h.b16 %v1450
      %v1481 = vunpack.c.l.b16 %v1451
      %v1482 = vunpack.c.h.b16 %v1451
      %v1483 = vunpack.c.l.b16 %v1452
      %v1484 = vunpack.c.h.b16 %v1452
      %v1485 = vpack.c.b16 %v1469, %v1467
      %v1486 = vpack.c.b16 %v1470, %v1468
      %v1487 = vpack.c.b16 %v1473, %v1471
      %v1488 = vpack.c.b16 %v1474, %v1472
      %v1489 = vpack.c.b16 %v1477, %v1475
      %v1490 = vpack.c.b16 %v1478, %v1476
      %v1491 = vpack.c.b16 %v1481, %v1479
      %v1492 = vpack.c.b16 %v1482, %v1480
      %v1493 = vpack.c.b16 %v1483, %v1483
      %v1494 = vpack.c.b16 %v1484, %v1484
      %vm1503 = vcmask 588800
      %v1505 = vsel %vm1503, %v851, 0
      %vm1507 = vcmask 1043456
      %v1509 = vsel %vm1507, %v1493, 0
      %v1512 = vsel %vm1507, %v1494, 0
      %1514 = vmatprep.subr.bf16.mxu0 %v1486
      %1515 = vmatpush1.bf16.msra.mxu0 %v1485
      %1516 = vmatprep.subr.bf16.mxu0 %v1488
      %1517 = vmatpush1.bf16.msra.mxu0 %v1487
      %1518 = vmatprep.subr.bf16.mxu0 %v1490
      %1519 = vmatpush1.bf16.msra.mxu0 %v1489
      %1520 = vmatprep.subr.bf16.mxu0 %v1492
      %1521 = vmatpush1.bf16.msra.mxu0 %v1491
      %1522 = vmatprep.subr.bf16.mxu0 %v1512
      %1523 = vmatpush1.bf16.msra.mxu0 %v1509
      %1524 = vmatprep.subr.bf16.mxu0 0
      %1525 = vmatpush1.bf16.msra.mxu0 0
      %1526 = vmatprep.subr.bf16.mxu0 0
      %1527 = vmatpush1.bf16.msra.mxu0 0
      %1528 = vmatprep.subr.bf16.mxu0 0
      %1529 = vmatpush1.bf16.msra.mxu0 0
      %1530 = vmatprep.subr.bf16.mxu0 0
      %1531 = vmatpush1.bf16.msra.mxu0 0
      %1532 = vmatprep.subr.bf16.mxu0 0
      %1533 = vmatpush1.bf16.msra.mxu0 0
      %1534 = vmatprep.subr.bf16.mxu0 0
      %1535 = vmatpush1.bf16.msra.mxu0 0
      %1536 = vmatprep.subr.bf16.mxu0 0
      %1537 = vmatpush1.bf16.msra.mxu0 0
      %1538 = vmatprep.subr.bf16.mxu0 0
      %1539 = vmatpush1.bf16.msra.mxu0 0
      %1540 = vmatprep.subr.bf16.mxu0 0
      %1541 = vmatpush1.bf16.msra.mxu0 0
      %1542 = vmatprep.subr.bf16.mxu0 0
      %1543 = vmatpush1.bf16.msra.mxu0 0
      %1544 = vmatprep.subr.bf16.mxu0 0
      %1545 = vmatpush1.bf16.msra.mxu0 0
      %1546 = vmatprep.mubr.bf16.mxu0 0
      %1547 = vmatmul.mubr.bf16.gmra.mrb[0].mxu0 %v1505
      %v1548 = vpop.f32.mrb[0].mxu0
      %v1549 = vadd.f32 %v1456, %v1548
      %v1550 = vpop.f32.mrb[0].mxu0
      %v1551 = vadd.f32 %v1456, %v1550
      %v1552 = vpop.f32.mrb[0].mxu0
      %v1553 = vpop.f32.mrb[0].mxu0
      %1554 = vdwg.mxu0
      %v1555 = vmax.f32 %v1549, 0.0
      %v1556 = vmax.f32 %v1551, 0.0
      %v1557 = vmin.f32 %v1555, 6.0
      %v1558 = vmin.f32 %v1556, 6.0
      %v1559 = vpack.c.bf16 %v1557, %v1557
      %v1560 = vpack.c.bf16 %v1558, %v1558
      %v1561 = vld [vmem:[%s8] sm:$0xf]
      %v1562 = vld [vmem:[%s8 + $0x4] sm:$0xf]
      %v1563 = vld [vmem:[%s9] sm:$0xff]
      %v1564 = vld [vmem:[%s9 + $0x8] sm:$0xff]
      %1566 = vset.pattern.permute.xlu0 0
      %1567 = vperm.xlu0 %1566, %v1563
      %v1568 = vpop.permute.xlu0 %1567
      %1571 = vset.pattern.permute.xlu0 0
      %1572 = vperm.xlu0 %1571, %v1564
      %v1573 = vpop.permute.xlu0 %1572
      %v1577 = vunpack.c.l.b16 %v1561
      %v1578 = vunpack.c.l.b16 %v1562
      %v1579 = vpack.c.b16 %v1578, %v1577
      %vm1580 = vcmask 64512
      %v1582 = vsel %vm1580, %v1579, 0
      %v1585 = vsel %vm1507, %v1559, 0
      %v1588 = vsel %vm1507, %v1560, 0
      %1590 = vmatprep.subr.bf16.mxu0 %v1588
      %1591 = vmatpush1.bf16.msra.mxu0 %v1585
      %1592 = vmatprep.subr.bf16.mxu0 0
      %1593 = vmatpush1.bf16.msra.mxu0 0
      %1594 = vmatprep.subr.bf16.mxu0 0
      %1595 = vmatpush1.bf16.msra.mxu0 0
      %1596 = vmatprep.subr.bf16.mxu0 0
      %1597 = vmatpush1.bf16.msra.mxu0 0
      %1598 = vmatprep.subr.bf16.mxu0 0
      %1599 = vmatpush1.bf16.msra.mxu0 0
      %1600 = vmatprep.subr.bf16.mxu0 0
      %1601 = vmatpush1.bf16.msra.mxu0 0
      %1602 = vmatprep.subr.bf16.mxu0 0
      %1603 = vmatpush1.bf16.msra.mxu0 0
      %1604 = vmatprep.subr.bf16.mxu0 0
      %1605 = vmatpush1.bf16.msra.mxu0 0
      %1606 = vmatprep.subr.bf16.mxu0 0
      %1607 = vmatpush1.bf16.msra.mxu0 0
      %1608 = vmatprep.subr.bf16.mxu0 0
      %1609 = vmatpush1.bf16.msra.mxu0 0
      %1610 = vmatprep.subr.bf16.mxu0 0
      %1611 = vmatpush1.bf16.msra.mxu0 0
      %1612 = vmatprep.subr.bf16.mxu0 0
      %1613 = vmatpush1.bf16.msra.mxu0 0
      %1614 = vmatprep.subr.bf16.mxu0 0
      %1615 = vmatpush1.bf16.msra.mxu0 0
      %1616 = vmatprep.subr.bf16.mxu0 0
      %1617 = vmatpush1.bf16.msra.mxu0 0
      %1618 = vmatprep.subr.bf16.mxu0 0
      %1619 = vmatpush1.bf16.msra.mxu0 0
      %1620 = vmatprep.subr.bf16.mxu0 0
      %1621 = vmatpush1.bf16.msra.mxu0 0
      %1622 = vmatprep.mubr.bf16.mxu0 0
      %1623 = vmatmul.mubr.bf16.gmra.mrb[0].mxu0 %v1582
      %v1624 = vpop.f32.mrb[0].mxu0
      %v1625 = vadd.f32 %v1568, %v1624
      %v1626 = vpop.f32.mrb[0].mxu0
      %v1627 = vadd.f32 %v1568, %v1626
      %v1628 = vpop.f32.mrb[0].mxu0
      %v1629 = vadd.f32 %v1573, %v1628
      %v1630 = vpop.f32.mrb[0].mxu0
      %v1631 = vadd.f32 %v1573, %v1630
      %1632 = vdwg.mxu0
      %v1633 = vunpack.c.l.bf16 %v791
      %v1634 = vunpack.c.l.bf16 %v792
      %v1635 = vunpack.c.h.bf16 %v791
      %v1636 = vunpack.c.h.bf16 %v792
      %v1637 = vadd.f32 %v1625, %v1633
      %v1638 = vadd.f32 %v1627, %v1634
      %v1639 = vadd.f32 %v1629, %v1635
      %v1640 = vadd.f32 %v1631, %v1636
      %v1641 = vpack.c.bf16 %v1639, %v1637
      %v1642 = vpack.c.bf16 %v1640, %v1638
      %v1643 = vld [vmem:[%s10] sm:$0xf]
      %v1644 = vld [vmem:[%s11] sm:$0xff]
      %1646 = vset.pattern.permute.xlu0 0
      %1647 = vperm.xlu0 %1646, %v1644
      %v1648 = vpop.permute.xlu0 %1647
      %v1651 = vsel %vm800, %v1643, 0
      %1653 = vmatprep.subr.bf16.mxu0 %v1642
      %1654 = vmatpush1.bf16.msra.mxu0 %v1641
      %1655 = vmatprep.subr.bf16.mxu0 0
      %1656 = vmatpush1.bf16.msra.mxu0 0
      %1657 = vmatprep.subr.bf16.mxu0 0
      %1658 = vmatpush1.bf16.msra.mxu0 0
      %1659 = vmatprep.subr.bf16.mxu0 0
      %1660 = vmatpush1.bf16.msra.mxu0 0
      %1661 = vmatprep.subr.bf16.mxu0 0
      %1662 = vmatpush1.bf16.msra.mxu0 0
      %1663 = vmatprep.subr.bf16.mxu0 0
      %1664 = vmatpush1.bf16.msra.mxu0 0
      %1665 = vmatprep.subr.bf16.mxu0 0
      %1666 = vmatpush1.bf16.msra.mxu0 0
      %1667 = vmatprep.subr.bf16.mxu0 0
      %1668 = vmatpush1.bf16.msra.mxu0 0
      %1669 = vmatprep.subr.bf16.mxu0 0
      %1670 = vmatpush1.bf16.msra.mxu0 0
      %1671 = vmatprep.subr.bf16.mxu0 0
      %1672 = vmatpush1.bf16.msra.mxu0 0
      %1673 = vmatprep.subr.bf16.mxu0 0
      %1674 = vmatpush1.bf16.msra.mxu0 0
      %1675 = vmatprep.subr.bf16.mxu0 0
      %1676 = vmatpush1.bf16.msra.mxu0 0
      %1677 = vmatprep.subr.bf16.mxu0 0
      %1678 = vmatpush1.bf16.msra.mxu0 0
      %1679 = vmatprep.subr.bf16.mxu0 0
      %1680 = vmatpush1.bf16.msra.mxu0 0
      %1681 = vmatprep.subr.bf16.mxu0 0
      %1682 = vmatpush1.bf16.msra.mxu0 0
      %1683 = vmatprep.subr.bf16.mxu0 0
      %1684 = vmatpush1.bf16.msra.mxu0 0
      %1685 = vmatprep.mubr.bf16.mxu0 0
      %1686 = vmatmul.mubr.bf16.gmra.mrb[0].mxu0 %v1651
      %v1687 = vpop.f32.mrb[0].mxu0
      %v1688 = vadd.f32 %v1648, %v1687
      %v1689 = vpop.f32.mrb[0].mxu0
      %v1690 = vadd.f32 %v1648, %v1689
      %v1691 = vpop.f32.mrb[0].mxu0
      %v1692 = vpop.f32.mrb[0].mxu0
      %1693 = vdwg.mxu0
      %v1694 = vmax.f32 %v1688, 0.0
      %v1695 = vmax.f32 %v1690, 0.0
      %v1696 = vmin.f32 %v1694, 6.0
      %v1697 = vmin.f32 %v1695, 6.0
      %v1698 = vpack.c.bf16 %v1696, %v1696
      %v1699 = vpack.c.bf16 %v1697, %v1697
      %v1700 = vld [vmem:[%s12] sm:$0xf]
      %v1701 = vld [vmem:[%s13] sm:$0xff]
      %v1704 = vunpack.c.l.b16 %v1698
      %v1705 = vunpack.c.l.b16 %v1699
      %v1706 = vpack.c.b16 %v1705, %v1704
      %1708 = vst [vmem:[#allocation2 + $0x4] sm:$0xff] %v1706
      %v1709 = vld [vmem:[#allocation2] sm:$0xff]
      %v1710 = vld [vmem:[#allocation2 + $0x8] sm:$0xf]
      %v1711 = vld [vmem:[%s1] sm:$0x3]
      %v1714 = vunpack.c.l.s4 1966171168
      %v1715 = vunpack.c.0.s8 %v1714
      %v1716 = vlaneseq
      %v1717 = vshrl.u32 %v1716, 7
      %v1718 = vsub.s32 %v1715, %v1717
      %v1719 = vrot.slane %v1711, %v1718
      %v1720 = vcombine.high %v1719, %v1719
      %v1722 = vunpack.c.l.s4 1966171168
      %v1723 = vunpack.c.0.s8 %v1722
      %v1724 = vlaneseq
      %v1725 = vshrl.u32 %v1724, 7
      %v1726 = vsub.s32 %v1723, %v1725
      %v1727 = vrot.slane %v1719, %v1726
      %v1729 = vunpack.c.l.s4 1966171168
      %v1730 = vunpack.c.0.s8 %v1729
      %v1731 = vlaneseq
      %v1732 = vshrl.u32 %v1731, 7
      %v1733 = vsub.s32 %v1730, %v1732
      %v1734 = vrot.slane %v1720, %v1733
      %v1736 = vpack.i.b16 %v1727, %v1727
      %v1738 = vlaneseq
      %v1739 = vshrl.u32 %v1738, 7
      %v1740 = vsub.s32 0, %v1739
      %v1741 = vrot.slane %v1736, %v1740
      %v1743 = vpack.i.b16 %v1734, %v1734
      %v1745 = vlaneseq
      %v1746 = vshrl.u32 %v1745, 7
      %v1747 = vsub.s32 0, %v1746
      %v1748 = vrot.slane %v1743, %v1747
      %v1751 = vunpack.c.l.b16 %v1741
      %v1752 = vunpack.c.l.b16 %v1748
      %v1753 = vpack.c.b16 %v1752, %v1751
      %1754 = vrot.lane.b32.xlu0 %v1753, 111
      %v1755 = vpop.permute.xlu0 %1754
      %v1756 = vrot.slane %v1755, 4
      %v1757 = vsel %vm908, %v1756, %v1755
      %v1760 = vmul.bf16 %v1709, %v1757
      %v1761 = vmul.bf16 %v1710, %v1756
      %1764 = vrot.lane.b32.xlu0 %v1760, 17
      %v1765 = vpop.permute.xlu0 %1764
      %1766 = vrot.lane.b32.xlu0 %v1761, 17
      %v1767 = vpop.permute.xlu0 %1766
      %v1768 = vrot.slane %v1765, 4
      %v1769 = vrot.slane %v1767, 4
      %v1770 = vsel %vm922, %v1768, %v1769
      %v1771 = vsel %vm924, %v1765, %v1770
      %1773 = vst [vmem:[#allocation3] sm:$0xff] %v1771
      %v1774 = vld [vmem:[#allocation2] sm:$0xff]
      %v1775 = vld [vmem:[#allocation2 + $0x8] sm:$0xf]
      %v1776 = vld [vmem:[%s930] sm:$0x3]
      %v1779 = vunpack.c.l.s4 1966171168
      %v1780 = vunpack.c.0.s8 %v1779
      %v1781 = vlaneseq
      %v1782 = vshrl.u32 %v1781, 7
      %v1783 = vsub.s32 %v1780, %v1782
      %v1784 = vrot.slane %v1776, %v1783
      %v1785 = vcombine.high %v1784, %v1784
      %v1787 = vunpack.c.l.s4 1966171168
      %v1788 = vunpack.c.0.s8 %v1787
      %v1789 = vlaneseq
      %v1790 = vshrl.u32 %v1789, 7
      %v1791 = vsub.s32 %v1788, %v1790
      %v1792 = vrot.slane %v1784, %v1791
      %v1794 = vunpack.c.l.s4 1966171168
      %v1795 = vunpack.c.0.s8 %v1794
      %v1796 = vlaneseq
      %v1797 = vshrl.u32 %v1796, 7
      %v1798 = vsub.s32 %v1795, %v1797
      %v1799 = vrot.slane %v1785, %v1798
      %v1801 = vpack.i.b16 %v1792, %v1792
      %v1803 = vlaneseq
      %v1804 = vshrl.u32 %v1803, 7
      %v1805 = vsub.s32 0, %v1804
      %v1806 = vrot.slane %v1801, %v1805
      %v1808 = vpack.i.b16 %v1799, %v1799
      %v1810 = vlaneseq
      %v1811 = vshrl.u32 %v1810, 7
      %v1812 = vsub.s32 0, %v1811
      %v1813 = vrot.slane %v1808, %v1812
      %v1816 = vunpack.c.l.b16 %v1806
      %v1817 = vunpack.c.l.b16 %v1813
      %v1818 = vpack.c.b16 %v1817, %v1816
      %1819 = vrot.lane.b32.xlu0 %v1818, 112
      %v1820 = vpop.permute.xlu0 %1819
      %v1821 = vrot.slane %v1820, 4
      %v1822 = vsel %vm977, %v1821, %v1820
      %v1825 = vmul.bf16 %v1774, %v1822
      %v1826 = vmul.bf16 %v1775, %v1821
      %1829 = vrot.lane.b32.xlu0 %v1825, 16
      %v1830 = vpop.permute.xlu0 %1829
      %1831 = vrot.lane.b32.xlu0 %v1826, 16
      %v1832 = vpop.permute.xlu0 %1831
      %v1833 = vrot.slane %v1830, 4
      %v1834 = vrot.slane %v1832, 4
      %v1835 = vsel %vm922, %v1833, %v1834
      %v1836 = vsel %vm992, %v1830, %v1835
      %1838 = vst [vmem:[#allocation3 + $0x8] sm:$0xff] %v1836
      %v1839 = vld [vmem:[#allocation2] sm:$0xff]
      %v1840 = vld [vmem:[#allocation2 + $0x8] sm:$0xf]
      %v1841 = vld [vmem:[%s998] sm:$0x3]
      %v1844 = vunpack.c.l.s4 1966171168
      %v1845 = vunpack.c.0.s8 %v1844
      %v1846 = vlaneseq
      %v1847 = vshrl.u32 %v1846, 7
      %v1848 = vsub.s32 %v1845, %v1847
      %v1849 = vrot.slane %v1841, %v1848
      %v1850 = vcombine.high %v1849, %v1849
      %v1852 = vunpack.c.l.s4 1966171168
      %v1853 = vunpack.c.0.s8 %v1852
      %v1854 = vlaneseq
      %v1855 = vshrl.u32 %v1854, 7
      %v1856 = vsub.s32 %v1853, %v1855
      %v1857 = vrot.slane %v1849, %v1856
      %v1859 = vunpack.c.l.s4 1966171168
      %v1860 = vunpack.c.0.s8 %v1859
      %v1861 = vlaneseq
      %v1862 = vshrl.u32 %v1861, 7
      %v1863 = vsub.s32 %v1860, %v1862
      %v1864 = vrot.slane %v1850, %v1863
      %v1866 = vpack.i.b16 %v1857, %v1857
      %v1868 = vlaneseq
      %v1869 = vshrl.u32 %v1868, 7
      %v1870 = vsub.s32 0, %v1869
      %v1871 = vrot.slane %v1866, %v1870
      %v1873 = vpack.i.b16 %v1864, %v1864
      %v1875 = vlaneseq
      %v1876 = vshrl.u32 %v1875, 7
      %v1877 = vsub.s32 0, %v1876
      %v1878 = vrot.slane %v1873, %v1877
      %v1881 = vunpack.c.l.b16 %v1871
      %v1882 = vunpack.c.l.b16 %v1878
      %v1883 = vpack.c.b16 %v1882, %v1881
      %1884 = vrot.lane.b32.xlu0 %v1883, 113
      %v1885 = vpop.permute.xlu0 %1884
      %v1886 = vrot.slane %v1885, 4
      %v1887 = vsel %vm1045, %v1886, %v1885
      %v1890 = vmul.bf16 %v1839, %v1887
      %v1891 = vmul.bf16 %v1840, %v1886
      %1894 = vrot.lane.b32.xlu0 %v1890, 15
      %v1895 = vpop.permute.xlu0 %1894
      %1896 = vrot.lane.b32.xlu0 %v1891, 15
      %v1897 = vpop.permute.xlu0 %1896
      %v1898 = vrot.slane %v1895, 4
      %v1899 = vrot.slane %v1897, 4
      %v1900 = vsel %vm922, %v1898, %v1899
      %v1901 = vsel %vm1060, %v1895, %v1900
      %1903 = vst [vmem:[#allocation3 + $0x10] sm:$0xff] %v1901
      %v1904 = vld [vmem:[#allocation2] sm:$0xff]
      %v1905 = vld [vmem:[#allocation2 + $0x8] sm:$0xf]
      %v1906 = vld [vmem:[%s1066] sm:$0x3]
      %v1909 = vunpack.c.l.s4 1966171168
      %v1910 = vunpack.c.0.s8 %v1909
      %v1911 = vlaneseq
      %v1912 = vshrl.u32 %v1911, 7
      %v1913 = vsub.s32 %v1910, %v1912
      %v1914 = vrot.slane %v1906, %v1913
      %v1915 = vcombine.high %v1914, %v1914
      %v1917 = vunpack.c.l.s4 1966171168
      %v1918 = vunpack.c.0.s8 %v1917
      %v1919 = vlaneseq
      %v1920 = vshrl.u32 %v1919, 7
      %v1921 = vsub.s32 %v1918, %v1920
      %v1922 = vrot.slane %v1914, %v1921
      %v1924 = vunpack.c.l.s4 1966171168
      %v1925 = vunpack.c.0.s8 %v1924
      %v1926 = vlaneseq
      %v1927 = vshrl.u32 %v1926, 7
      %v1928 = vsub.s32 %v1925, %v1927
      %v1929 = vrot.slane %v1915, %v1928
      %v1931 = vpack.i.b16 %v1922, %v1922
      %v1933 = vlaneseq
      %v1934 = vshrl.u32 %v1933, 7
      %v1935 = vsub.s32 0, %v1934
      %v1936 = vrot.slane %v1931, %v1935
      %v1938 = vpack.i.b16 %v1929, %v1929
      %v1940 = vlaneseq
      %v1941 = vshrl.u32 %v1940, 7
      %v1942 = vsub.s32 0, %v1941
      %v1943 = vrot.slane %v1938, %v1942
      %v1946 = vunpack.c.l.b16 %v1936
      %v1947 = vunpack.c.l.b16 %v1943
      %v1948 = vpack.c.b16 %v1947, %v1946
      %1949 = vrot.lane.b32.xlu0 %v1948, 127
      %v1950 = vpop.permute.xlu0 %1949
      %v1951 = vrot.slane %v1950, 4
      %v1952 = vsel %vm1113, %v1951, %v1950
      %v1955 = vmul.bf16 %v1904, %v1952
      %v1956 = vmul.bf16 %v1905, %v1951
      %1959 = vrot.lane.b32.xlu0 %v1955, 1
      %v1960 = vpop.permute.xlu0 %1959
      %1961 = vrot.lane.b32.xlu0 %v1956, 1
      %v1962 = vpop.permute.xlu0 %1961
      %v1963 = vrot.slane %v1960, 4
      %v1964 = vrot.slane %v1962, 4
      %v1965 = vsel %vm922, %v1963, %v1964
      %v1966 = vsel %vm1128, %v1960, %v1965
      %1968 = vst [vmem:[#allocation3 + $0x18] sm:$0xff] %v1966
      %v1969 = vld [vmem:[#allocation2 + $0x4] sm:$0xff]
      %v1970 = vld [vmem:[%s1133] sm:$0x3]
      %v1973 = vunpack.c.l.s4 1966171168
      %v1974 = vunpack.c.0.s8 %v1973
      %v1975 = vlaneseq
      %v1976 = vshrl.u32 %v1975, 7
      %v1977 = vsub.s32 %v1974, %v1976
      %v1978 = vrot.slane %v1970, %v1977
      %v1979 = vcombine.high %v1978, %v1978
      %v1981 = vunpack.c.l.s4 1966171168
      %v1982 = vunpack.c.0.s8 %v1981
      %v1983 = vlaneseq
      %v1984 = vshrl.u32 %v1983, 7
      %v1985 = vsub.s32 %v1982, %v1984
      %v1986 = vrot.slane %v1978, %v1985
      %v1988 = vunpack.c.l.s4 1966171168
      %v1989 = vunpack.c.0.s8 %v1988
      %v1990 = vlaneseq
      %v1991 = vshrl.u32 %v1990, 7
      %v1992 = vsub.s32 %v1989, %v1991
      %v1993 = vrot.slane %v1979, %v1992
      %v1995 = vpack.i.b16 %v1986, %v1986
      %v1997 = vlaneseq
      %v1998 = vshrl.u32 %v1997, 7
      %v1999 = vsub.s32 0, %v1998
      %v2000 = vrot.slane %v1995, %v1999
      %v2002 = vpack.i.b16 %v1993, %v1993
      %v2004 = vlaneseq
      %v2005 = vshrl.u32 %v2004, 7
      %v2006 = vsub.s32 0, %v2005
      %v2007 = vrot.slane %v2002, %v2006
      %v2010 = vunpack.c.l.b16 %v2000
      %v2011 = vunpack.c.l.b16 %v2007
      %v2012 = vpack.c.b16 %v2011, %v2010
      %v2014 = vmul.bf16 %v1969, %v2012
      %2015 = vst [vmem:[#allocation3 + $0x20] sm:$0xff] %v2014
      %v2016 = vld [vmem:[#allocation2 + $0x4] sm:$0xff]
      %v2017 = vld [vmem:[#allocation2 + $0xc] sm:$0xf]
      %v2018 = vld [vmem:[%s1182] sm:$0x3]
      %v2021 = vunpack.c.l.s4 1966171168
      %v2022 = vunpack.c.0.s8 %v2021
      %v2023 = vlaneseq
      %v2024 = vshrl.u32 %v2023, 7
      %v2025 = vsub.s32 %v2022, %v2024
      %v2026 = vrot.slane %v2018, %v2025
      %v2027 = vcombine.high %v2026, %v2026
      %v2029 = vunpack.c.l.s4 1966171168
      %v2030 = vunpack.c.0.s8 %v2029
      %v2031 = vlaneseq
      %v2032 = vshrl.u32 %v2031, 7
      %v2033 = vsub.s32 %v2030, %v2032
      %v2034 = vrot.slane %v2026, %v2033
      %v2036 = vunpack.c.l.s4 1966171168
      %v2037 = vunpack.c.0.s8 %v2036
      %v2038 = vlaneseq
      %v2039 = vshrl.u32 %v2038, 7
      %v2040 = vsub.s32 %v2037, %v2039
      %v2041 = vrot.slane %v2027, %v2040
      %v2043 = vpack.i.b16 %v2034, %v2034
      %v2045 = vlaneseq
      %v2046 = vshrl.u32 %v2045, 7
      %v2047 = vsub.s32 0, %v2046
      %v2048 = vrot.slane %v2043, %v2047
      %v2050 = vpack.i.b16 %v2041, %v2041
      %v2052 = vlaneseq
      %v2053 = vshrl.u32 %v2052, 7
      %v2054 = vsub.s32 0, %v2053
      %v2055 = vrot.slane %v2050, %v2054
      %v2058 = vunpack.c.l.b16 %v2048
      %v2059 = vunpack.c.l.b16 %v2055
      %v2060 = vpack.c.b16 %v2059, %v2058
      %2061 = vrot.lane.b32.xlu0 %v2060, 1
      %v2062 = vpop.permute.xlu0 %2061
      %v2063 = vrot.slane %v2062, 4
      %v2064 = vsel %vm1128, %v2063, %v2062
      %v2067 = vmul.bf16 %v2016, %v2064
      %v2068 = vmul.bf16 %v2017, %v2063
      %2071 = vrot.lane.b32.xlu0 %v2067, 127
      %v2072 = vpop.permute.xlu0 %2071
      %2073 = vrot.lane.b32.xlu0 %v2068, 127
      %v2074 = vpop.permute.xlu0 %2073
      %v2075 = vrot.slane %v2072, 4
      %v2076 = vrot.slane %v2074, 4
      %v2077 = vsel %vm922, %v2075, %v2076
      %v2078 = vsel %vm1113, %v2072, %v2077
      %2080 = vst [vmem:[#allocation3 + $0x28] sm:$0xff] %v2078
      %v2081 = vld [vmem:[#allocation2 + $0x4] sm:$0xff]
      %v2082 = vld [vmem:[#allocation2 + $0xc] sm:$0xf]
      %v2083 = vld [vmem:[%s1248] sm:$0x3]
      %v2086 = vunpack.c.l.s4 1966171168
      %v2087 = vunpack.c.0.s8 %v2086
      %v2088 = vlaneseq
      %v2089 = vshrl.u32 %v2088, 7
      %v2090 = vsub.s32 %v2087, %v2089
      %v2091 = vrot.slane %v2083, %v2090
      %v2092 = vcombine.high %v2091, %v2091
      %v2094 = vunpack.c.l.s4 1966171168
      %v2095 = vunpack.c.0.s8 %v2094
      %v2096 = vlaneseq
      %v2097 = vshrl.u32 %v2096, 7
      %v2098 = vsub.s32 %v2095, %v2097
      %v2099 = vrot.slane %v2091, %v2098
      %v2101 = vunpack.c.l.s4 1966171168
      %v2102 = vunpack.c.0.s8 %v2101
      %v2103 = vlaneseq
      %v2104 = vshrl.u32 %v2103, 7
      %v2105 = vsub.s32 %v2102, %v2104
      %v2106 = vrot.slane %v2092, %v2105
      %v2108 = vpack.i.b16 %v2099, %v2099
      %v2110 = vlaneseq
      %v2111 = vshrl.u32 %v2110, 7
      %v2112 = vsub.s32 0, %v2111
      %v2113 = vrot.slane %v2108, %v2112
      %v2115 = vpack.i.b16 %v2106, %v2106
      %v2117 = vlaneseq
      %v2118 = vshrl.u32 %v2117, 7
      %v2119 = vsub.s32 0, %v2118
      %v2120 = vrot.slane %v2115, %v2119
      %v2123 = vunpack.c.l.b16 %v2113
      %v2124 = vunpack.c.l.b16 %v2120
      %v2125 = vpack.c.b16 %v2124, %v2123
      %2126 = vrot.lane.b32.xlu0 %v2125, 15
      %v2127 = vpop.permute.xlu0 %2126
      %v2128 = vrot.slane %v2127, 4
      %v2129 = vsel %vm1060, %v2128, %v2127
      %v2132 = vmul.bf16 %v2081, %v2129
      %v2133 = vmul.bf16 %v2082, %v2128
      %2136 = vrot.lane.b32.xlu0 %v2132, 113
      %v2137 = vpop.permute.xlu0 %2136
      %2138 = vrot.lane.b32.xlu0 %v2133, 113
      %v2139 = vpop.permute.xlu0 %2138
      %v2140 = vrot.slane %v2137, 4
      %v2141 = vrot.slane %v2139, 4
      %v2142 = vsel %vm922, %v2140, %v2141
      %v2143 = vsel %vm1045, %v2137, %v2142
      %2145 = vst [vmem:[#allocation3 + $0x30] sm:$0xff] %v2143
      %v2146 = vld [vmem:[#allocation2 + $0x4] sm:$0xff]
      %v2147 = vld [vmem:[#allocation2 + $0xc] sm:$0xf]
      %v2148 = vld [vmem:[%s1314] sm:$0x3]
      %v2151 = vunpack.c.l.s4 1966171168
      %v2152 = vunpack.c.0.s8 %v2151
      %v2153 = vlaneseq
      %v2154 = vshrl.u32 %v2153, 7
      %v2155 = vsub.s32 %v2152, %v2154
      %v2156 = vrot.slane %v2148, %v2155
      %v2157 = vcombine.high %v2156, %v2156
      %v2159 = vunpack.c.l.s4 1966171168
      %v2160 = vunpack.c.0.s8 %v2159
      %v2161 = vlaneseq
      %v2162 = vshrl.u32 %v2161, 7
      %v2163 = vsub.s32 %v2160, %v2162
      %v2164 = vrot.slane %v2156, %v2163
      %v2166 = vunpack.c.l.s4 1966171168
      %v2167 = vunpack.c.0.s8 %v2166
      %v2168 = vlaneseq
      %v2169 = vshrl.u32 %v2168, 7
      %v2170 = vsub.s32 %v2167, %v2169
      %v2171 = vrot.slane %v2157, %v2170
      %v2173 = vpack.i.b16 %v2164, %v2164
      %v2175 = vlaneseq
      %v2176 = vshrl.u32 %v2175, 7
      %v2177 = vsub.s32 0, %v2176
      %v2178 = vrot.slane %v2173, %v2177
      %v2180 = vpack.i.b16 %v2171, %v2171
      %v2182 = vlaneseq
      %v2183 = vshrl.u32 %v2182, 7
      %v2184 = vsub.s32 0, %v2183
      %v2185 = vrot.slane %v2180, %v2184
      %v2188 = vunpack.c.l.b16 %v2178
      %v2189 = vunpack.c.l.b16 %v2185
      %v2190 = vpack.c.b16 %v2189, %v2188
      %2191 = vrot.lane.b32.xlu0 %v2190, 16
      %v2192 = vpop.permute.xlu0 %2191
      %v2193 = vrot.slane %v2192, 4
      %v2194 = vsel %vm992, %v2193, %v2192
      %v2197 = vmul.bf16 %v2146, %v2194
      %v2198 = vmul.bf16 %v2147, %v2193
      %2201 = vrot.lane.b32.xlu0 %v2197, 112
      %v2202 = vpop.permute.xlu0 %2201
      %2203 = vrot.lane.b32.xlu0 %v2198, 112
      %v2204 = vpop.permute.xlu0 %2203
      %v2205 = vrot.slane %v2202, 4
      %v2206 = vrot.slane %v2204, 4
      %v2207 = vsel %vm922, %v2205, %v2206
      %v2208 = vsel %vm977, %v2202, %v2207
      %2210 = vst [vmem:[#allocation3 + $0x38] sm:$0xff] %v2208
      %v2211 = vld [vmem:[#allocation2 + $0x4] sm:$0xff]
      %v2212 = vld [vmem:[#allocation2 + $0xc] sm:$0xf]
      %v2213 = vld [vmem:[%s1380] sm:$0x3]
      %v2216 = vunpack.c.l.s4 1966171168
      %v2217 = vunpack.c.0.s8 %v2216
      %v2218 = vlaneseq
      %v2219 = vshrl.u32 %v2218, 7
      %v2220 = vsub.s32 %v2217, %v2219
      %v2221 = vrot.slane %v2213, %v2220
      %v2222 = vcombine.high %v2221, %v2221
      %v2224 = vunpack.c.l.s4 1966171168
      %v2225 = vunpack.c.0.s8 %v2224
      %v2226 = vlaneseq
      %v2227 = vshrl.u32 %v2226, 7
      %v2228 = vsub.s32 %v2225, %v2227
      %v2229 = vrot.slane %v2221, %v2228
      %v2231 = vunpack.c.l.s4 1966171168
      %v2232 = vunpack.c.0.s8 %v2231
      %v2233 = vlaneseq
      %v2234 = vshrl.u32 %v2233, 7
      %v2235 = vsub.s32 %v2232, %v2234
      %v2236 = vrot.slane %v2222, %v2235
      %v2238 = vpack.i.b16 %v2229, %v2229
      %v2240 = vlaneseq
      %v2241 = vshrl.u32 %v2240, 7
      %v2242 = vsub.s32 0, %v2241
      %v2243 = vrot.slane %v2238, %v2242
      %v2245 = vpack.i.b16 %v2236, %v2236
      %v2247 = vlaneseq
      %v2248 = vshrl.u32 %v2247, 7
      %v2249 = vsub.s32 0, %v2248
      %v2250 = vrot.slane %v2245, %v2249
      %v2253 = vunpack.c.l.b16 %v2243
      %v2254 = vunpack.c.l.b16 %v2250
      %v2255 = vpack.c.b16 %v2254, %v2253
      %2256 = vrot.lane.b32.xlu0 %v2255, 17
      %v2257 = vpop.permute.xlu0 %2256
      %v2258 = vrot.slane %v2257, 4
      %v2259 = vsel %vm924, %v2258, %v2257
      %v2262 = vmul.bf16 %v2211, %v2259
      %v2263 = vmul.bf16 %v2212, %v2258
      %2266 = vrot.lane.b32.xlu0 %v2262, 111
      %v2267 = vpop.permute.xlu0 %2266
      %2268 = vrot.lane.b32.xlu0 %v2263, 111
      %v2269 = vpop.permute.xlu0 %2268
      %v2270 = vrot.slane %v2267, 4
      %v2271 = vrot.slane %v2269, 4
      %v2272 = vsel %vm922, %v2270, %v2271
      %v2273 = vsel %vm908, %v2267, %v2272
      %2275 = vst [vmem:[#allocation3 + $0x40] sm:$0xff] %v2273
      %v2276 = vld [vmem:[#allocation3] sm:$0xff]
      %v2277 = vld [vmem:[#allocation3 + $0x8] sm:$0xff]
      %v2278 = vld [vmem:[#allocation3 + $0x10] sm:$0xff]
      %v2279 = vld [vmem:[#allocation3 + $0x18] sm:$0xff]
      %v2280 = vld [vmem:[#allocation3 + $0x20] sm:$0xff]
      %v2281 = vld [vmem:[#allocation3 + $0x28] sm:$0xff]
      %v2282 = vld [vmem:[#allocation3 + $0x30] sm:$0xff]
      %v2283 = vld [vmem:[#allocation3 + $0x38] sm:$0xff]
      %v2284 = vld [vmem:[#allocation3 + $0x40] sm:$0xff]
      %2286 = vset.pattern.permute.xlu0 0
      %2287 = vperm.xlu0 %2286, %v1701
      %v2288 = vpop.permute.xlu0 %2287
      %v2299 = vunpack.c.l.b16 %v2276
      %v2300 = vunpack.c.h.b16 %v2276
      %v2301 = vunpack.c.l.b16 %v2277
      %v2302 = vunpack.c.h.b16 %v2277
      %v2303 = vunpack.c.l.b16 %v2278
      %v2304 = vunpack.c.h.b16 %v2278
      %v2305 = vunpack.c.l.b16 %v2279
      %v2306 = vunpack.c.h.b16 %v2279
      %v2307 = vunpack.c.l.b16 %v2280
      %v2308 = vunpack.c.h.b16 %v2280
      %v2309 = vunpack.c.l.b16 %v2281
      %v2310 = vunpack.c.h.b16 %v2281
      %v2311 = vunpack.c.l.b16 %v2282
      %v2312 = vunpack.c.h.b16 %v2282
      %v2313 = vunpack.c.l.b16 %v2283
      %v2314 = vunpack.c.h.b16 %v2283
      %v2315 = vunpack.c.l.b16 %v2284
      %v2316 = vunpack.c.h.b16 %v2284
      %v2317 = vpack.c.b16 %v2301, %v2299
      %v2318 = vpack.c.b16 %v2302, %v2300
      %v2319 = vpack.c.b16 %v2305, %v2303
      %v2320 = vpack.c.b16 %v2306, %v2304
      %v2321 = vpack.c.b16 %v2309, %v2307
      %v2322 = vpack.c.b16 %v2310, %v2308
      %v2323 = vpack.c.b16 %v2313, %v2311
      %v2324 = vpack.c.b16 %v2314, %v2312
      %v2325 = vpack.c.b16 %v2315, %v2315
      %v2326 = vpack.c.b16 %v2316, %v2316
      %v2336 = vsel %vm1503, %v1700, 0
      %v2339 = vsel %vm1507, %v2325, 0
      %v2342 = vsel %vm1507, %v2326, 0
      %2344 = vmatprep.subr.bf16.mxu0 %v2318
      %2345 = vmatpush1.bf16.msra.mxu0 %v2317
      %2346 = vmatprep.subr.bf16.mxu0 %v2320
      %2347 = vmatpush1.bf16.msra.mxu0 %v2319
      %2348 = vmatprep.subr.bf16.mxu0 %v2322
      %2349 = vmatpush1.bf16.msra.mxu0 %v2321
      %2350 = vmatprep.subr.bf16.mxu0 %v2324
      %2351 = vmatpush1.bf16.msra.mxu0 %v2323
      %2352 = vmatprep.subr.bf16.mxu0 %v2342
      %2353 = vmatpush1.bf16.msra.mxu0 %v2339
      %2354 = vmatprep.subr.bf16.mxu0 0
      %2355 = vmatpush1.bf16.msra.mxu0 0
      %2356 = vmatprep.subr.bf16.mxu0 0
      %2357 = vmatpush1.bf16.msra.mxu0 0
      %2358 = vmatprep.subr.bf16.mxu0 0
      %2359 = vmatpush1.bf16.msra.mxu0 0
      %2360 = vmatprep.subr.bf16.mxu0 0
      %2361 = vmatpush1.bf16.msra.mxu0 0
      %2362 = vmatprep.subr.bf16.mxu0 0
      %2363 = vmatpush1.bf16.msra.mxu0 0
      %2364 = vmatprep.subr.bf16.mxu0 0
      %2365 = vmatpush1.bf16.msra.mxu0 0
      %2366 = vmatprep.subr.bf16.mxu0 0
      %2367 = vmatpush1.bf16.msra.mxu0 0
      %2368 = vmatprep.subr.bf16.mxu0 0
      %2369 = vmatpush1.bf16.msra.mxu0 0
      %2370 = vmatprep.subr.bf16.mxu0 0
      %2371 = vmatpush1.bf16.msra.mxu0 0
      %2372 = vmatprep.subr.bf16.mxu0 0
      %2373 = vmatpush1.bf16.msra.mxu0 0
      %2374 = vmatprep.subr.bf16.mxu0 0
      %2375 = vmatpush1.bf16.msra.mxu0 0
      %2376 = vmatprep.mubr.bf16.mxu0 0
      %2377 = vmatmul.mubr.bf16.gmra.mrb[0].mxu0 %v2336
      %v2378 = vpop.f32.mrb[0].mxu0
      %v2379 = vadd.f32 %v2288, %v2378
      %v2380 = vpop.f32.mrb[0].mxu0
      %v2381 = vadd.f32 %v2288, %v2380
      %v2382 = vpop.f32.mrb[0].mxu0
      %v2383 = vpop.f32.mrb[0].mxu0
      %2384 = vdwg.mxu0
      %v2385 = vmax.f32 %v2379, 0.0
      %v2386 = vmax.f32 %v2381, 0.0
      %v2387 = vmin.f32 %v2385, 6.0
      %v2388 = vmin.f32 %v2386, 6.0
      %v2389 = vpack.c.bf16 %v2387, %v2387
      %v2390 = vpack.c.bf16 %v2388, %v2388
      %v2391 = vld [vmem:[%s14] sm:$0xf]
      %v2392 = vld [vmem:[%s14 + $0x4] sm:$0xf]
      %v2393 = vld [vmem:[%s14 + $0x8] sm:$0xf]
      %v2394 = vld [vmem:[%s14 + $0xc] sm:$0xf]
      %v2395 = vld [vmem:[%s15] sm:$0xff]
      %v2396 = vld [vmem:[%s15 + $0x8] sm:$0xff]
      %v2397 = vld [vmem:[%s15 + $0x10] sm:$0xff]
      %v2398 = vld [vmem:[%s15 + $0x18] sm:$0xff]
      %2400 = vset.pattern.permute.xlu0 0
      %2401 = vperm.xlu0 %2400, %v2395
      %v2402 = vpop.permute.xlu0 %2401
      %2405 = vset.pattern.permute.xlu0 0
      %2406 = vperm.xlu0 %2405, %v2396
      %v2407 = vpop.permute.xlu0 %2406
      %2410 = vset.pattern.permute.xlu0 0
      %2411 = vperm.xlu0 %2410, %v2397
      %v2412 = vpop.permute.xlu0 %2411
      %2415 = vset.pattern.permute.xlu0 0
      %2416 = vperm.xlu0 %2415, %v2398
      %v2417 = vpop.permute.xlu0 %2416
      %v2423 = vunpack.c.l.b16 %v2391
      %v2424 = vunpack.c.l.b16 %v2392
      %v2425 = vunpack.c.l.b16 %v2393
      %v2426 = vunpack.c.l.b16 %v2394
      %v2427 = vpack.c.b16 %v2424, %v2423
      %v2428 = vpack.c.b16 %v2426, %v2425
      %v2430 = vsel %vm1580, %v2427, 0
      %v2433 = vsel %vm1580, %v2428, 0
      %v2436 = vsel %vm1507, %v2389, 0
      %v2439 = vsel %vm1507, %v2390, 0
      %2441 = vmatprep.subr.bf16.mxu0 %v2439
      %2442 = vmatpush1.bf16.msra.mxu0 %v2436
      %2443 = vmatprep.subr.bf16.mxu0 0
      %2444 = vmatpush1.bf16.msra.mxu0 0
      %2445 = vmatprep.subr.bf16.mxu0 0
      %2446 = vmatpush1.bf16.msra.mxu0 0
      %2447 = vmatprep.subr.bf16.mxu0 0
      %2448 = vmatpush1.bf16.msra.mxu0 0
      %2449 = vmatprep.subr.bf16.mxu0 0
      %2450 = vmatpush1.bf16.msra.mxu0 0
      %2451 = vmatprep.subr.bf16.mxu0 0
      %2452 = vmatpush1.bf16.msra.mxu0 0
      %2453 = vmatprep.subr.bf16.mxu0 0
      %2454 = vmatpush1.bf16.msra.mxu0 0
      %2455 = vmatprep.subr.bf16.mxu0 0
      %2456 = vmatpush1.bf16.msra.mxu0 0
      %2457 = vmatprep.subr.bf16.mxu0 0
      %2458 = vmatpush1.bf16.msra.mxu0 0
      %2459 = vmatprep.subr.bf16.mxu0 0
      %2460 = vmatpush1.bf16.msra.mxu0 0
      %2461 = vmatprep.subr.bf16.mxu0 0
      %2462 = vmatpush1.bf16.msra.mxu0 0
      %2463 = vmatprep.subr.bf16.mxu0 0
      %2464 = vmatpush1.bf16.msra.mxu0 0
      %2465 = vmatprep.subr.bf16.mxu0 0
      %2466 = vmatpush1.bf16.msra.mxu0 0
      %2467 = vmatprep.subr.bf16.mxu0 0
      %2468 = vmatpush1.bf16.msra.mxu0 0
      %2469 = vmatprep.subr.bf16.mxu0 0
      %2470 = vmatpush1.bf16.msra.mxu0 0
      %2471 = vmatprep.subr.bf16.mxu0 0
      %2472 = vmatpush1.bf16.msra.mxu0 0
      %2473 = vmatprep.mubr.bf16.mxu0 0
      %2474 = vmatmul.mubr.bf16.gmra.mrb[0].mxu0 %v2430
      %v2475 = vpop.f32.mrb[0].mxu0
      %v2476 = vadd.f32 %v2402, %v2475
      %v2477 = vpop.f32.mrb[0].mxu0
      %v2478 = vadd.f32 %v2402, %v2477
      %v2479 = vpop.f32.mrb[0].mxu0
      %v2480 = vadd.f32 %v2407, %v2479
      %v2481 = vpop.f32.mrb[0].mxu0
      %v2482 = vadd.f32 %v2407, %v2481
      %2483 = vmatprep.mubr.bf16.mxu0 0
      %2484 = vmatmul.mubr.bf16.gmra.mrb[0].mxu0 %v2433
      %v2485 = vpop.f32.mrb[0].mxu0
      %v2486 = vadd.f32 %v2412, %v2485
      %v2487 = vpop.f32.mrb[0].mxu0
      %v2488 = vadd.f32 %v2412, %v2487
      %v2489 = vpop.f32.mrb[0].mxu0
      %v2490 = vadd.f32 %v2417, %v2489
      %v2491 = vpop.f32.mrb[0].mxu0
      %v2492 = vadd.f32 %v2417, %v2491
      %2493 = vdwg.mxu0
      %v2494 = vpack.c.bf16 %v2480, %v2476
      %v2495 = vpack.c.bf16 %v2482, %v2478
      %v2496 = vpack.c.bf16 %v2490, %v2486
      %v2497 = vpack.c.bf16 %v2492, %v2488
      %v2498 = vld [vmem:[%s16] sm:$0xf]
      %v2499 = vld [vmem:[%s16 + $0x4] sm:$0xf]
      %v2500 = vld [vmem:[%s16 + $0x8] sm:$0xf]
      %v2501 = vld [vmem:[%s16 + $0xc] sm:$0xf]
      %v2502 = vld [vmem:[%s17] sm:$0xff]
      %v2503 = vld [vmem:[%s17 + $0x8] sm:$0xff]
      %v2504 = vld [vmem:[%s17 + $0x10] sm:$0xff]
      %v2505 = vld [vmem:[%s17 + $0x18] sm:$0xff]
      %2507 = vset.pattern.permute.xlu0 0
      %2508 = vperm.xlu0 %2507, %v2502
      %v2509 = vpop.permute.xlu0 %2508
      %2512 = vset.pattern.permute.xlu0 0
      %2513 = vperm.xlu0 %2512, %v2503
      %v2514 = vpop.permute.xlu0 %2513
      %2517 = vset.pattern.permute.xlu0 0
      %2518 = vperm.xlu0 %2517, %v2504
      %v2519 = vpop.permute.xlu0 %2518
      %2522 = vset.pattern.permute.xlu0 0
      %2523 = vperm.xlu0 %2522, %v2505
      %v2524 = vpop.permute.xlu0 %2523
      %v2530 = vunpack.c.l.b16 %v2498
      %v2531 = vunpack.c.l.b16 %v2499
      %v2532 = vunpack.c.l.b16 %v2500
      %v2533 = vunpack.c.l.b16 %v2501
      %v2534 = vpack.c.b16 %v2531, %v2530
      %v2535 = vpack.c.b16 %v2533, %v2532
      %vm2536 = vcmask 261120
      %v2538 = vsel %vm2536, %v2534, 0
      %v2541 = vsel %vm2536, %v2535, 0
      %2543 = vmatprep.subr.bf16.mxu0 %v2495
      %2544 = vmatpush1.bf16.msra.mxu0 %v2494
      %2545 = vmatprep.subr.bf16.mxu0 %v2497
      %2546 = vmatpush1.bf16.msra.mxu0 %v2496
      %2547 = vmatprep.subr.bf16.mxu0 0
      %2548 = vmatpush1.bf16.msra.mxu0 0
      %2549 = vmatprep.subr.bf16.mxu0 0
      %2550 = vmatpush1.bf16.msra.mxu0 0
      %2551 = vmatprep.subr.bf16.mxu0 0
      %2552 = vmatpush1.bf16.msra.mxu0 0
      %2553 = vmatprep.subr.bf16.mxu0 0
      %2554 = vmatpush1.bf16.msra.mxu0 0
      %2555 = vmatprep.subr.bf16.mxu0 0
      %2556 = vmatpush1.bf16.msra.mxu0 0
      %2557 = vmatprep.subr.bf16.mxu0 0
      %2558 = vmatpush1.bf16.msra.mxu0 0
      %2559 = vmatprep.subr.bf16.mxu0 0
      %2560 = vmatpush1.bf16.msra.mxu0 0
      %2561 = vmatprep.subr.bf16.mxu0 0
      %2562 = vmatpush1.bf16.msra.mxu0 0
      %2563 = vmatprep.subr.bf16.mxu0 0
      %2564 = vmatpush1.bf16.msra.mxu0 0
      %2565 = vmatprep.subr.bf16.mxu0 0
      %2566 = vmatpush1.bf16.msra.mxu0 0
      %2567 = vmatprep.subr.bf16.mxu0 0
      %2568 = vmatpush1.bf16.msra.mxu0 0
      %2569 = vmatprep.subr.bf16.mxu0 0
      %2570 = vmatpush1.bf16.msra.mxu0 0
      %2571 = vmatprep.subr.bf16.mxu0 0
      %2572 = vmatpush1.bf16.msra.mxu0 0
      %2573 = vmatprep.subr.bf16.mxu0 0
      %2574 = vmatpush1.bf16.msra.mxu0 0
      %2575 = vmatprep.mubr.bf16.mxu0 0
      %2576 = vmatmul.mubr.bf16.gmra.mrb[0].mxu0 %v2538
      %v2577 = vpop.f32.mrb[0].mxu0
      %v2578 = vadd.f32 %v2509, %v2577
      %v2579 = vpop.f32.mrb[0].mxu0
      %v2580 = vadd.f32 %v2509, %v2579
      %v2581 = vpop.f32.mrb[0].mxu0
      %v2582 = vadd.f32 %v2514, %v2581
      %v2583 = vpop.f32.mrb[0].mxu0
      %v2584 = vadd.f32 %v2514, %v2583
      %2585 = vmatprep.mubr.bf16.mxu0 0
      %2586 = vmatmul.mubr.bf16.gmra.mrb[0].mxu0 %v2541
      %v2587 = vpop.f32.mrb[0].mxu0
      %v2588 = vadd.f32 %v2519, %v2587
      %v2589 = vpop.f32.mrb[0].mxu0
      %v2590 = vadd.f32 %v2519, %v2589
      %v2591 = vpop.f32.mrb[0].mxu0
      %v2592 = vadd.f32 %v2524, %v2591
      %v2593 = vpop.f32.mrb[0].mxu0
      %v2594 = vadd.f32 %v2524, %v2593
      %2595 = vdwg.mxu0
      %v2596 = vmax.f32 %v2578, 0.0
      %v2597 = vmax.f32 %v2580, 0.0
      %v2598 = vmax.f32 %v2582, 0.0
      %v2599 = vmax.f32 %v2584, 0.0
      %v2600 = vmax.f32 %v2588, 0.0
      %v2601 = vmax.f32 %v2590, 0.0
      %v2602 = vmax.f32 %v2592, 0.0
      %v2603 = vmax.f32 %v2594, 0.0
      %v2604 = vmin.f32 %v2596, 6.0
      %v2605 = vmin.f32 %v2597, 6.0
      %v2606 = vmin.f32 %v2598, 6.0
      %v2607 = vmin.f32 %v2599, 6.0
      %v2608 = vmin.f32 %v2600, 6.0
      %v2609 = vmin.f32 %v2601, 6.0
      %v2610 = vmin.f32 %v2602, 6.0
      %v2611 = vmin.f32 %v2603, 6.0
      %v2612 = vpack.c.bf16 %v2606, %v2604
      %v2613 = vpack.c.bf16 %v2607, %v2605
      %v2614 = vpack.c.bf16 %v2610, %v2608
      %v2615 = vpack.c.bf16 %v2611, %v2609
      %v2616 = vld [vmem:[%s671] sm:$0xf]
      %v2617 = vld [vmem:[%s671 + $0x4] sm:$0xf]
      %v2618 = vld [vmem:[%s671 + $0x8] sm:$0xf]
      %v2619 = vld [vmem:[%s671 + $0xc] sm:$0xf]
      %v2620 = vld [vmem:[%s671 + $0x10] sm:$0xf]
      %v2621 = vld [vmem:[%s671 + $0x14] sm:$0xf]
      %v2622 = vld [vmem:[%s671 + $0x18] sm:$0xf]
      %v2623 = vld [vmem:[%s671 + $0x1c] sm:$0xf]
      %v2624 = vld [vmem:[%s671 + $0x20] sm:$0xf]
      %v2625 = vld [vmem:[%s671 + $0x24] sm:$0xf]
      %v2626 = vld [vmem:[%s671 + $0x28] sm:$0xf]
      %v2627 = vld [vmem:[%s671 + $0x2c] sm:$0xf]
      %v2628 = vld [vmem:[%s671 + $0x30] sm:$0xf]
      %v2629 = vld [vmem:[%s671 + $0x34] sm:$0xf]
      %v2630 = vld [vmem:[%s671 + $0x38] sm:$0xf]
      %v2631 = vld [vmem:[%s671 + $0x3c] sm:$0xf]
      %v2632 = vld [vmem:[%s671 + $0x40] sm:$0xf]
      %v2633 = vld [vmem:[%s671 + $0x44] sm:$0xf]
      %v2634 = vld [vmem:[%s671 + $0x48] sm:$0xf]
      %v2635 = vld [vmem:[%s671 + $0x4c] sm:$0xf]
      %v2636 = vld [vmem:[%s671 + $0x50] sm:$0xf]
      %v2637 = vld [vmem:[%s671 + $0x54] sm:$0xf]
      %v2638 = vld [vmem:[%s671 + $0x58] sm:$0xf]
      %v2639 = vld [vmem:[%s671 + $0x5c] sm:$0xf]
      %v2640 = vld [vmem:[%s671 + $0x60] sm:$0xf]
      %v2641 = vld [vmem:[%s671 + $0x64] sm:$0xf]
      %v2642 = vld [vmem:[%s671 + $0x68] sm:$0xf]
      %v2643 = vld [vmem:[%s671 + $0x6c] sm:$0xf]
      %v2644 = vld [vmem:[%s671 + $0x70] sm:$0xf]
      %v2645 = vld [vmem:[%s671 + $0x74] sm:$0xf]
      %v2646 = vld [vmem:[%s671 + $0x78] sm:$0xf]
      %v2647 = vld [vmem:[%s671 + $0x7c] sm:$0xf]
      %v2680 = vunpack.c.l.b16 %v2616
      %v2681 = vunpack.c.l.b16 %v2617
      %v2682 = vunpack.c.l.b16 %v2618
      %v2683 = vunpack.c.l.b16 %v2619
      %v2684 = vunpack.c.l.b16 %v2620
      %v2685 = vunpack.c.l.b16 %v2621
      %v2686 = vunpack.c.l.b16 %v2622
      %v2687 = vunpack.c.l.b16 %v2623
      %v2688 = vunpack.c.l.b16 %v2624
      %v2689 = vunpack.c.l.b16 %v2625
      %v2690 = vunpack.c.l.b16 %v2626
      %v2691 = vunpack.c.l.b16 %v2627
      %v2692 = vunpack.c.l.b16 %v2628
      %v2693 = vunpack.c.l.b16 %v2629
      %v2694 = vunpack.c.l.b16 %v2630
      %v2695 = vunpack.c.l.b16 %v2631
      %v2696 = vunpack.c.l.b16 %v2632
      %v2697 = vunpack.c.l.b16 %v2633
      %v2698 = vunpack.c.l.b16 %v2634
      %v2699 = vunpack.c.l.b16 %v2635
      %v2700 = vunpack.c.l.b16 %v2636
      %v2701 = vunpack.c.l.b16 %v2637
      %v2702 = vunpack.c.l.b16 %v2638
      %v2703 = vunpack.c.l.b16 %v2639
      %v2704 = vunpack.c.l.b16 %v2640
      %v2705 = vunpack.c.l.b16 %v2641
      %v2706 = vunpack.c.l.b16 %v2642
      %v2707 = vunpack.c.l.b16 %v2643
      %v2708 = vunpack.c.l.b16 %v2644
      %v2709 = vunpack.c.l.b16 %v2645
      %v2710 = vunpack.c.l.b16 %v2646
      %v2711 = vunpack.c.l.b16 %v2647
      %v2712 = vpack.c.b16 %v2681, %v2680
      %v2713 = vpack.c.b16 %v2683, %v2682
      %v2714 = vpack.c.b16 %v2685, %v2684
      %v2715 = vpack.c.b16 %v2687, %v2686
      %v2716 = vpack.c.b16 %v2689, %v2688
      %v2717 = vpack.c.b16 %v2691, %v2690
      %v2718 = vpack.c.b16 %v2693, %v2692
      %v2719 = vpack.c.b16 %v2695, %v2694
      %v2720 = vpack.c.b16 %v2697, %v2696
      %v2721 = vpack.c.b16 %v2699, %v2698
      %v2722 = vpack.c.b16 %v2701, %v2700
      %v2723 = vpack.c.b16 %v2703, %v2702
      %v2724 = vpack.c.b16 %v2705, %v2704
      %v2725 = vpack.c.b16 %v2707, %v2706
      %v2726 = vpack.c.b16 %v2709, %v2708
      %v2727 = vpack.c.b16 %v2711, %v2710
      %2744 = vmatprep.subr.bf16.mxu0 0
      %2745 = vmatpush1.bf16.msra.mxu0 %v2712
      %2746 = vmatprep.subr.bf16.mxu0 0
      %2747 = vmatpush1.bf16.msra.mxu0 %v2713
      %2748 = vmatprep.subr.bf16.mxu0 0
      %2749 = vmatpush1.bf16.msra.mxu0 %v2714
      %2750 = vmatprep.subr.bf16.mxu0 0
      %2751 = vmatpush1.bf16.msra.mxu0 %v2715
      %2752 = vmatprep.subr.bf16.mxu0 0
      %2753 = vmatpush1.bf16.msra.mxu0 %v2716
      %2754 = vmatprep.subr.bf16.mxu0 0
      %2755 = vmatpush1.bf16.msra.mxu0 %v2717
      %2756 = vmatprep.subr.bf16.mxu0 0
      %2757 = vmatpush1.bf16.msra.mxu0 %v2718
      %2758 = vmatprep.subr.bf16.mxu0 0
      %2759 = vmatpush1.bf16.msra.mxu0 %v2719
      %2760 = vmatprep.subr.bf16.mxu0 0
      %2761 = vmatpush1.bf16.msra.mxu0 %v2720
      %2762 = vmatprep.subr.bf16.mxu0 0
      %2763 = vmatpush1.bf16.msra.mxu0 %v2721
      %2764 = vmatprep.subr.bf16.mxu0 0
      %2765 = vmatpush1.bf16.msra.mxu0 %v2722
      %2766 = vmatprep.subr.bf16.mxu0 0
      %2767 = vmatpush1.bf16.msra.mxu0 %v2723
      %2768 = vmatprep.subr.bf16.mxu0 0
      %2769 = vmatpush1.bf16.msra.mxu0 %v2724
      %2770 = vmatprep.subr.bf16.mxu0 0
      %2771 = vmatpush1.bf16.msra.mxu0 %v2725
      %2772 = vmatprep.subr.bf16.mxu0 0
      %2773 = vmatpush1.bf16.msra.mxu0 %v2726
      %2774 = vmatprep.subr.bf16.mxu0 0
      %2775 = vmatpush1.bf16.msra.mxu0 %v2727
      %2776 = vmatprep.mubr.bf16.mxu0 %v2613
      %2777 = vmatmul.mubr.bf16.gmra.mrb[0].mxu0 %v2612
      %v2778 = vpop.f32.mrb[0].mxu0
      %v2779 = vadd.f32 0.0, %v2778
      %v2780 = vpop.f32.mrb[0].mxu0
      %v2781 = vpop.f32.mrb[0].mxu0
      %v2782 = vadd.f32 0.0, %v2781
      %v2783 = vpop.f32.mrb[0].mxu0
      %2784 = vmatprep.mubr.bf16.mxu0 %v2615
      %2785 = vmatmul.mubr.bf16.gmra.mrb[0].mxu0 %v2614
      %v2786 = vpop.f32.mrb[0].mxu0
      %v2787 = vadd.f32 0.0, %v2786
      %v2788 = vpop.f32.mrb[0].mxu0
      %v2789 = vpop.f32.mrb[0].mxu0
      %v2790 = vadd.f32 0.0, %v2789
      %v2791 = vpop.f32.mrb[0].mxu0
      %2792 = vdwg.mxu0
      %v2793 = vld [vmem:[%s18] sm:$0xff]
      %v2794 = vld [vmem:[%s18 + $0x8] sm:$0xff]
      %v2795 = vld [vmem:[%s18 + $0x10] sm:$0xff]
      %v2796 = vld [vmem:[%s18 + $0x18] sm:$0xff]
      %v2797 = vld [vmem:[%s18 + $0x20] sm:$0xff]
      %v2798 = vld [vmem:[%s18 + $0x28] sm:$0xff]
      %v2799 = vld [vmem:[%s18 + $0x30] sm:$0xff]
      %v2800 = vld [vmem:[%s18 + $0x38] sm:$0xff]
      %v2801 = vld [vmem:[%s18 + $0x40] sm:$0xff]
      %v2802 = vld [vmem:[%s18 + $0x48] sm:$0xff]
      %v2803 = vld [vmem:[%s18 + $0x50] sm:$0xff]
      %v2804 = vld [vmem:[%s18 + $0x58] sm:$0xff]
      %v2805 = vld [vmem:[%s18 + $0x60] sm:$0xff]
      %v2806 = vld [vmem:[%s18 + $0x68] sm:$0xff]
      %v2807 = vld [vmem:[%s18 + $0x70] sm:$0xff]
      %v2808 = vld [vmem:[%s18 + $0x78] sm:$0xff]
      %v2809 = vld [vmem:[%s19] sm:$0xff]
      %v2810 = vld [vmem:[%s19 + $0x8] sm:$0xff]
      %v2811 = vld [vmem:[%s19 + $0x10] sm:$0xff]
      %v2812 = vld [vmem:[%s19 + $0x18] sm:$0xff]
      %v2813 = vld [vmem:[%s19 + $0x20] sm:$0xff]
      %v2814 = vld [vmem:[%s19 + $0x28] sm:$0xff]
      %v2815 = vld [vmem:[%s19 + $0x30] sm:$0xff]
      %v2816 = vld [vmem:[%s19 + $0x38] sm:$0xff]
      %v2817 = vld [vmem:[%s19 + $0x40] sm:$0xff]
      %v2818 = vld [vmem:[%s19 + $0x48] sm:$0xff]
      %v2819 = vld [vmem:[%s19 + $0x50] sm:$0xff]
      %v2820 = vld [vmem:[%s19 + $0x58] sm:$0xff]
      %v2821 = vld [vmem:[%s19 + $0x60] sm:$0xff]
      %v2822 = vld [vmem:[%s19 + $0x68] sm:$0xff]
      %v2823 = vld [vmem:[%s19 + $0x70] sm:$0xff]
      %v2824 = vld [vmem:[%s19 + $0x78] sm:$0xff]
      %v2826 = vsel %vm2536, %v2793, 0
      %v2829 = vsel %vm2536, %v2794, 0
      %v2832 = vsel %vm2536, %v2795, 0
      %v2835 = vsel %vm2536, %v2796, 0
      %v2838 = vsel %vm2536, %v2797, 0
      %v2841 = vsel %vm2536, %v2798, 0
      %v2844 = vsel %vm2536, %v2799, 0
      %v2847 = vsel %vm2536, %v2800, 0
      %v2850 = vsel %vm2536, %v2801, 0
      %v2853 = vsel %vm2536, %v2802, 0
      %v2856 = vsel %vm2536, %v2803, 0
      %v2859 = vsel %vm2536, %v2804, 0
      %v2862 = vsel %vm2536, %v2805, 0
      %v2865 = vsel %vm2536, %v2806, 0
      %v2868 = vsel %vm2536, %v2807, 0
      %v2871 = vsel %vm2536, %v2808, 0
      %2873 = vmatprep.subr.mxu0 0.0
      %2874 = vmatpush1.msra.mxu0 %v2779
      %2875 = vmatprep.subr.mxu0 0.0
      %2876 = vmatpush1.msra.mxu0 %v2782
      %2877 = vmatprep.subr.mxu0 0.0
      %2878 = vmatpush1.msra.mxu0 %v2787
      %2879 = vmatprep.subr.mxu0 0.0
      %2880 = vmatpush1.msra.mxu0 %v2790
      %2881 = vmatprep.subr.mxu0 0.0
      %2882 = vmatpush1.msra.mxu0 0.0
      %2883 = vmatprep.subr.mxu0 0.0
      %2884 = vmatpush1.msra.mxu0 0.0
      %2885 = vmatprep.subr.mxu0 0.0
      %2886 = vmatpush1.msra.mxu0 0.0
      %2887 = vmatprep.subr.mxu0 0.0
      %2888 = vmatpush1.msra.mxu0 0.0
      %2889 = vmatprep.subr.mxu0 0.0
      %2890 = vmatpush1.msra.mxu0 0.0
      %2891 = vmatprep.subr.mxu0 0.0
      %2892 = vmatpush1.msra.mxu0 0.0
      %2893 = vmatprep.subr.mxu0 0.0
      %2894 = vmatpush1.msra.mxu0 0.0
      %2895 = vmatprep.subr.mxu0 0.0
      %2896 = vmatpush1.msra.mxu0 0.0
      %2897 = vmatprep.subr.mxu0 0.0
      %2898 = vmatpush1.msra.mxu0 0.0
      %2899 = vmatprep.subr.mxu0 0.0
      %2900 = vmatpush1.msra.mxu0 0.0
      %2901 = vmatprep.subr.mxu0 0.0
      %2902 = vmatpush1.msra.mxu0 0.0
      %2903 = vmatprep.subr.mxu0 0.0
      %2904 = vmatpush1.msra.mxu0 0.0
      %2905 = vmatprep.subr.mxu0 0.0
      %2906 = vmatpush1.msra.mxu0 0.0
      %2907 = vmatprep.subr.mxu0 0.0
      %2908 = vmatpush1.msra.mxu0 0.0
      %2909 = vmatprep.subr.mxu0 0.0
      %2910 = vmatpush1.msra.mxu0 0.0
      %2911 = vmatprep.subr.mxu0 0.0
      %2912 = vmatpush1.msra.mxu0 0.0
      %2913 = vmatprep.subr.mxu0 0.0
      %2914 = vmatpush1.msra.mxu0 0.0
      %2915 = vmatprep.subr.mxu0 0.0
      %2916 = vmatpush1.msra.mxu0 0.0
      %2917 = vmatprep.subr.mxu0 0.0
      %2918 = vmatpush1.msra.mxu0 0.0
      %2919 = vmatprep.subr.mxu0 0.0
      %2920 = vmatpush1.msra.mxu0 0.0
      %2921 = vmatprep.subr.mxu0 0.0
      %2922 = vmatpush1.msra.mxu0 0.0
      %2923 = vmatprep.subr.mxu0 0.0
      %2924 = vmatpush1.msra.mxu0 0.0
      %2925 = vmatprep.subr.mxu0 0.0
      %2926 = vmatpush1.msra.mxu0 0.0
      %2927 = vmatprep.subr.mxu0 0.0
      %2928 = vmatpush1.msra.mxu0 0.0
      %2929 = vmatprep.subr.mxu0 0.0
      %2930 = vmatpush1.msra.mxu0 0.0
      %2931 = vmatprep.subr.mxu0 0.0
      %2932 = vmatpush1.msra.mxu0 0.0
      %2933 = vmatprep.subr.mxu0 0.0
      %2934 = vmatpush1.msra.mxu0 0.0
      %2935 = vmatprep.subr.mxu0 0.0
      %2936 = vmatpush1.msra.mxu0 0.0
      %2937 = vmatprep.mubr.f32.mxu0 0.0
      %2938 = vmatmul.mubr.f32.gmra.mrb[0].mxu0 %v2826
      %v2939 = vpop.f32.mrb[0].mxu0
      %v2940 = vadd.f32 %v2809, %v2939
      %v2941 = vpop.f32.mrb[0].mxu0
      %2942 = vmatprep.mubr.f32.mxu0 0.0
      %2943 = vmatmul.mubr.f32.gmra.mrb[0].mxu0 %v2829
      %v2944 = vpop.f32.mrb[0].mxu0
      %v2945 = vadd.f32 %v2810, %v2944
      %v2946 = vpop.f32.mrb[0].mxu0
      %2947 = vmatprep.mubr.f32.mxu0 0.0
      %2948 = vmatmul.mubr.f32.gmra.mrb[0].mxu0 %v2832
      %v2949 = vpop.f32.mrb[0].mxu0
      %v2950 = vadd.f32 %v2811, %v2949
      %v2951 = vpop.f32.mrb[0].mxu0
      %2952 = vmatprep.mubr.f32.mxu0 0.0
      %2953 = vmatmul.mubr.f32.gmra.mrb[0].mxu0 %v2835
      %v2954 = vpop.f32.mrb[0].mxu0
      %v2955 = vadd.f32 %v2812, %v2954
      %v2956 = vpop.f32.mrb[0].mxu0
      %2957 = vmatprep.mubr.f32.mxu0 0.0
      %2958 = vmatmul.mubr.f32.gmra.mrb[0].mxu0 %v2838
      %v2959 = vpop.f32.mrb[0].mxu0
      %v2960 = vadd.f32 %v2813, %v2959
      %v2961 = vpop.f32.mrb[0].mxu0
      %2962 = vmatprep.mubr.f32.mxu0 0.0
      %2963 = vmatmul.mubr.f32.gmra.mrb[0].mxu0 %v2841
      %v2964 = vpop.f32.mrb[0].mxu0
      %v2965 = vadd.f32 %v2814, %v2964
      %v2966 = vpop.f32.mrb[0].mxu0
      %2967 = vmatprep.mubr.f32.mxu0 0.0
      %2968 = vmatmul.mubr.f32.gmra.mrb[0].mxu0 %v2844
      %v2969 = vpop.f32.mrb[0].mxu0
      %v2970 = vadd.f32 %v2815, %v2969
      %v2971 = vpop.f32.mrb[0].mxu0
      %2972 = vmatprep.mubr.f32.mxu0 0.0
      %2973 = vmatmul.mubr.f32.gmra.mrb[0].mxu0 %v2847
      %v2974 = vpop.f32.mrb[0].mxu0
      %v2975 = vadd.f32 %v2816, %v2974
      %v2976 = vpop.f32.mrb[0].mxu0
      %2977 = vmatprep.mubr.f32.mxu0 0.0
      %2978 = vmatmul.mubr.f32.gmra.mrb[0].mxu0 %v2850
      %v2979 = vpop.f32.mrb[0].mxu0
      %v2980 = vadd.f32 %v2817, %v2979
      %v2981 = vpop.f32.mrb[0].mxu0
      %2982 = vmatprep.mubr.f32.mxu0 0.0
      %2983 = vmatmul.mubr.f32.gmra.mrb[0].mxu0 %v2853
      %v2984 = vpop.f32.mrb[0].mxu0
      %v2985 = vadd.f32 %v2818, %v2984
      %v2986 = vpop.f32.mrb[0].mxu0
      %2987 = vmatprep.mubr.f32.mxu0 0.0
      %2988 = vmatmul.mubr.f32.gmra.mrb[0].mxu0 %v2856
      %v2989 = vpop.f32.mrb[0].mxu0
      %v2990 = vadd.f32 %v2819, %v2989
      %v2991 = vpop.f32.mrb[0].mxu0
      %2992 = vmatprep.mubr.f32.mxu0 0.0
      %2993 = vmatmul.mubr.f32.gmra.mrb[0].mxu0 %v2859
      %v2994 = vpop.f32.mrb[0].mxu0
      %v2995 = vadd.f32 %v2820, %v2994
      %v2996 = vpop.f32.mrb[0].mxu0
      %2997 = vmatprep.mubr.f32.mxu0 0.0
      %2998 = vmatmul.mubr.f32.gmra.mrb[0].mxu0 %v2862
      %v2999 = vpop.f32.mrb[0].mxu0
      %v3000 = vadd.f32 %v2821, %v2999
      %v3001 = vpop.f32.mrb[0].mxu0
      %3002 = vmatprep.mubr.f32.mxu0 0.0
      %3003 = vmatmul.mubr.f32.gmra.mrb[0].mxu0 %v2865
      %v3004 = vpop.f32.mrb[0].mxu0
      %v3005 = vadd.f32 %v2822, %v3004
      %v3006 = vpop.f32.mrb[0].mxu0
      %3007 = vmatprep.mubr.f32.mxu0 0.0
      %3008 = vmatmul.mubr.f32.gmra.mrb[0].mxu0 %v2868
      %v3009 = vpop.f32.mrb[0].mxu0
      %v3010 = vadd.f32 %v2823, %v3009
      %v3011 = vpop.f32.mrb[0].mxu0
      %3012 = vmatprep.mubr.f32.mxu0 0.0
      %3013 = vmatmul.mubr.f32.gmra.mrb[0].mxu0 %v2871
      %v3014 = vpop.f32.mrb[0].mxu0
      %v3015 = vadd.f32 %v2824, %v3014
      %v3016 = vpop.f32.mrb[0].mxu0
      %3017 = vdwg.mxu0
      %vm3018 = vcmask 7168
      %3019 = vst.msk [vmem:[%s676] sm:$0xff] %vm3018, %v2940
      %3020 = vst.msk [vmem:[%s676 + $0x8] sm:$0xff] %vm3018, %v2945
      %3021 = vst.msk [vmem:[%s676 + $0x10] sm:$0xff] %vm3018, %v2950
      %3022 = vst.msk [vmem:[%s676 + $0x18] sm:$0xff] %vm3018, %v2955
      %3023 = vst.msk [vmem:[%s676 + $0x20] sm:$0xff] %vm3018, %v2960
      %3024 = vst.msk [vmem:[%s676 + $0x28] sm:$0xff] %vm3018, %v2965
      %3025 = vst.msk [vmem:[%s676 + $0x30] sm:$0xff] %vm3018, %v2970
      %3026 = vst.msk [vmem:[%s676 + $0x38] sm:$0xff] %vm3018, %v2975
      %3027 = vst.msk [vmem:[%s676 + $0x40] sm:$0xff] %vm3018, %v2980
      %3028 = vst.msk [vmem:[%s676 + $0x48] sm:$0xff] %vm3018, %v2985
      %3029 = vst.msk [vmem:[%s676 + $0x50] sm:$0xff] %vm3018, %v2990
      %3030 = vst.msk [vmem:[%s676 + $0x58] sm:$0xff] %vm3018, %v2995
      %3031 = vst.msk [vmem:[%s676 + $0x60] sm:$0xff] %vm3018, %v3000
      %3032 = vst.msk [vmem:[%s676 + $0x68] sm:$0xff] %vm3018, %v3005
      %3033 = vst.msk [vmem:[%s676 + $0x70] sm:$0xff] %vm3018, %v3010
      %3034 = vst.msk [vmem:[%s676 + $0x78] sm:$0xff] %vm3018, %v3015
      %p3035 = scmp.lt.s32.totalorder %s32, 1
      %s3036 = scalar_select %p3035, %s32, 1
      %s3037 = smul.addr %s3036, 16
      %s3038 = smul.addr %s3037, 8
      %s3039 = scalar_lea.vmem %s21, %s3038
      // Predicated region
      $region105: #{forward.1} parent=103 // pred_check
        %p3040 = pneg %p501
      $region106: #{forward.1} parent=103 // pred_check_branch
        %3042 = sbr.rel (%p3040) target = $region108
      $region107: #{forward.1} parent=103 // pred_region
        _
      $region108: #{forward.1} parent=103 // pred_fallthru
        _
    $region104: #{forward.1} parent=5 // pred_fallthru
      _
    %p3043 = scmp.le.s32.totalorder 2, %s27
    // Predicated region
    $region109: #{forward.1} parent=5 // pred_check
      %p3044 = pneg %p3043
    $region110: #{forward.1} parent=5 // pred_check_branch
      %3046 = sbr.rel (%p3044) target = $region112
    $region111: #{forward.1} parent=5 // pred_region
      %s3047 = ssub.s32 %s27, 2
      // Predicated region
      $region113: #{forward.1} parent=111 // pred_check
        %p3048 = pneg %p507
      $region114: #{forward.1} parent=111 // pred_check_branch
        %3050 = sbr.rel (%p3048) target = $region116
      $region115: #{forward.1} parent=111 // pred_region
        %p3051 = scmp.lt.s32.totalorder %s33, 1
        %s3052 = scalar_select %p3051, %s33, 1
        %s3053 = smul.addr %s3052, 16
        %s3054 = smul.addr %s3053, 8
        %s3055 = scalar_lea.vmem %s21, %s3054
      $region116: #{forward.1} parent=111 // pred_fallthru
        _
    $region112: #{forward.1} parent=5 // pred_fallthru
      _
  $region6: #{forward.1} parent=0 // loop_footer
    %s31 = sadd.s32 1, %s27
  $region7: #{forward.1} parent=0 // loop_footer_branch
    %26 = sbr.rel target = $region3
  $region8: #{forward.1} parent=0 // loop_exit
    _

</llo_original>
